<compile_context>
chip_gen: v5e
topology: v5e:2x2
jax: 0.10.0
libtpu: 0.0.40
codegen_flags: <defaults>
</compile_context>

<pallas_src>
import functools
import math

import jax
import jax.numpy as jnp
from jax.experimental import pallas as pl
from jax.experimental.pallas import tpu as pltpu


def _layer_norm(x, gamma, beta, eps):
    mu = jnp.mean(x, axis=-1, keepdims=True)
    xc = x - mu
    var = jnp.mean(xc * xc, axis=-1, keepdims=True)
    return xc * jax.lax.rsqrt(var + eps) * gamma + beta


def encoder_layer_kernel(
    x_full_ref,                 # (S, D)   f32   full sequence, current batch elem
    xq_ref,                     # (tq, D)  f32   current query tile (Q + residual)
    wq_ref, bq_ref,             # (D, D)  bf16 / (1, D)  f32
    wkv_ref, bkv_ref,           # (2D, D) bf16 / (2D, 1) f32   fused K|V (row-major)
    wo_ref, bo_ref,             # (D, D)  bf16 / (1, D)  f32
    w1_ref, b1_ref,             # (D, F)  bf16 / (1, F)  f32
    w2_ref, b2_ref,             # (F, D)  bf16 / (1, D)  f32
    g1_ref, be1_ref,            # (1, D)  f32   norm1
    g2_ref, be2_ref,            # (1, D)  f32   norm2
    o_ref,                      # (tq, D)
    k_scr, v_scr,               # (H, hd, S) bf16  S-lane-major, persist across q tiles
    q_scr,                      # (H, tq, hd) bf16
    attn_scr,                   # (H, tq, hd) f32
    *, nhead, seq_len, q_tile, head_group, d_model, eps, scale, use_exp2,
):
    hd = d_model // nhead
    qt = pl.program_id(1)
    bf16 = jnp.bfloat16
    f32 = jnp.float32

    # ---- fused K|V projection for the full sequence, once per batch element ----
    # kvT[j, s] = sum_d wkv[j, d] * x[s, d]  (contract last dims of both): K/V land
    # directly in the S-lane-major (H, hd, S) layout, no in-kernel transpose.
    @pl.when(qt == 0)
    def _():
        x_bf = x_full_ref[...].astype(bf16)
        kvt = jax.lax.dot_general(
            wkv_ref[...], x_bf,
            dimension_numbers=(((1,), (1,)), ((), ())),
            preferred_element_type=f32)                         # (2D, S)
        kvt = kvt + bkv_ref[...]                                # (2D, 1) bcast over S
        kvt = kvt.astype(bf16).reshape(2, nhead, hd, seq_len)
        k_scr[...] = kvt[0]
        v_scr[...] = kvt[1]

    # ---- Q projection for this tile (scale folded into q, not the S^2 scores) ----
    xq = xq_ref[...]                                            # (tq, D) f32
    q = jnp.dot(xq.astype(bf16), wq_ref[...],
                preferred_element_type=f32) + bq_ref[0]
    q = q * scale                                               # includes log2(e) if exp2
    q_scr[...] = pltpu.einshape("qnd->nqd",
                                q.reshape(q_tile, nhead, hd)).astype(bf16)

    # ---- attention in head groups: bounds the f32 (gh, tq, S) transient ----
    @pl.loop(0, nhead // head_group)
    def _(g):
        h0 = pl.multiple_of(g * head_group, head_group)
        qg = q_scr[pl.ds(h0, head_group), :, :]                 # (gh, tq, hd) bf16
        kg = k_scr[pl.ds(h0, head_group), :, :]                 # (gh, hd, S)  bf16
        vg = v_scr[pl.ds(h0, head_group), :, :]                 # (gh, hd, S)  bf16
        s = jnp.einsum("nqd,ndk->nqk", qg, kg,
                       preferred_element_type=f32)              # (gh, tq, S) f32
        m = jnp.max(s, axis=-1, keepdims=True)
        p = jnp.exp2(s - m) if use_exp2 else jnp.exp(s - m)
        l = jnp.sum(p, axis=-1, keepdims=True)
        # Deferred normalization: PV with unnormalized p (bf16), rescale the small
        # (gh, tq, hd) result once instead of the (gh, tq, S) score matrix.
        og = jnp.einsum("nqk,ndk->nqd", p.astype(bf16), vg,
                        preferred_element_type=f32)             # (gh, tq, hd) f32
        attn_scr[pl.ds(h0, head_group), :, :] = og * pl.reciprocal(l, approx=True)

    attn = pltpu.einshape("nqd->qnd", attn_scr[...]).reshape(q_tile, d_model)

    # ---- output projection + residual + LayerNorm 1 (f32) ----
    attn_out = jnp.dot(attn.astype(bf16), wo_ref[...],
                       preferred_element_type=f32) + bo_ref[0]
    y = _layer_norm(xq + attn_out, g1_ref[0], be1_ref[0], eps)

    # ---- FFN (linear1 -> ReLU -> linear2) + residual + LayerNorm 2 ----
    h1 = jnp.dot(y.astype(bf16), w1_ref[...],
                 preferred_element_type=f32) + b1_ref[0]
    h1 = jnp.maximum(h1, 0.0)
    z = jnp.dot(h1.astype(bf16), w2_ref[...],
                preferred_element_type=f32) + b2_ref[0]
    out = _layer_norm(y + z, g2_ref[0], be2_ref[0], eps)

    o_ref[...] = out.astype(o_ref.dtype)


def transformer_encoder_layer(src, params, *, d_model, nhead, dim_feedforward,
                              eps=1e-5, q_tile=128, score_bytes_budget=4 << 20):
    """src: (B, S, D) float32.  Returns (B, S, D)."""
    B, S, D = src.shape
    assert D == d_model and D % nhead == 0
    F = dim_feedforward
    hd = D // nhead

    # Query tile: whole sequence if short, otherwise a fixed aligned tile
    # (128 by default; 256 also fine on v6e/v7x).  Ragged tails are handled by
    # Pallas block boundary masking: garbage rows only affect discarded output
    # rows since every op after the Q projection is row-wise.
    if S <= q_tile:
        tq = S
    else:
        assert q_tile % 8 == 0, "q_tile must be sublane-aligned (use multiples of 128)"
        tq = q_tile
    nq = pl.cdiv(S, tq)

    # Head-group size: largest divisor of nhead whose f32 (gh, tq, S) score
    # transient fits the budget -> per-step attention VMEM stays bounded.
    per_head_bytes = tq * S * 4
    gh = 1
    for cand in range(nhead, 0, -1):
        if nhead % cand == 0 and cand * per_head_bytes <= score_bytes_budget:
            gh = cand
            break

    bf16 = jnp.bfloat16
    f32 = jnp.float32
    w_in = params["in_proj_weight"]                 # (3D, D), rows = [q; k; v]
    b_in = params["in_proj_bias"]                   # (3D,)
    wq = w_in[:D].T.astype(bf16)                    # (D, D): x @ wq == x @ Wq^T
    bq = b_in[:D][None, :].astype(f32)
    wkv = w_in[D:].astype(bf16)                     # (2D, D) row-major (used vs x^T)
    bkv = b_in[D:][:, None].astype(f32)             # (2D, 1)
    wo = params["out_proj_weight"].T.astype(bf16)
    bo = params["out_proj_bias"][None, :].astype(f32)
    w1 = params["linear1_weight"].T.astype(bf16)
    b1 = params["linear1_bias"][None, :].astype(f32)
    w2 = params["linear2_weight"].T.astype(bf16)
    b2 = params["linear2_bias"][None, :].astype(f32)
    g1 = params["norm1_weight"][None, :].astype(f32)
    be1 = params["norm1_bias"][None, :].astype(f32)
    g2 = params["norm2_weight"][None, :].astype(f32)
    be2 = params["norm2_bias"][None, :].astype(f32)

    flops = B * (8 * S * D * D + 4 * S * S * D + 4 * S * D * F)
    transcendentals = B * (nhead * S * S + 4 * S)
    bytes_accessed = (3 * B * S * D * 4                      # activations (x read twice + out)
                      + 2 * (4 * D * D + 2 * D * F)          # bf16 weights
                      + 4 * (11 * D + F))                    # f32 biases / norm params
    cost = pl.CostEstimate(flops=flops, transcendentals=transcendentals,
                           bytes_accessed=bytes_accessed)

    def build_and_call(single_buffer_weights, use_exp2):
        if single_buffer_weights:
            # Grid-invariant operands are DMA'd once; single-buffering halves
            # their VMEM footprint (biggest single VMEM win, zero perf cost).
            def const_spec(shape):
                return pl.BlockSpec(shape, lambda b, t: (0, 0),
                                    pipeline_mode=pl.Buffered(1))
        else:
            def const_spec(shape):
                return pl.BlockSpec(shape, lambda b, t: (0, 0))

        # exp(x) == exp2(x * log2 e): fold log2(e) into the query scale so the
        # softmax exp uses the cheaper exp2 path (relieves EUP on v6e/v7x).
        scale = (math.log2(math.e) if use_exp2 else 1.0) / math.sqrt(hd)

        kernel = functools.partial(
            encoder_layer_kernel, nhead=nhead, seq_len=S, q_tile=tq,
            head_group=gh, d_model=D, eps=eps, scale=scale, use_exp2=use_exp2)

        grid_spec = pltpu.PrefetchScalarGridSpec(
            num_scalar_prefetch=0,
            grid=(B, nq),
            in_specs=[
                # Full sequence for the qt==0 K/V projection (resident per batch
                # element; double-buffered so the next batch's DMA overlaps).
                pl.BlockSpec((None, S, D), lambda b, t: (b, 0, 0)),
                # Current query tile (Q + residual path); tolerates ragged tails.
                pl.BlockSpec((None, tq, D), lambda b, t: (b, t, 0)),
                const_spec((D, D)), const_spec((1, D)),            # wq, bq
                const_spec((2 * D, D)), const_spec((2 * D, 1)),    # wkv, bkv (fused)
                const_spec((D, D)), const_spec((1, D)),            # wo, bo
                const_spec((D, F)), const_spec((1, F)),            # w1, b1
                const_spec((F, D)), const_spec((1, D)),            # w2, b2
                const_spec((1, D)), const_spec((1, D)),            # g1, be1
                const_spec((1, D)), const_spec((1, D)),            # g2, be2
            ],
            out_specs=pl.BlockSpec((None, tq, D), lambda b, t: (b, t, 0)),
            scratch_shapes=[
                pltpu.VMEM((nhead, hd, S), bf16),    # K^T (S on lanes, no hd<128 pad)
                pltpu.VMEM((nhead, hd, S), bf16),    # V^T
                pltpu.VMEM((nhead, tq, hd), bf16),   # Q  (sliced per head group)
                pltpu.VMEM((nhead, tq, hd), f32),    # per-head attention output
            ],
        )

        return pl.pallas_call(
            kernel,
            out_shape=jax.ShapeDtypeStruct((B, S, D), src.dtype),
            grid_spec=grid_spec,
            compiler_params=pltpu.CompilerParams(
                # The query-tile axis MUST stay sequential ("arbitrary"): the
                # qt==0 K/V scratch fill is reused by later tiles of the same
                # batch element.  Only the batch axis is megacore-parallel.
                # TODO(synk): for B == 1 on 2-TC parts, split head groups across
                # cores (each core running its own K/V projection) instead.
                dimension_semantics=("parallel", "arbitrary"),
                vmem_limit_bytes=100 * 1024 * 1024,
            ),
            cost_estimate=cost,
        )(src, src, wq, bq, wkv, bkv, wo, bo, w1, b1, w2, b2, g1, be1, g2, be2)

    try:
        return build_and_call(single_buffer_weights=True, use_exp2=True)
    except Exception:
        # Conservative fallback for jax versions without pl.Buffered(1)
        # single-buffering or an exp2 lowering rule; numerics are identical.
        return build_and_call(single_buffer_weights=False, use_exp2=False)


def init_params(key, d_model, nhead, dim_feedforward):
    ks = jax.random.split(key, 8)
    s = 0.02
    return {
        "in_proj_weight": s * jax.random.normal(ks[0], (3 * d_model, d_model), jnp.float32),
        "in_proj_bias": s * jax.random.normal(ks[1], (3 * d_model,), jnp.float32),
        "out_proj_weight": s * jax.random.normal(ks[2], (d_model, d_model), jnp.float32),
        "out_proj_bias": s * jax.random.normal(ks[3], (d_model,), jnp.float32),
        "linear1_weight": s * jax.random.normal(ks[4], (dim_feedforward, d_model), jnp.float32),
        "linear1_bias": s * jax.random.normal(ks[5], (dim_feedforward,), jnp.float32),
        "linear2_weight": s * jax.random.normal(ks[6], (d_model, dim_feedforward), jnp.float32),
        "linear2_bias": s * jax.random.normal(ks[7], (d_model,), jnp.float32),
        "norm1_weight": jnp.ones((d_model,), jnp.float32),
        "norm1_bias": jnp.zeros((d_model,), jnp.float32),
        "norm2_weight": jnp.ones((d_model,), jnp.float32),
        "norm2_bias": jnp.zeros((d_model,), jnp.float32),
    }


def reference(src, p, *, nhead, eps=1e-5):
    """Pure-JAX f32 reference of the PyTorch forward (dropout = identity)."""
    B, S, D = src.shape
    hd = D // nhead
    qkv = src @ p["in_proj_weight"].T + p["in_proj_bias"]
    q, k, v = jnp.split(qkv, 3, axis=-1)
    q = q.reshape(B, S, nhead, hd).transpose(0, 2, 1, 3)
    k = k.reshape(B, S, nhead, hd).transpose(0, 2, 1, 3)
    v = v.reshape(B, S, nhead, hd).transpose(0, 2, 1, 3)
    scores = jnp.einsum("bhqd,bhkd->bhqk", q, k) / math.sqrt(hd)
    attn = jax.nn.softmax(scores, axis=-1)
    o = jnp.einsum("bhqk,bhkd->bhqd", attn, v).transpose(0, 2, 1, 3).reshape(B, S, D)
    o = o @ p["out_proj_weight"].T + p["out_proj_bias"]
    x = src + o
    mu = x.mean(-1, keepdims=True)
    var = ((x - mu) ** 2).mean(-1, keepdims=True)
    x = (x - mu) / jnp.sqrt(var + eps) * p["norm1_weight"] + p["norm1_bias"]
    h = jnp.maximum(x @ p["linear1_weight"].T + p["linear1_bias"], 0.0)
    z = h @ p["linear2_weight"].T + p["linear2_bias"]
    y = x + z
    mu = y.mean(-1, keepdims=True)
    var = ((y - mu) ** 2).mean(-1, keepdims=True)
    return (y - mu) / jnp.sqrt(var + eps) * p["norm2_weight"] + p["norm2_bias"]


if __name__ == "__main__":
    B, d_model, nhead, dim_ff = 2, 32, 4, 64
    key = jax.random.PRNGKey(0)
    k_x1, k_x2, k_p = jax.random.split(key, 3)
    params = init_params(k_p, d_model, nhead, dim_ff)

    # Test 1: single query tile, single head group.
    S1 = 8
    src1 = jax.random.normal(k_x1, (B, S1, d_model), jnp.float32)
    out1 = jax.block_until_ready(transformer_encoder_layer(
        src1, params, d_model=d_model, nhead=nhead, dim_feedforward=dim_ff))
    ref1 = reference(src1, params, nhead=nhead)
    assert out1.shape == (B, S1, d_model)
    # bf16 matmul operands + approx softmax reciprocal -> loosened tolerance.
    assert jnp.allclose(out1, ref1, atol=2e-2, rtol=2e-2), "mismatch vs reference (test 1)"

    # Test 2: two query tiles (K/V scratch reuse) and two head groups (pl.loop path).
    S2 = 16
    src2 = jax.random.normal(k_x2, (B, S2, d_model), jnp.float32)
    out2 = jax.block_until_ready(transformer_encoder_layer(
        src2, params, d_model=d_model, nhead=nhead, dim_feedforward=dim_ff,
        q_tile=8, score_bytes_budget=1024))
    ref2 = reference(src2, params, nhead=nhead)
    assert out2.shape == (B, S2, d_model)
    assert jnp.allclose(out2, ref2, atol=2e-2, rtol=2e-2), "mismatch vs reference (test 2)"

    print("KERNEL_OK")
</pallas_src>

<mosaic_0001>
module attributes {stable_mosaic.version = 11 : i64} {
  func.func @encoder_layer_kernel(%arg0: i32, %arg1: i32, %arg2: memref<1x8x32xf32, #tpu.memory_space<vmem>>, %arg3: memref<1x8x32xf32, #tpu.memory_space<vmem>>, %arg4: memref<32x32xbf16, #tpu.memory_space<vmem>>, %arg5: memref<1x32xf32, #tpu.memory_space<vmem>>, %arg6: memref<64x32xbf16, #tpu.memory_space<vmem>>, %arg7: memref<64x1xf32, #tpu.memory_space<vmem>>, %arg8: memref<32x32xbf16, #tpu.memory_space<vmem>>, %arg9: memref<1x32xf32, #tpu.memory_space<vmem>>, %arg10: memref<32x64xbf16, #tpu.memory_space<vmem>>, %arg11: memref<1x64xf32, #tpu.memory_space<vmem>>, %arg12: memref<64x32xbf16, #tpu.memory_space<vmem>>, %arg13: memref<1x32xf32, #tpu.memory_space<vmem>>, %arg14: memref<1x32xf32, #tpu.memory_space<vmem>>, %arg15: memref<1x32xf32, #tpu.memory_space<vmem>>, %arg16: memref<1x32xf32, #tpu.memory_space<vmem>>, %arg17: memref<1x32xf32, #tpu.memory_space<vmem>>, %arg18: memref<1x8x32xf32, #tpu.memory_space<vmem>>, %arg19: memref<4x8x8xbf16, #tpu.memory_space<vmem>>, %arg20: memref<4x8x8xbf16, #tpu.memory_space<vmem>>, %arg21: memref<4x8x8xbf16, #tpu.memory_space<vmem>>, %arg22: memref<4x8x8xf32, #tpu.memory_space<vmem>>) attributes {dimension_semantics = [#tpu.dimension_semantics<parallel>, #tpu.dimension_semantics<arbitrary>], iteration_bounds = array<i64: 2, 1>, scalar_prefetch = 0 : i64, scratch_operands = 4 : i64, tpu.core_type = #tpu.core_type<tc>, window_params = [{transform_indices = @transform_0, window_bounds = array<i64: 1, 8, 32>}, {transform_indices = @transform_1, window_bounds = array<i64: 1, 8, 32>}, {pipeline_mode = #tpu.pipeline_mode<synchronous>, transform_indices = @transform_2, window_bounds = array<i64: 32, 32>}, {pipeline_mode = #tpu.pipeline_mode<synchronous>, transform_indices = @transform_3, window_bounds = array<i64: 1, 32>}, {pipeline_mode = #tpu.pipeline_mode<synchronous>, transform_indices = @transform_4, window_bounds = array<i64: 64, 32>}, {pipeline_mode = #tpu.pipeline_mode<synchronous>, transform_indices = @transform_5, window_bounds = array<i64: 64, 1>}, {pipeline_mode = #tpu.pipeline_mode<synchronous>, transform_indices = @transform_6, window_bounds = array<i64: 32, 32>}, {pipeline_mode = #tpu.pipeline_mode<synchronous>, transform_indices = @transform_7, window_bounds = array<i64: 1, 32>}, {pipeline_mode = #tpu.pipeline_mode<synchronous>, transform_indices = @transform_8, window_bounds = array<i64: 32, 64>}, {pipeline_mode = #tpu.pipeline_mode<synchronous>, transform_indices = @transform_9, window_bounds = array<i64: 1, 64>}, {pipeline_mode = #tpu.pipeline_mode<synchronous>, transform_indices = @transform_10, window_bounds = array<i64: 64, 32>}, {pipeline_mode = #tpu.pipeline_mode<synchronous>, transform_indices = @transform_11, window_bounds = array<i64: 1, 32>}, {pipeline_mode = #tpu.pipeline_mode<synchronous>, transform_indices = @transform_12, window_bounds = array<i64: 1, 32>}, {pipeline_mode = #tpu.pipeline_mode<synchronous>, transform_indices = @transform_13, window_bounds = array<i64: 1, 32>}, {pipeline_mode = #tpu.pipeline_mode<synchronous>, transform_indices = @transform_14, window_bounds = array<i64: 1, 32>}, {pipeline_mode = #tpu.pipeline_mode<synchronous>, transform_indices = @transform_15, window_bounds = array<i64: 1, 32>}, {transform_indices = @transform_16, window_bounds = array<i64: 1, 8, 32>}]} {
    %c0_i32 = arith.constant 0 : i32
    %0 = arith.cmpi eq, %arg1, %c0_i32 : i32
    %1 = arith.extui %0 : i1 to i32
    %c0_i32_0 = arith.constant 0 : i32
    %2 = arith.cmpi ne, %1, %c0_i32_0 : i32
    scf.if %2 {
      %c0_66 = arith.constant 0 : index
      %c0_67 = arith.constant 0 : index
      %c0_68 = arith.constant 0 : index
      %130 = vector.load %arg2[%c0_66, %c0_67, %c0_68] : memref<1x8x32xf32, #tpu.memory_space<vmem>>, vector<1x8x32xf32>
      %131 = vector.shape_cast %130 : vector<1x8x32xf32> to vector<8x32xf32>
      %132 = arith.truncf %131 : vector<8x32xf32> to vector<8x32xbf16>
      %c0_69 = arith.constant 0 : index
      %c0_70 = arith.constant 0 : index
      %133 = vector.load %arg6[%c0_69, %c0_70] : memref<64x32xbf16, #tpu.memory_space<vmem>>, vector<64x32xbf16>
      %cst_71 = arith.constant dense<0.000000e+00> : vector<64x8xf32>
      %134 = tpu.matmul %133, %132, %cst_71 {dimension_numbers = #tpu.dot_dimension_numbers<[1], [1], [0], [0], [0, 0, 1, 0], [], []>} : vector<64x32xbf16>, vector<8x32xbf16>, vector<64x8xf32> -> vector<64x8xf32>
      %c0_72 = arith.constant 0 : index
      %c0_73 = arith.constant 0 : index
      %135 = vector.load %arg7[%c0_72, %c0_73] : memref<64x1xf32, #tpu.memory_space<vmem>>, vector<64x1xf32>
      %136 = vector.broadcast %135 : vector<64x1xf32> to vector<64x8xf32>
      %137 = arith.addf %134, %136 : vector<64x8xf32>
      %138 = arith.truncf %137 : vector<64x8xf32> to vector<64x8xbf16>
      %139 = vector.shape_cast %138 : vector<64x8xbf16> to vector<2x4x8x8xbf16>
      %140 = vector.extract_strided_slice %139 {offsets = [0, 0, 0, 0], sizes = [1, 4, 8, 8], strides = [1, 1, 1, 1]} : vector<2x4x8x8xbf16> to vector<1x4x8x8xbf16>
      %141 = vector.shape_cast %140 : vector<1x4x8x8xbf16> to vector<4x8x8xbf16>
      %c0_74 = arith.constant 0 : index
      %c0_75 = arith.constant 0 : index
      %c0_76 = arith.constant 0 : index
      %142 = vector.load %arg19[%c0_74, %c0_75, %c0_76] : memref<4x8x8xbf16, #tpu.memory_space<vmem>>, vector<4x8x8xbf16>
      tpu.vector_store %arg19[%c0_74, %c0_75, %c0_76], %141 {strides = array<i32>} : memref<4x8x8xbf16, #tpu.memory_space<vmem>>, vector<4x8x8xbf16>,
      %143 = vector.extract_strided_slice %139 {offsets = [1, 0, 0, 0], sizes = [1, 4, 8, 8], strides = [1, 1, 1, 1]} : vector<2x4x8x8xbf16> to vector<1x4x8x8xbf16>
      %144 = vector.shape_cast %143 : vector<1x4x8x8xbf16> to vector<4x8x8xbf16>
      %c0_77 = arith.constant 0 : index
      %c0_78 = arith.constant 0 : index
      %c0_79 = arith.constant 0 : index
      %145 = vector.load %arg20[%c0_77, %c0_78, %c0_79] : memref<4x8x8xbf16, #tpu.memory_space<vmem>>, vector<4x8x8xbf16>
      tpu.vector_store %arg20[%c0_77, %c0_78, %c0_79], %144 {strides = array<i32>} : memref<4x8x8xbf16, #tpu.memory_space<vmem>>, vector<4x8x8xbf16>,
    } else {
    }
    %c0 = arith.constant 0 : index
    %c0_1 = arith.constant 0 : index
    %c0_2 = arith.constant 0 : index
    %3 = vector.load %arg3[%c0, %c0_1, %c0_2] : memref<1x8x32xf32, #tpu.memory_space<vmem>>, vector<1x8x32xf32>
    %4 = vector.shape_cast %3 : vector<1x8x32xf32> to vector<8x32xf32>
    %5 = arith.truncf %4 : vector<8x32xf32> to vector<8x32xbf16>
    %c0_3 = arith.constant 0 : index
    %c0_4 = arith.constant 0 : index
    %6 = vector.load %arg4[%c0_3, %c0_4] : memref<32x32xbf16, #tpu.memory_space<vmem>>, vector<32x32xbf16>
    %cst = arith.constant dense<0.000000e+00> : vector<8x32xf32>
    %7 = tpu.matmul %5, %6, %cst {dimension_numbers = #tpu.dot_dimension_numbers<[1], [0], [0], [1], [0, 0, 1, 1], [], []>} : vector<8x32xbf16>, vector<32x32xbf16>, vector<8x32xf32> -> vector<8x32xf32>
    %c0_5 = arith.constant 0 : index
    %c0_6 = arith.constant 0 : index
    %8 = vector.load %arg5[%c0_5, %c0_6] : memref<1x32xf32, #tpu.memory_space<vmem>>, vector<1x32xf32>
    %9 = vector.shape_cast %8 : vector<1x32xf32> to vector<32xf32>
    %10 = vector.shape_cast %9 : vector<32xf32> to vector<1x32xf32>
    %11 = vector.broadcast %10 : vector<1x32xf32> to vector<8x32xf32>
    %12 = arith.addf %7, %11 : vector<8x32xf32>
    %cst_7 = arith.constant 0.510069728 : f32
    %13 = vector.broadcast %cst_7 : f32 to vector<8x32xf32>
    %14 = arith.mulf %12, %13 : vector<8x32xf32>
    %15 = vector.shape_cast %14 : vector<8x32xf32> to vector<8x4x8xf32>
    %16 = tpu.transpose %15, [1, 0, 2] : vector<8x4x8xf32> -> vector<4x8x8xf32>
    %17 = arith.truncf %16 : vector<4x8x8xf32> to vector<4x8x8xbf16>
    %c0_8 = arith.constant 0 : index
    %c0_9 = arith.constant 0 : index
    %c0_10 = arith.constant 0 : index
    %18 = vector.load %arg21[%c0_8, %c0_9, %c0_10] : memref<4x8x8xbf16, #tpu.memory_space<vmem>>, vector<4x8x8xbf16>
    tpu.vector_store %arg21[%c0_8, %c0_9, %c0_10], %17 {strides = array<i32>} : memref<4x8x8xbf16, #tpu.memory_space<vmem>>, vector<4x8x8xbf16>,
    %c0_i32_11 = arith.constant 0 : i32
    %c1_i32 = arith.constant 1 : i32
    %19 = arith.muli %c0_i32_11, %c1_i32 : i32
    %c0_i32_12 = arith.constant 0 : i32
    %20 = arith.addi %c0_i32_12, %19 : i32
    %c4_i32 = arith.constant 4 : i32
    %21 = arith.muli %20, %c4_i32 : i32
    %22 = tpu.assume_multiple %21, 4 : i32
    %23 = arith.index_cast %22 : i32 to index
    %c0_13 = arith.constant 0 : index
    %c0_14 = arith.constant 0 : index
    %24 = vector.load %arg21[%23, %c0_13, %c0_14] : memref<4x8x8xbf16, #tpu.memory_space<vmem>>, vector<4x8x8xbf16>
    %25 = arith.index_cast %22 : i32 to index
    %c0_15 = arith.constant 0 : index
    %c0_16 = arith.constant 0 : index
    %26 = vector.load %arg19[%25, %c0_15, %c0_16] : memref<4x8x8xbf16, #tpu.memory_space<vmem>>, vector<4x8x8xbf16>
    %27 = arith.index_cast %22 : i32 to index
    %c0_17 = arith.constant 0 : index
    %c0_18 = arith.constant 0 : index
    %28 = vector.load %arg20[%27, %c0_17, %c0_18] : memref<4x8x8xbf16, #tpu.memory_space<vmem>>, vector<4x8x8xbf16>
    "tpu.trace_start"() <{level = 10 : i32, message = "nqd,ndk->nqk"}> : () -> ()
    %cst_19 = arith.constant dense<0.000000e+00> : vector<4x8x8xf32>
    %29 = tpu.matmul %24, %26, %cst_19 {dimension_numbers = #tpu.dot_dimension_numbers<[2], [1], [1], [2], [0, 0, 0, 1, 1, 2], [0], [0]>} : vector<4x8x8xbf16>, vector<4x8x8xbf16>, vector<4x8x8xf32> -> vector<4x8x8xf32>
    "tpu.trace_stop"() : () -> ()
    %cst_20 = arith.constant dense<0xFF800000> : vector<4x8xf32>
    %30 = vector.multi_reduction <maximumf>, %29, %cst_20 [2] : vector<4x8x8xf32> to vector<4x8xf32>
    %31 = vector.shape_cast %30 : vector<4x8xf32> to vector<4x8x1xf32>
    %32 = vector.broadcast %31 : vector<4x8x1xf32> to vector<4x8x8xf32>
    %33 = arith.subf %29, %32 : vector<4x8x8xf32>
    %34 = math.exp2 %33 : vector<4x8x8xf32>
    %cst_21 = arith.constant dense<0.000000e+00> : vector<4x8xf32>
    %35 = vector.multi_reduction <add>, %34, %cst_21 [2] : vector<4x8x8xf32> to vector<4x8xf32>
    %36 = vector.shape_cast %35 : vector<4x8xf32> to vector<4x8x1xf32>
    %37 = arith.truncf %34 : vector<4x8x8xf32> to vector<4x8x8xbf16>
    "tpu.trace_start"() <{level = 10 : i32, message = "nqk,ndk->nqd"}> : () -> ()
    %cst_22 = arith.constant dense<0.000000e+00> : vector<4x8x8xf32>
    %38 = tpu.matmul %37, %28, %cst_22 {dimension_numbers = #tpu.dot_dimension_numbers<[2], [2], [1], [1], [0, 0, 0, 1, 1, 1], [0], [0]>} : vector<4x8x8xbf16>, vector<4x8x8xbf16>, vector<4x8x8xf32> -> vector<4x8x8xf32>
    "tpu.trace_stop"() : () -> ()
    %39 = tpu.reciprocal %36 {approx = true} : vector<4x8x1xf32> -> vector<4x8x1xf32>
    %40 = vector.broadcast %39 : vector<4x8x1xf32> to vector<4x8x8xf32>
    %41 = arith.mulf %38, %40 : vector<4x8x8xf32>
    %42 = arith.index_cast %22 : i32 to index
    %c0_23 = arith.constant 0 : index
    %c0_24 = arith.constant 0 : index
    %43 = vector.load %arg22[%42, %c0_23, %c0_24] : memref<4x8x8xf32, #tpu.memory_space<vmem>>, vector<4x8x8xf32>
    tpu.vector_store %arg22[%42, %c0_23, %c0_24], %41 {strides = array<i32>} : memref<4x8x8xf32, #tpu.memory_space<vmem>>, vector<4x8x8xf32>,
    %c1_i32_25 = arith.constant 1 : i32
    %c0_26 = arith.constant 0 : index
    %c0_27 = arith.constant 0 : index
    %c0_28 = arith.constant 0 : index
    %44 = vector.load %arg22[%c0_26, %c0_27, %c0_28] : memref<4x8x8xf32, #tpu.memory_space<vmem>>, vector<4x8x8xf32>
    %45 = tpu.transpose %44, [1, 0, 2] : vector<4x8x8xf32> -> vector<8x4x8xf32>
    %46 = vector.shape_cast %45 : vector<8x4x8xf32> to vector<8x32xf32>
    %47 = arith.truncf %46 : vector<8x32xf32> to vector<8x32xbf16>
    %c0_29 = arith.constant 0 : index
    %c0_30 = arith.constant 0 : index
    %48 = vector.load %arg8[%c0_29, %c0_30] : memref<32x32xbf16, #tpu.memory_space<vmem>>, vector<32x32xbf16>
    %cst_31 = arith.constant dense<0.000000e+00> : vector<8x32xf32>
    %49 = tpu.matmul %47, %48, %cst_31 {dimension_numbers = #tpu.dot_dimension_numbers<[1], [0], [0], [1], [0, 0, 1, 1], [], []>} : vector<8x32xbf16>, vector<32x32xbf16>, vector<8x32xf32> -> vector<8x32xf32>
    %c0_32 = arith.constant 0 : index
    %c0_33 = arith.constant 0 : index
    %50 = vector.load %arg9[%c0_32, %c0_33] : memref<1x32xf32, #tpu.memory_space<vmem>>, vector<1x32xf32>
    %51 = vector.shape_cast %50 : vector<1x32xf32> to vector<32xf32>
    %52 = vector.shape_cast %51 : vector<32xf32> to vector<1x32xf32>
    %53 = vector.broadcast %52 : vector<1x32xf32> to vector<8x32xf32>
    %54 = arith.addf %49, %53 : vector<8x32xf32>
    %55 = arith.addf %4, %54 : vector<8x32xf32>
    %c0_34 = arith.constant 0 : index
    %c0_35 = arith.constant 0 : index
    %56 = vector.load %arg14[%c0_34, %c0_35] : memref<1x32xf32, #tpu.memory_space<vmem>>, vector<1x32xf32>
    %57 = vector.shape_cast %56 : vector<1x32xf32> to vector<32xf32>
    %c0_36 = arith.constant 0 : index
    %c0_37 = arith.constant 0 : index
    %58 = vector.load %arg15[%c0_36, %c0_37] : memref<1x32xf32, #tpu.memory_space<vmem>>, vector<1x32xf32>
    %59 = vector.shape_cast %58 : vector<1x32xf32> to vector<32xf32>
    %cst_38 = arith.constant dense<0.000000e+00> : vector<8xf32>
    %60 = vector.multi_reduction <add>, %55, %cst_38 [1] : vector<8x32xf32> to vector<8xf32>
    %61 = vector.shape_cast %60 : vector<8xf32> to vector<8x1xf32>
    %cst_39 = arith.constant 3.200000e+01 : f32
    %62 = vector.broadcast %cst_39 : f32 to vector<8x1xf32>
    %63 = arith.divf %61, %62 : vector<8x1xf32>
    %64 = vector.broadcast %63 : vector<8x1xf32> to vector<8x32xf32>
    %65 = arith.subf %55, %64 : vector<8x32xf32>
    %66 = arith.mulf %65, %65 : vector<8x32xf32>
    %cst_40 = arith.constant dense<0.000000e+00> : vector<8xf32>
    %67 = vector.multi_reduction <add>, %66, %cst_40 [1] : vector<8x32xf32> to vector<8xf32>
    %68 = vector.shape_cast %67 : vector<8xf32> to vector<8x1xf32>
    %cst_41 = arith.constant 3.200000e+01 : f32
    %69 = vector.broadcast %cst_41 : f32 to vector<8x1xf32>
    %70 = arith.divf %68, %69 : vector<8x1xf32>
    %cst_42 = arith.constant 9.99999974E-6 : f32
    %71 = vector.broadcast %cst_42 : f32 to vector<8x1xf32>
    %72 = arith.addf %70, %71 : vector<8x1xf32>
    %73 = math.rsqrt %72 : vector<8x1xf32>
    %74 = vector.broadcast %73 : vector<8x1xf32> to vector<8x32xf32>
    %75 = arith.mulf %65, %74 : vector<8x32xf32>
    %76 = vector.shape_cast %57 : vector<32xf32> to vector<1x32xf32>
    %77 = vector.broadcast %76 : vector<1x32xf32> to vector<8x32xf32>
    %78 = arith.mulf %75, %77 : vector<8x32xf32>
    %79 = vector.shape_cast %59 : vector<32xf32> to vector<1x32xf32>
    %80 = vector.broadcast %79 : vector<1x32xf32> to vector<8x32xf32>
    %81 = arith.addf %78, %80 : vector<8x32xf32>
    %82 = arith.truncf %81 : vector<8x32xf32> to vector<8x32xbf16>
    %c0_43 = arith.constant 0 : index
    %c0_44 = arith.constant 0 : index
    %83 = vector.load %arg10[%c0_43, %c0_44] : memref<32x64xbf16, #tpu.memory_space<vmem>>, vector<32x64xbf16>
    %cst_45 = arith.constant dense<0.000000e+00> : vector<8x64xf32>
    %84 = tpu.matmul %82, %83, %cst_45 {dimension_numbers = #tpu.dot_dimension_numbers<[1], [0], [0], [1], [0, 0, 1, 1], [], []>} : vector<8x32xbf16>, vector<32x64xbf16>, vector<8x64xf32> -> vector<8x64xf32>
    %c0_46 = arith.constant 0 : index
    %c0_47 = arith.constant 0 : index
    %85 = vector.load %arg11[%c0_46, %c0_47] : memref<1x64xf32, #tpu.memory_space<vmem>>, vector<1x64xf32>
    %86 = vector.shape_cast %85 : vector<1x64xf32> to vector<64xf32>
    %87 = vector.shape_cast %86 : vector<64xf32> to vector<1x64xf32>
    %88 = vector.broadcast %87 : vector<1x64xf32> to vector<8x64xf32>
    %89 = arith.addf %84, %88 : vector<8x64xf32>
    %cst_48 = arith.constant 0.000000e+00 : f32
    %90 = vector.broadcast %cst_48 : f32 to vector<8x64xf32>
    %91 = arith.maximumf %89, %90 : vector<8x64xf32>
    %92 = arith.truncf %91 : vector<8x64xf32> to vector<8x64xbf16>
    %c0_49 = arith.constant 0 : index
    %c0_50 = arith.constant 0 : index
    %93 = vector.load %arg12[%c0_49, %c0_50] : memref<64x32xbf16, #tpu.memory_space<vmem>>, vector<64x32xbf16>
    %cst_51 = arith.constant dense<0.000000e+00> : vector<8x32xf32>
    %94 = tpu.matmul %92, %93, %cst_51 {dimension_numbers = #tpu.dot_dimension_numbers<[1], [0], [0], [1], [0, 0, 1, 1], [], []>} : vector<8x64xbf16>, vector<64x32xbf16>, vector<8x32xf32> -> vector<8x32xf32>
    %c0_52 = arith.constant 0 : index
    %c0_53 = arith.constant 0 : index
    %95 = vector.load %arg13[%c0_52, %c0_53] : memref<1x32xf32, #tpu.memory_space<vmem>>, vector<1x32xf32>
    %96 = vector.shape_cast %95 : vector<1x32xf32> to vector<32xf32>
    %97 = vector.shape_cast %96 : vector<32xf32> to vector<1x32xf32>
    %98 = vector.broadcast %97 : vector<1x32xf32> to vector<8x32xf32>
    %99 = arith.addf %94, %98 : vector<8x32xf32>
    %100 = arith.addf %81, %99 : vector<8x32xf32>
    %c0_54 = arith.constant 0 : index
    %c0_55 = arith.constant 0 : index
    %101 = vector.load %arg16[%c0_54, %c0_55] : memref<1x32xf32, #tpu.memory_space<vmem>>, vector<1x32xf32>
    %102 = vector.shape_cast %101 : vector<1x32xf32> to vector<32xf32>
    %c0_56 = arith.constant 0 : index
    %c0_57 = arith.constant 0 : index
    %103 = vector.load %arg17[%c0_56, %c0_57] : memref<1x32xf32, #tpu.memory_space<vmem>>, vector<1x32xf32>
    %104 = vector.shape_cast %103 : vector<1x32xf32> to vector<32xf32>
    %cst_58 = arith.constant dense<0.000000e+00> : vector<8xf32>
    %105 = vector.multi_reduction <add>, %100, %cst_58 [1] : vector<8x32xf32> to vector<8xf32>
    %106 = vector.shape_cast %105 : vector<8xf32> to vector<8x1xf32>
    %cst_59 = arith.constant 3.200000e+01 : f32
    %107 = vector.broadcast %cst_59 : f32 to vector<8x1xf32>
    %108 = arith.divf %106, %107 : vector<8x1xf32>
    %109 = vector.broadcast %108 : vector<8x1xf32> to vector<8x32xf32>
    %110 = arith.subf %100, %109 : vector<8x32xf32>
    %111 = arith.mulf %110, %110 : vector<8x32xf32>
    %cst_60 = arith.constant dense<0.000000e+00> : vector<8xf32>
    %112 = vector.multi_reduction <add>, %111, %cst_60 [1] : vector<8x32xf32> to vector<8xf32>
    %113 = vector.shape_cast %112 : vector<8xf32> to vector<8x1xf32>
    %cst_61 = arith.constant 3.200000e+01 : f32
    %114 = vector.broadcast %cst_61 : f32 to vector<8x1xf32>
    %115 = arith.divf %113, %114 : vector<8x1xf32>
    %cst_62 = arith.constant 9.99999974E-6 : f32
    %116 = vector.broadcast %cst_62 : f32 to vector<8x1xf32>
    %117 = arith.addf %115, %116 : vector<8x1xf32>
    %118 = math.rsqrt %117 : vector<8x1xf32>
    %119 = vector.broadcast %118 : vector<8x1xf32> to vector<8x32xf32>
    %120 = arith.mulf %110, %119 : vector<8x32xf32>
    %121 = vector.shape_cast %102 : vector<32xf32> to vector<1x32xf32>
    %122 = vector.broadcast %121 : vector<1x32xf32> to vector<8x32xf32>
    %123 = arith.mulf %120, %122 : vector<8x32xf32>
    %124 = vector.shape_cast %104 : vector<32xf32> to vector<1x32xf32>
    %125 = vector.broadcast %124 : vector<1x32xf32> to vector<8x32xf32>
    %126 = arith.addf %123, %125 : vector<8x32xf32>
    %c0_63 = arith.constant 0 : index
    %c0_64 = arith.constant 0 : index
    %c0_65 = arith.constant 0 : index
    %127 = vector.load %arg18[%c0_63, %c0_64, %c0_65] : memref<1x8x32xf32, #tpu.memory_space<vmem>>, vector<1x8x32xf32>
    %128 = vector.shape_cast %127 : vector<1x8x32xf32> to vector<8x32xf32>
    %129 = vector.shape_cast %126 : vector<8x32xf32> to vector<1x8x32xf32>
    tpu.vector_store %arg18[%c0_63, %c0_64, %c0_65], %129 {strides = array<i32>} : memref<1x8x32xf32, #tpu.memory_space<vmem>>, vector<1x8x32xf32>,
    return
  }
  func.func @transform_0(%arg0: i32, %arg1: i32) -> (i32, i32, i32) {
    %c0_i32 = arith.constant 0 : i32
    %c0_i32_0 = arith.constant 0 : i32
    %c0_i32_1 = arith.constant 0 : i32
    return %arg0, %c0_i32, %c0_i32_0 : i32, i32, i32
  }
  func.func @transform_1(%arg0: i32, %arg1: i32) -> (i32, i32, i32) {
    %c0_i32 = arith.constant 0 : i32
    %c0_i32_0 = arith.constant 0 : i32
    return %arg0, %arg1, %c0_i32 : i32, i32, i32
  }
  func.func @transform_2(%arg0: i32, %arg1: i32) -> (i32, i32) {
    %c0_i32 = arith.constant 0 : i32
    %c0_i32_0 = arith.constant 0 : i32
    %c0_i32_1 = arith.constant 0 : i32
    return %c0_i32, %c0_i32_0 : i32, i32
  }
  func.func @transform_3(%arg0: i32, %arg1: i32) -> (i32, i32) {
    %c0_i32 = arith.constant 0 : i32
    %c0_i32_0 = arith.constant 0 : i32
    %c0_i32_1 = arith.constant 0 : i32
    return %c0_i32, %c0_i32_0 : i32, i32
  }
  func.func @transform_4(%arg0: i32, %arg1: i32) -> (i32, i32) {
    %c0_i32 = arith.constant 0 : i32
    %c0_i32_0 = arith.constant 0 : i32
    %c0_i32_1 = arith.constant 0 : i32
    return %c0_i32, %c0_i32_0 : i32, i32
  }
  func.func @transform_5(%arg0: i32, %arg1: i32) -> (i32, i32) {
    %c0_i32 = arith.constant 0 : i32
    %c0_i32_0 = arith.constant 0 : i32
    %c0_i32_1 = arith.constant 0 : i32
    return %c0_i32, %c0_i32_0 : i32, i32
  }
  func.func @transform_6(%arg0: i32, %arg1: i32) -> (i32, i32) {
    %c0_i32 = arith.constant 0 : i32
    %c0_i32_0 = arith.constant 0 : i32
    %c0_i32_1 = arith.constant 0 : i32
    return %c0_i32, %c0_i32_0 : i32, i32
  }
  func.func @transform_7(%arg0: i32, %arg1: i32) -> (i32, i32) {
    %c0_i32 = arith.constant 0 : i32
    %c0_i32_0 = arith.constant 0 : i32
    %c0_i32_1 = arith.constant 0 : i32
    return %c0_i32, %c0_i32_0 : i32, i32
  }
  func.func @transform_8(%arg0: i32, %arg1: i32) -> (i32, i32) {
    %c0_i32 = arith.constant 0 : i32
    %c0_i32_0 = arith.constant 0 : i32
    %c0_i32_1 = arith.constant 0 : i32
    return %c0_i32, %c0_i32_0 : i32, i32
  }
  func.func @transform_9(%arg0: i32, %arg1: i32) -> (i32, i32) {
    %c0_i32 = arith.constant 0 : i32
    %c0_i32_0 = arith.constant 0 : i32
    %c0_i32_1 = arith.constant 0 : i32
    return %c0_i32, %c0_i32_0 : i32, i32
  }
  func.func @transform_10(%arg0: i32, %arg1: i32) -> (i32, i32) {
    %c0_i32 = arith.constant 0 : i32
    %c0_i32_0 = arith.constant 0 : i32
    %c0_i32_1 = arith.constant 0 : i32
    return %c0_i32, %c0_i32_0 : i32, i32
  }
  func.func @transform_11(%arg0: i32, %arg1: i32) -> (i32, i32) {
    %c0_i32 = arith.constant 0 : i32
    %c0_i32_0 = arith.constant 0 : i32
    %c0_i32_1 = arith.constant 0 : i32
    return %c0_i32, %c0_i32_0 : i32, i32
  }
  func.func @transform_12(%arg0: i32, %arg1: i32) -> (i32, i32) {
    %c0_i32 = arith.constant 0 : i32
    %c0_i32_0 = arith.constant 0 : i32
    %c0_i32_1 = arith.constant 0 : i32
    return %c0_i32, %c0_i32_0 : i32, i32
  }
  func.func @transform_13(%arg0: i32, %arg1: i32) -> (i32, i32) {
    %c0_i32 = arith.constant 0 : i32
    %c0_i32_0 = arith.constant 0 : i32
    %c0_i32_1 = arith.constant 0 : i32
    return %c0_i32, %c0_i32_0 : i32, i32
  }
  func.func @transform_14(%arg0: i32, %arg1: i32) -> (i32, i32) {
    %c0_i32 = arith.constant 0 : i32
    %c0_i32_0 = arith.constant 0 : i32
    %c0_i32_1 = arith.constant 0 : i32
    return %c0_i32, %c0_i32_0 : i32, i32
  }
  func.func @transform_15(%arg0: i32, %arg1: i32) -> (i32, i32) {
    %c0_i32 = arith.constant 0 : i32
    %c0_i32_0 = arith.constant 0 : i32
    %c0_i32_1 = arith.constant 0 : i32
    return %c0_i32, %c0_i32_0 : i32, i32
  }
  func.func @transform_16(%arg0: i32, %arg1: i32) -> (i32, i32, i32) {
    %c0_i32 = arith.constant 0 : i32
    %c0_i32_0 = arith.constant 0 : i32
    return %arg0, %arg1, %c0_i32 : i32, i32, i32
  }
}

module attributes {stable_mosaic.version = 11 : i64} {
  func.func @encoder_layer_kernel(%arg0: i32, %arg1: i32, %arg2: memref<1x8x32xf32, #tpu.memory_space<vmem>>, %arg3: memref<1x8x32xf32, #tpu.memory_space<vmem>>, %arg4: memref<32x32xbf16, #tpu.memory_space<vmem>>, %arg5: memref<1x32xf32, #tpu.memory_space<vmem>>, %arg6: memref<64x32xbf16, #tpu.memory_space<vmem>>, %arg7: memref<64x1xf32, #tpu.memory_space<vmem>>, %arg8: memref<32x32xbf16, #tpu.memory_space<vmem>>, %arg9: memref<1x32xf32, #tpu.memory_space<vmem>>, %arg10: memref<32x64xbf16, #tpu.memory_space<vmem>>, %arg11: memref<1x64xf32, #tpu.memory_space<vmem>>, %arg12: memref<64x32xbf16, #tpu.memory_space<vmem>>, %arg13: memref<1x32xf32, #tpu.memory_space<vmem>>, %arg14: memref<1x32xf32, #tpu.memory_space<vmem>>, %arg15: memref<1x32xf32, #tpu.memory_space<vmem>>, %arg16: memref<1x32xf32, #tpu.memory_space<vmem>>, %arg17: memref<1x32xf32, #tpu.memory_space<vmem>>, %arg18: memref<1x8x32xf32, #tpu.memory_space<vmem>>, %arg19: memref<4x8x8xbf16, #tpu.memory_space<vmem>>, %arg20: memref<4x8x8xbf16, #tpu.memory_space<vmem>>, %arg21: memref<4x8x8xbf16, #tpu.memory_space<vmem>>, %arg22: memref<4x8x8xf32, #tpu.memory_space<vmem>>) attributes {dimension_semantics = [#tpu.dimension_semantics<parallel>, #tpu.dimension_semantics<arbitrary>], iteration_bounds = array<i64: 2, 1>, scalar_prefetch = 0 : i64, scratch_operands = 4 : i64, tpu.core_type = #tpu.core_type<tc>, window_params = [{transform_indices = @transform_0, window_bounds = array<i64: 1, 8, 32>}, {transform_indices = @transform_1, window_bounds = array<i64: 1, 8, 32>}, {pipeline_mode = #tpu.pipeline_mode<synchronous>, transform_indices = @transform_2, window_bounds = array<i64: 32, 32>}, {pipeline_mode = #tpu.pipeline_mode<synchronous>, transform_indices = @transform_3, window_bounds = array<i64: 1, 32>}, {pipeline_mode = #tpu.pipeline_mode<synchronous>, transform_indices = @transform_4, window_bounds = array<i64: 64, 32>}, {pipeline_mode = #tpu.pipeline_mode<synchronous>, transform_indices = @transform_5, window_bounds = array<i64: 64, 1>}, {pipeline_mode = #tpu.pipeline_mode<synchronous>, transform_indices = @transform_6, window_bounds = array<i64: 32, 32>}, {pipeline_mode = #tpu.pipeline_mode<synchronous>, transform_indices = @transform_7, window_bounds = array<i64: 1, 32>}, {pipeline_mode = #tpu.pipeline_mode<synchronous>, transform_indices = @transform_8, window_bounds = array<i64: 32, 64>}, {pipeline_mode = #tpu.pipeline_mode<synchronous>, transform_indices = @transform_9, window_bounds = array<i64: 1, 64>}, {pipeline_mode = #tpu.pipeline_mode<synchronous>, transform_indices = @transform_10, window_bounds = array<i64: 64, 32>}, {pipeline_mode = #tpu.pipeline_mode<synchronous>, transform_indices = @transform_11, window_bounds = array<i64: 1, 32>}, {pipeline_mode = #tpu.pipeline_mode<synchronous>, transform_indices = @transform_12, window_bounds = array<i64: 1, 32>}, {pipeline_mode = #tpu.pipeline_mode<synchronous>, transform_indices = @transform_13, window_bounds = array<i64: 1, 32>}, {pipeline_mode = #tpu.pipeline_mode<synchronous>, transform_indices = @transform_14, window_bounds = array<i64: 1, 32>}, {pipeline_mode = #tpu.pipeline_mode<synchronous>, transform_indices = @transform_15, window_bounds = array<i64: 1, 32>}, {transform_indices = @transform_16, window_bounds = array<i64: 1, 8, 32>}]} {
    %c0_i32 = arith.constant 0 : i32
    %0 = arith.cmpi eq, %arg1, %c0_i32 : i32
    %1 = arith.extui %0 : i1 to i32
    %c0_i32_0 = arith.constant 0 : i32
    %2 = arith.cmpi ne, %1, %c0_i32_0 : i32
    scf.if %2 {
      %c0_66 = arith.constant 0 : index
      %c0_67 = arith.constant 0 : index
      %c0_68 = arith.constant 0 : index
      %130 = vector.load %arg2[%c0_66, %c0_67, %c0_68] : memref<1x8x32xf32, #tpu.memory_space<vmem>>, vector<1x8x32xf32>
      %131 = vector.shape_cast %130 : vector<1x8x32xf32> to vector<8x32xf32>
      %132 = arith.truncf %131 : vector<8x32xf32> to vector<8x32xbf16>
      %c0_69 = arith.constant 0 : index
      %c0_70 = arith.constant 0 : index
      %133 = vector.load %arg6[%c0_69, %c0_70] : memref<64x32xbf16, #tpu.memory_space<vmem>>, vector<64x32xbf16>
      %cst_71 = arith.constant dense<0.000000e+00> : vector<64x8xf32>
      %134 = tpu.matmul %133, %132, %cst_71 {dimension_numbers = #tpu.dot_dimension_numbers<[1], [1], [0], [0], [0, 0, 1, 0], [], []>} : vector<64x32xbf16>, vector<8x32xbf16>, vector<64x8xf32> -> vector<64x8xf32>
      %c0_72 = arith.constant 0 : index
      %c0_73 = arith.constant 0 : index
      %135 = vector.load %arg7[%c0_72, %c0_73] : memref<64x1xf32, #tpu.memory_space<vmem>>, vector<64x1xf32>
      %136 = vector.broadcast %135 : vector<64x1xf32> to vector<64x8xf32>
      %137 = arith.addf %134, %136 : vector<64x8xf32>
      %138 = arith.truncf %137 : vector<64x8xf32> to vector<64x8xbf16>
      %139 = vector.shape_cast %138 : vector<64x8xbf16> to vector<2x4x8x8xbf16>
      %140 = vector.extract_strided_slice %139 {offsets = [0, 0, 0, 0], sizes = [1, 4, 8, 8], strides = [1, 1, 1, 1]} : vector<2x4x8x8xbf16> to vector<1x4x8x8xbf16>
      %141 = vector.shape_cast %140 : vector<1x4x8x8xbf16> to vector<4x8x8xbf16>
      %c0_74 = arith.constant 0 : index
      %c0_75 = arith.constant 0 : index
      %c0_76 = arith.constant 0 : index
      %142 = vector.load %arg19[%c0_74, %c0_75, %c0_76] : memref<4x8x8xbf16, #tpu.memory_space<vmem>>, vector<4x8x8xbf16>
      tpu.vector_store %arg19[%c0_74, %c0_75, %c0_76], %141 {strides = array<i32>} : memref<4x8x8xbf16, #tpu.memory_space<vmem>>, vector<4x8x8xbf16>,
      %143 = vector.extract_strided_slice %139 {offsets = [1, 0, 0, 0], sizes = [1, 4, 8, 8], strides = [1, 1, 1, 1]} : vector<2x4x8x8xbf16> to vector<1x4x8x8xbf16>
      %144 = vector.shape_cast %143 : vector<1x4x8x8xbf16> to vector<4x8x8xbf16>
      %c0_77 = arith.constant 0 : index
      %c0_78 = arith.constant 0 : index
      %c0_79 = arith.constant 0 : index
      %145 = vector.load %arg20[%c0_77, %c0_78, %c0_79] : memref<4x8x8xbf16, #tpu.memory_space<vmem>>, vector<4x8x8xbf16>
      tpu.vector_store %arg20[%c0_77, %c0_78, %c0_79], %144 {strides = array<i32>} : memref<4x8x8xbf16, #tpu.memory_space<vmem>>, vector<4x8x8xbf16>,
    } else {
    }
    %c0 = arith.constant 0 : index
    %c0_1 = arith.constant 0 : index
    %c0_2 = arith.constant 0 : index
    %3 = vector.load %arg3[%c0, %c0_1, %c0_2] : memref<1x8x32xf32, #tpu.memory_space<vmem>>, vector<1x8x32xf32>
    %4 = vector.shape_cast %3 : vector<1x8x32xf32> to vector<8x32xf32>
    %5 = arith.truncf %4 : vector<8x32xf32> to vector<8x32xbf16>
    %c0_3 = arith.constant 0 : index
    %c0_4 = arith.constant 0 : index
    %6 = vector.load %arg4[%c0_3, %c0_4] : memref<32x32xbf16, #tpu.memory_space<vmem>>, vector<32x32xbf16>
    %cst = arith.constant dense<0.000000e+00> : vector<8x32xf32>
    %7 = tpu.matmul %5, %6, %cst {dimension_numbers = #tpu.dot_dimension_numbers<[1], [0], [0], [1], [0, 0, 1, 1], [], []>} : vector<8x32xbf16>, vector<32x32xbf16>, vector<8x32xf32> -> vector<8x32xf32>
    %c0_5 = arith.constant 0 : index
    %c0_6 = arith.constant 0 : index
    %8 = vector.load %arg5[%c0_5, %c0_6] : memref<1x32xf32, #tpu.memory_space<vmem>>, vector<1x32xf32>
    %9 = vector.shape_cast %8 : vector<1x32xf32> to vector<32xf32>
    %10 = vector.shape_cast %9 : vector<32xf32> to vector<1x32xf32>
    %11 = vector.broadcast %10 : vector<1x32xf32> to vector<8x32xf32>
    %12 = arith.addf %7, %11 : vector<8x32xf32>
    %cst_7 = arith.constant 0.353553385 : f32
    %13 = vector.broadcast %cst_7 : f32 to vector<8x32xf32>
    %14 = arith.mulf %12, %13 : vector<8x32xf32>
    %15 = vector.shape_cast %14 : vector<8x32xf32> to vector<8x4x8xf32>
    %16 = tpu.transpose %15, [1, 0, 2] : vector<8x4x8xf32> -> vector<4x8x8xf32>
    %17 = arith.truncf %16 : vector<4x8x8xf32> to vector<4x8x8xbf16>
    %c0_8 = arith.constant 0 : index
    %c0_9 = arith.constant 0 : index
    %c0_10 = arith.constant 0 : index
    %18 = vector.load %arg21[%c0_8, %c0_9, %c0_10] : memref<4x8x8xbf16, #tpu.memory_space<vmem>>, vector<4x8x8xbf16>
    tpu.vector_store %arg21[%c0_8, %c0_9, %c0_10], %17 {strides = array<i32>} : memref<4x8x8xbf16, #tpu.memory_space<vmem>>, vector<4x8x8xbf16>,
    %c0_i32_11 = arith.constant 0 : i32
    %c1_i32 = arith.constant 1 : i32
    %19 = arith.muli %c0_i32_11, %c1_i32 : i32
    %c0_i32_12 = arith.constant 0 : i32
    %20 = arith.addi %c0_i32_12, %19 : i32
    %c4_i32 = arith.constant 4 : i32
    %21 = arith.muli %20, %c4_i32 : i32
    %22 = tpu.assume_multiple %21, 4 : i32
    %23 = arith.index_cast %22 : i32 to index
    %c0_13 = arith.constant 0 : index
    %c0_14 = arith.constant 0 : index
    %24 = vector.load %arg21[%23, %c0_13, %c0_14] : memref<4x8x8xbf16, #tpu.memory_space<vmem>>, vector<4x8x8xbf16>
    %25 = arith.index_cast %22 : i32 to index
    %c0_15 = arith.constant 0 : index
    %c0_16 = arith.constant 0 : index
    %26 = vector.load %arg19[%25, %c0_15, %c0_16] : memref<4x8x8xbf16, #tpu.memory_space<vmem>>, vector<4x8x8xbf16>
    %27 = arith.index_cast %22 : i32 to index
    %c0_17 = arith.constant 0 : index
    %c0_18 = arith.constant 0 : index
    %28 = vector.load %arg20[%27, %c0_17, %c0_18] : memref<4x8x8xbf16, #tpu.memory_space<vmem>>, vector<4x8x8xbf16>
    "tpu.trace_start"() <{level = 10 : i32, message = "nqd,ndk->nqk"}> : () -> ()
    %cst_19 = arith.constant dense<0.000000e+00> : vector<4x8x8xf32>
    %29 = tpu.matmul %24, %26, %cst_19 {dimension_numbers = #tpu.dot_dimension_numbers<[2], [1], [1], [2], [0, 0, 0, 1, 1, 2], [0], [0]>} : vector<4x8x8xbf16>, vector<4x8x8xbf16>, vector<4x8x8xf32> -> vector<4x8x8xf32>
    "tpu.trace_stop"() : () -> ()
    %cst_20 = arith.constant dense<0xFF800000> : vector<4x8xf32>
    %30 = vector.multi_reduction <maximumf>, %29, %cst_20 [2] : vector<4x8x8xf32> to vector<4x8xf32>
    %31 = vector.shape_cast %30 : vector<4x8xf32> to vector<4x8x1xf32>
    %32 = vector.broadcast %31 : vector<4x8x1xf32> to vector<4x8x8xf32>
    %33 = arith.subf %29, %32 : vector<4x8x8xf32>
    %34 = math.exp %33 : vector<4x8x8xf32>
    %cst_21 = arith.constant dense<0.000000e+00> : vector<4x8xf32>
    %35 = vector.multi_reduction <add>, %34, %cst_21 [2] : vector<4x8x8xf32> to vector<4x8xf32>
    %36 = vector.shape_cast %35 : vector<4x8xf32> to vector<4x8x1xf32>
    %37 = arith.truncf %34 : vector<4x8x8xf32> to vector<4x8x8xbf16>
    "tpu.trace_start"() <{level = 10 : i32, message = "nqk,ndk->nqd"}> : () -> ()
    %cst_22 = arith.constant dense<0.000000e+00> : vector<4x8x8xf32>
    %38 = tpu.matmul %37, %28, %cst_22 {dimension_numbers = #tpu.dot_dimension_numbers<[2], [2], [1], [1], [0, 0, 0, 1, 1, 1], [0], [0]>} : vector<4x8x8xbf16>, vector<4x8x8xbf16>, vector<4x8x8xf32> -> vector<4x8x8xf32>
    "tpu.trace_stop"() : () -> ()
    %39 = tpu.reciprocal %36 {approx = true} : vector<4x8x1xf32> -> vector<4x8x1xf32>
    %40 = vector.broadcast %39 : vector<4x8x1xf32> to vector<4x8x8xf32>
    %41 = arith.mulf %38, %40 : vector<4x8x8xf32>
    %42 = arith.index_cast %22 : i32 to index
    %c0_23 = arith.constant 0 : index
    %c0_24 = arith.constant 0 : index
    %43 = vector.load %arg22[%42, %c0_23, %c0_24] : memref<4x8x8xf32, #tpu.memory_space<vmem>>, vector<4x8x8xf32>
    tpu.vector_store %arg22[%42, %c0_23, %c0_24], %41 {strides = array<i32>} : memref<4x8x8xf32, #tpu.memory_space<vmem>>, vector<4x8x8xf32>,
    %c1_i32_25 = arith.constant 1 : i32
    %c0_26 = arith.constant 0 : index
    %c0_27 = arith.constant 0 : index
    %c0_28 = arith.constant 0 : index
    %44 = vector.load %arg22[%c0_26, %c0_27, %c0_28] : memref<4x8x8xf32, #tpu.memory_space<vmem>>, vector<4x8x8xf32>
    %45 = tpu.transpose %44, [1, 0, 2] : vector<4x8x8xf32> -> vector<8x4x8xf32>
    %46 = vector.shape_cast %45 : vector<8x4x8xf32> to vector<8x32xf32>
    %47 = arith.truncf %46 : vector<8x32xf32> to vector<8x32xbf16>
    %c0_29 = arith.constant 0 : index
    %c0_30 = arith.constant 0 : index
    %48 = vector.load %arg8[%c0_29, %c0_30] : memref<32x32xbf16, #tpu.memory_space<vmem>>, vector<32x32xbf16>
    %cst_31 = arith.constant dense<0.000000e+00> : vector<8x32xf32>
    %49 = tpu.matmul %47, %48, %cst_31 {dimension_numbers = #tpu.dot_dimension_numbers<[1], [0], [0], [1], [0, 0, 1, 1], [], []>} : vector<8x32xbf16>, vector<32x32xbf16>, vector<8x32xf32> -> vector<8x32xf32>
    %c0_32 = arith.constant 0 : index
    %c0_33 = arith.constant 0 : index
    %50 = vector.load %arg9[%c0_32, %c0_33] : memref<1x32xf32, #tpu.memory_space<vmem>>, vector<1x32xf32>
    %51 = vector.shape_cast %50 : vector<1x32xf32> to vector<32xf32>
    %52 = vector.shape_cast %51 : vector<32xf32> to vector<1x32xf32>
    %53 = vector.broadcast %52 : vector<1x32xf32> to vector<8x32xf32>
    %54 = arith.addf %49, %53 : vector<8x32xf32>
    %55 = arith.addf %4, %54 : vector<8x32xf32>
    %c0_34 = arith.constant 0 : index
    %c0_35 = arith.constant 0 : index
    %56 = vector.load %arg14[%c0_34, %c0_35] : memref<1x32xf32, #tpu.memory_space<vmem>>, vector<1x32xf32>
    %57 = vector.shape_cast %56 : vector<1x32xf32> to vector<32xf32>
    %c0_36 = arith.constant 0 : index
    %c0_37 = arith.constant 0 : index
    %58 = vector.load %arg15[%c0_36, %c0_37] : memref<1x32xf32, #tpu.memory_space<vmem>>, vector<1x32xf32>
    %59 = vector.shape_cast %58 : vector<1x32xf32> to vector<32xf32>
    %cst_38 = arith.constant dense<0.000000e+00> : vector<8xf32>
    %60 = vector.multi_reduction <add>, %55, %cst_38 [1] : vector<8x32xf32> to vector<8xf32>
    %61 = vector.shape_cast %60 : vector<8xf32> to vector<8x1xf32>
    %cst_39 = arith.constant 3.200000e+01 : f32
    %62 = vector.broadcast %cst_39 : f32 to vector<8x1xf32>
    %63 = arith.divf %61, %62 : vector<8x1xf32>
    %64 = vector.broadcast %63 : vector<8x1xf32> to vector<8x32xf32>
    %65 = arith.subf %55, %64 : vector<8x32xf32>
    %66 = arith.mulf %65, %65 : vector<8x32xf32>
    %cst_40 = arith.constant dense<0.000000e+00> : vector<8xf32>
    %67 = vector.multi_reduction <add>, %66, %cst_40 [1] : vector<8x32xf32> to vector<8xf32>
    %68 = vector.shape_cast %67 : vector<8xf32> to vector<8x1xf32>
    %cst_41 = arith.constant 3.200000e+01 : f32
    %69 = vector.broadcast %cst_41 : f32 to vector<8x1xf32>
    %70 = arith.divf %68, %69 : vector<8x1xf32>
    %cst_42 = arith.constant 9.99999974E-6 : f32
    %71 = vector.broadcast %cst_42 : f32 to vector<8x1xf32>
    %72 = arith.addf %70, %71 : vector<8x1xf32>
    %73 = math.rsqrt %72 : vector<8x1xf32>
    %74 = vector.broadcast %73 : vector<8x1xf32> to vector<8x32xf32>
    %75 = arith.mulf %65, %74 : vector<8x32xf32>
    %76 = vector.shape_cast %57 : vector<32xf32> to vector<1x32xf32>
    %77 = vector.broadcast %76 : vector<1x32xf32> to vector<8x32xf32>
    %78 = arith.mulf %75, %77 : vector<8x32xf32>
    %79 = vector.shape_cast %59 : vector<32xf32> to vector<1x32xf32>
    %80 = vector.broadcast %79 : vector<1x32xf32> to vector<8x32xf32>
    %81 = arith.addf %78, %80 : vector<8x32xf32>
    %82 = arith.truncf %81 : vector<8x32xf32> to vector<8x32xbf16>
    %c0_43 = arith.constant 0 : index
    %c0_44 = arith.constant 0 : index
    %83 = vector.load %arg10[%c0_43, %c0_44] : memref<32x64xbf16, #tpu.memory_space<vmem>>, vector<32x64xbf16>
    %cst_45 = arith.constant dense<0.000000e+00> : vector<8x64xf32>
    %84 = tpu.matmul %82, %83, %cst_45 {dimension_numbers = #tpu.dot_dimension_numbers<[1], [0], [0], [1], [0, 0, 1, 1], [], []>} : vector<8x32xbf16>, vector<32x64xbf16>, vector<8x64xf32> -> vector<8x64xf32>
    %c0_46 = arith.constant 0 : index
    %c0_47 = arith.constant 0 : index
    %85 = vector.load %arg11[%c0_46, %c0_47] : memref<1x64xf32, #tpu.memory_space<vmem>>, vector<1x64xf32>
    %86 = vector.shape_cast %85 : vector<1x64xf32> to vector<64xf32>
    %87 = vector.shape_cast %86 : vector<64xf32> to vector<1x64xf32>
    %88 = vector.broadcast %87 : vector<1x64xf32> to vector<8x64xf32>
    %89 = arith.addf %84, %88 : vector<8x64xf32>
    %cst_48 = arith.constant 0.000000e+00 : f32
    %90 = vector.broadcast %cst_48 : f32 to vector<8x64xf32>
    %91 = arith.maximumf %89, %90 : vector<8x64xf32>
    %92 = arith.truncf %91 : vector<8x64xf32> to vector<8x64xbf16>
    %c0_49 = arith.constant 0 : index
    %c0_50 = arith.constant 0 : index
    %93 = vector.load %arg12[%c0_49, %c0_50] : memref<64x32xbf16, #tpu.memory_space<vmem>>, vector<64x32xbf16>
    %cst_51 = arith.constant dense<0.000000e+00> : vector<8x32xf32>
    %94 = tpu.matmul %92, %93, %cst_51 {dimension_numbers = #tpu.dot_dimension_numbers<[1], [0], [0], [1], [0, 0, 1, 1], [], []>} : vector<8x64xbf16>, vector<64x32xbf16>, vector<8x32xf32> -> vector<8x32xf32>
    %c0_52 = arith.constant 0 : index
    %c0_53 = arith.constant 0 : index
    %95 = vector.load %arg13[%c0_52, %c0_53] : memref<1x32xf32, #tpu.memory_space<vmem>>, vector<1x32xf32>
    %96 = vector.shape_cast %95 : vector<1x32xf32> to vector<32xf32>
    %97 = vector.shape_cast %96 : vector<32xf32> to vector<1x32xf32>
    %98 = vector.broadcast %97 : vector<1x32xf32> to vector<8x32xf32>
    %99 = arith.addf %94, %98 : vector<8x32xf32>
    %100 = arith.addf %81, %99 : vector<8x32xf32>
    %c0_54 = arith.constant 0 : index
    %c0_55 = arith.constant 0 : index
    %101 = vector.load %arg16[%c0_54, %c0_55] : memref<1x32xf32, #tpu.memory_space<vmem>>, vector<1x32xf32>
    %102 = vector.shape_cast %101 : vector<1x32xf32> to vector<32xf32>
    %c0_56 = arith.constant 0 : index
    %c0_57 = arith.constant 0 : index
    %103 = vector.load %arg17[%c0_56, %c0_57] : memref<1x32xf32, #tpu.memory_space<vmem>>, vector<1x32xf32>
    %104 = vector.shape_cast %103 : vector<1x32xf32> to vector<32xf32>
    %cst_58 = arith.constant dense<0.000000e+00> : vector<8xf32>
    %105 = vector.multi_reduction <add>, %100, %cst_58 [1] : vector<8x32xf32> to vector<8xf32>
    %106 = vector.shape_cast %105 : vector<8xf32> to vector<8x1xf32>
    %cst_59 = arith.constant 3.200000e+01 : f32
    %107 = vector.broadcast %cst_59 : f32 to vector<8x1xf32>
    %108 = arith.divf %106, %107 : vector<8x1xf32>
    %109 = vector.broadcast %108 : vector<8x1xf32> to vector<8x32xf32>
    %110 = arith.subf %100, %109 : vector<8x32xf32>
    %111 = arith.mulf %110, %110 : vector<8x32xf32>
    %cst_60 = arith.constant dense<0.000000e+00> : vector<8xf32>
    %112 = vector.multi_reduction <add>, %111, %cst_60 [1] : vector<8x32xf32> to vector<8xf32>
    %113 = vector.shape_cast %112 : vector<8xf32> to vector<8x1xf32>
    %cst_61 = arith.constant 3.200000e+01 : f32
    %114 = vector.broadcast %cst_61 : f32 to vector<8x1xf32>
    %115 = arith.divf %113, %114 : vector<8x1xf32>
    %cst_62 = arith.constant 9.99999974E-6 : f32
    %116 = vector.broadcast %cst_62 : f32 to vector<8x1xf32>
    %117 = arith.addf %115, %116 : vector<8x1xf32>
    %118 = math.rsqrt %117 : vector<8x1xf32>
    %119 = vector.broadcast %118 : vector<8x1xf32> to vector<8x32xf32>
    %120 = arith.mulf %110, %119 : vector<8x32xf32>
    %121 = vector.shape_cast %102 : vector<32xf32> to vector<1x32xf32>
    %122 = vector.broadcast %121 : vector<1x32xf32> to vector<8x32xf32>
    %123 = arith.mulf %120, %122 : vector<8x32xf32>
    %124 = vector.shape_cast %104 : vector<32xf32> to vector<1x32xf32>
    %125 = vector.broadcast %124 : vector<1x32xf32> to vector<8x32xf32>
    %126 = arith.addf %123, %125 : vector<8x32xf32>
    %c0_63 = arith.constant 0 : index
    %c0_64 = arith.constant 0 : index
    %c0_65 = arith.constant 0 : index
    %127 = vector.load %arg18[%c0_63, %c0_64, %c0_65] : memref<1x8x32xf32, #tpu.memory_space<vmem>>, vector<1x8x32xf32>
    %128 = vector.shape_cast %127 : vector<1x8x32xf32> to vector<8x32xf32>
    %129 = vector.shape_cast %126 : vector<8x32xf32> to vector<1x8x32xf32>
    tpu.vector_store %arg18[%c0_63, %c0_64, %c0_65], %129 {strides = array<i32>} : memref<1x8x32xf32, #tpu.memory_space<vmem>>, vector<1x8x32xf32>,
    return
  }
  func.func @transform_0(%arg0: i32, %arg1: i32) -> (i32, i32, i32) {
    %c0_i32 = arith.constant 0 : i32
    %c0_i32_0 = arith.constant 0 : i32
    %c0_i32_1 = arith.constant 0 : i32
    return %arg0, %c0_i32, %c0_i32_0 : i32, i32, i32
  }
  func.func @transform_1(%arg0: i32, %arg1: i32) -> (i32, i32, i32) {
    %c0_i32 = arith.constant 0 : i32
    %c0_i32_0 = arith.constant 0 : i32
    return %arg0, %arg1, %c0_i32 : i32, i32, i32
  }
  func.func @transform_2(%arg0: i32, %arg1: i32) -> (i32, i32) {
    %c0_i32 = arith.constant 0 : i32
    %c0_i32_0 = arith.constant 0 : i32
    %c0_i32_1 = arith.constant 0 : i32
    return %c0_i32, %c0_i32_0 : i32, i32
  }
  func.func @transform_3(%arg0: i32, %arg1: i32) -> (i32, i32) {
    %c0_i32 = arith.constant 0 : i32
    %c0_i32_0 = arith.constant 0 : i32
    %c0_i32_1 = arith.constant 0 : i32
    return %c0_i32, %c0_i32_0 : i32, i32
  }
  func.func @transform_4(%arg0: i32, %arg1: i32) -> (i32, i32) {
    %c0_i32 = arith.constant 0 : i32
    %c0_i32_0 = arith.constant 0 : i32
    %c0_i32_1 = arith.constant 0 : i32
    return %c0_i32, %c0_i32_0 : i32, i32
  }
  func.func @transform_5(%arg0: i32, %arg1: i32) -> (i32, i32) {
    %c0_i32 = arith.constant 0 : i32
    %c0_i32_0 = arith.constant 0 : i32
    %c0_i32_1 = arith.constant 0 : i32
    return %c0_i32, %c0_i32_0 : i32, i32
  }
  func.func @transform_6(%arg0: i32, %arg1: i32) -> (i32, i32) {
    %c0_i32 = arith.constant 0 : i32
    %c0_i32_0 = arith.constant 0 : i32
    %c0_i32_1 = arith.constant 0 : i32
    return %c0_i32, %c0_i32_0 : i32, i32
  }
  func.func @transform_7(%arg0: i32, %arg1: i32) -> (i32, i32) {
    %c0_i32 = arith.constant 0 : i32
    %c0_i32_0 = arith.constant 0 : i32
    %c0_i32_1 = arith.constant 0 : i32
    return %c0_i32, %c0_i32_0 : i32, i32
  }
  func.func @transform_8(%arg0: i32, %arg1: i32) -> (i32, i32) {
    %c0_i32 = arith.constant 0 : i32
    %c0_i32_0 = arith.constant 0 : i32
    %c0_i32_1 = arith.constant 0 : i32
    return %c0_i32, %c0_i32_0 : i32, i32
  }
  func.func @transform_9(%arg0: i32, %arg1: i32) -> (i32, i32) {
    %c0_i32 = arith.constant 0 : i32
    %c0_i32_0 = arith.constant 0 : i32
    %c0_i32_1 = arith.constant 0 : i32
    return %c0_i32, %c0_i32_0 : i32, i32
  }
  func.func @transform_10(%arg0: i32, %arg1: i32) -> (i32, i32) {
    %c0_i32 = arith.constant 0 : i32
    %c0_i32_0 = arith.constant 0 : i32
    %c0_i32_1 = arith.constant 0 : i32
    return %c0_i32, %c0_i32_0 : i32, i32
  }
  func.func @transform_11(%arg0: i32, %arg1: i32) -> (i32, i32) {
    %c0_i32 = arith.constant 0 : i32
    %c0_i32_0 = arith.constant 0 : i32
    %c0_i32_1 = arith.constant 0 : i32
    return %c0_i32, %c0_i32_0 : i32, i32
  }
  func.func @transform_12(%arg0: i32, %arg1: i32) -> (i32, i32) {
    %c0_i32 = arith.constant 0 : i32
    %c0_i32_0 = arith.constant 0 : i32
    %c0_i32_1 = arith.constant 0 : i32
    return %c0_i32, %c0_i32_0 : i32, i32
  }
  func.func @transform_13(%arg0: i32, %arg1: i32) -> (i32, i32) {
    %c0_i32 = arith.constant 0 : i32
    %c0_i32_0 = arith.constant 0 : i32
    %c0_i32_1 = arith.constant 0 : i32
    return %c0_i32, %c0_i32_0 : i32, i32
  }
  func.func @transform_14(%arg0: i32, %arg1: i32) -> (i32, i32) {
    %c0_i32 = arith.constant 0 : i32
    %c0_i32_0 = arith.constant 0 : i32
    %c0_i32_1 = arith.constant 0 : i32
    return %c0_i32, %c0_i32_0 : i32, i32
  }
  func.func @transform_15(%arg0: i32, %arg1: i32) -> (i32, i32) {
    %c0_i32 = arith.constant 0 : i32
    %c0_i32_0 = arith.constant 0 : i32
    %c0_i32_1 = arith.constant 0 : i32
    return %c0_i32, %c0_i32_0 : i32, i32
  }
  func.func @transform_16(%arg0: i32, %arg1: i32) -> (i32, i32, i32) {
    %c0_i32 = arith.constant 0 : i32
    %c0_i32_0 = arith.constant 0 : i32
    return %arg0, %arg1, %c0_i32 : i32, i32, i32
  }
}

</mosaic_0001>

<llo_original>
// kernel: tpu_custom_call.1
$region0: #{tpu_custom_call.1}
  #allocation0 [shape = 'u32[]', space=smem, size = 0x4, offset = 0x4, fixed_abs, tag = 'smem constant byte address 0x4 - core index']
  #allocation1 [shape = 'u32[72,128]{1,0:T(1,128)}', space=vmem, size = 0x9000, scoped, tag = 'internal scratch']
  #allocation2 [shape = 'bf16[4,8,8]{2,1,0:T(8,128)(2,1)}', space=vmem, size = 0x2000, scoped, tag = 'scratch operand']
  #allocation3 [shape = 'bf16[4,8,8]{2,1,0:T(8,128)(2,1)}', space=vmem, size = 0x2000, scoped, tag = 'scratch operand']
  #allocation4 [shape = 'bf16[4,8,8]{2,1,0:T(8,128)(2,1)}', space=vmem, size = 0x2000, scoped, tag = 'scratch operand']
  #allocation5 [shape = 'f32[4,8,8]{2,1,0:T(8,128)}', space=vmem, size = 0x4000, scoped, tag = 'scratch operand']
  %s0 = inlined_call_operand.vmem [shape: f32[2,8,32], index: 0, kind: input, shape index: {}]
  %s1 = inlined_call_operand.vmem [shape: f32[2,8,32], index: 1, kind: input, shape index: {}]
  %s2 = inlined_call_operand.vmem [shape: bf16[32,32], index: 2, kind: input, shape index: {}]
  %s3 = inlined_call_operand.vmem [shape: f32[1,32], index: 3, kind: input, shape index: {}]
  %s4 = inlined_call_operand.vmem [shape: bf16[64,32], index: 4, kind: input, shape index: {}]
  %s5 = inlined_call_operand.vmem [shape: f32[64,1], index: 5, kind: input, shape index: {}]
  %s6 = inlined_call_operand.vmem [shape: bf16[32,32], index: 6, kind: input, shape index: {}]
  %s7 = inlined_call_operand.vmem [shape: f32[1,32], index: 7, kind: input, shape index: {}]
  %s8 = inlined_call_operand.vmem [shape: bf16[32,64], index: 8, kind: input, shape index: {}]
  %s9 = inlined_call_operand.vmem [shape: f32[1,64], index: 9, kind: input, shape index: {}]
  %s10 = inlined_call_operand.vmem [shape: bf16[64,32], index: 10, kind: input, shape index: {}]
  %s11 = inlined_call_operand.vmem [shape: f32[1,32], index: 11, kind: input, shape index: {}]
  %s12 = inlined_call_operand.vmem [shape: f32[1,32], index: 12, kind: input, shape index: {}]
  %s13 = inlined_call_operand.vmem [shape: f32[1,32], index: 13, kind: input, shape index: {}]
  %s14 = inlined_call_operand.vmem [shape: f32[1,32], index: 14, kind: input, shape index: {}]
  %s15 = inlined_call_operand.vmem [shape: f32[1,32], index: 15, kind: input, shape index: {}]
  %s16 = inlined_call_operand.hbm [shape: f32[2,8,32], index: 16, kind: output, shape index: {}]
  %s17 = sld [smem:[#allocation0]]
  $region101: #{tpu_custom_call.1} parent=0
    _
  %s19 = ssub.s32 1, %s17
  %s20 = scalar_select 0, %s19, %s17
  $region1: #{tpu_custom_call.1} parent=0
    #allocation6 [shape = 'u8[8192]{0}', space=vmem, size = 0x2000, scoped, tag = 'output window, operand 0']
    #allocation7 [shape = 's32[2]{0}', space=sflag, size = 0x8, scoped, tag = 'scoped memory for tpu_custom_call.1']
    %21 = vsyncpa [#allocation7], 0
    %s22 = scalar_lea.sflag [#allocation7], 1
    %23 = vsyncpa %s22, 0
    loop: start=0, step=1, limit=4
    $region2: #{tpu_custom_call.1} parent=1 // loop_pre_header
      _
    $region3: #{tpu_custom_call.1} parent=1 // loop_header
      %s25 = sphi 0, %s29
      %p26 = scmp.ge.s32.totalorder %s25, 4
      %s32 = sphi 0, %s44
      %s33 = sphi 0, %s40
      %s34 = sphi 0, %s32
      %s35 = sphi 0, %s33
      %s36 = sphi 0, %s34
      %s37 = sphi 0, %s35
      %s47 = sphi 0, %s49
      %s50 = sphi 0, %s47
      %s51 = sphi 0, %s50
      %s67 = sphi 0, %s51
      %s75 = sphi 0, %s77
      %s78 = sphi 0, %s75
      %s79 = sphi 0, %s78
      %s95 = sphi 0, %s79
      %s99 = sphi 0, %s99
      %s101 = sphi 0, %s99
      %s102 = sphi 0, %s101
      %s116 = sphi 0, %s102
      %s120 = sphi 0, %s120
      %s122 = sphi 0, %s120
      %s123 = sphi 0, %s122
      %s137 = sphi 0, %s123
      %s141 = sphi 0, %s141
      %s143 = sphi 0, %s141
      %s144 = sphi 0, %s143
      %s158 = sphi 0, %s144
      %s162 = sphi 0, %s162
      %s164 = sphi 0, %s162
      %s165 = sphi 0, %s164
      %s179 = sphi 0, %s165
      %s183 = sphi 0, %s183
      %s185 = sphi 0, %s183
      %s186 = sphi 0, %s185
      %s200 = sphi 0, %s186
      %s204 = sphi 0, %s204
      %s206 = sphi 0, %s204
      %s207 = sphi 0, %s206
      %s221 = sphi 0, %s207
      %s225 = sphi 0, %s225
      %s227 = sphi 0, %s225
      %s228 = sphi 0, %s227
      %s242 = sphi 0, %s228
      %s246 = sphi 0, %s246
      %s248 = sphi 0, %s246
      %s249 = sphi 0, %s248
      %s263 = sphi 0, %s249
      %s267 = sphi 0, %s267
      %s269 = sphi 0, %s267
      %s270 = sphi 0, %s269
      %s284 = sphi 0, %s270
      %s288 = sphi 0, %s288
      %s290 = sphi 0, %s288
      %s291 = sphi 0, %s290
      %s305 = sphi 0, %s291
      %s309 = sphi 0, %s309
      %s311 = sphi 0, %s309
      %s312 = sphi 0, %s311
      %s326 = sphi 0, %s312
      %s330 = sphi 0, %s330
      %s332 = sphi 0, %s330
      %s333 = sphi 0, %s332
      %s347 = sphi 0, %s333
      %s351 = sphi 0, %s351
      %s353 = sphi 0, %s351
      %s354 = sphi 0, %s353
      %s368 = sphi 0, %s354
      %s372 = sphi 0, %s372
      %s374 = sphi 0, %s372
      %s375 = sphi 0, %s374
      %s389 = sphi 0, %s375
      %s397 = sphi 0, %s399
      %s400 = sphi 0, %s397
      %s401 = sphi 0, %s400
      %s417 = sphi 0, %s401
    $region4: #{tpu_custom_call.1} parent=1 // loop_header_branch
      %28 = sbr.rel (%p26) target = $region8
    $region5: #{tpu_custom_call.1} parent=1 // loop_body
      %s30 = ssub.s32 %s25, 1
      %s31 = ssub.s32 %s25, 2
      %s38 = sadd.s32 1, %s33
      %p39 = scmp.ge.s32.totalorder %s38, 1
      %s40 = scalar_select %p39, 0, %s38
      %s41 = sadd.s32 1, %s32
      %s42 = scalar_select %p39, %s41, %s32
      %p43 = scmp.ge.s32.totalorder %s42, 2
      %s44 = scalar_select %p43, 0, %s42
      %s45 = ssub.s32 %s32, %s44
      %p46 = scmp.eq.s32.totalorder %s45, 0
      %s48 = sadd.s32 %s47, 1
      %s49 = scalar_select %p46, %s47, %s48
      %p52 = pneg %p46
      %p53 = scmp.eq.s32.totalorder %s25, 1
      %p54 = por %p52, %p53
      %p55 = scmp.ne.s32.totalorder %s47, %s50
      %p56 = scmp.eq.s32.totalorder %s25, 0
      %p57 = por %p55, %p56
      %p58 = scmp.ne.s32.totalorder %s47, %s50
      %p59 = scmp.eq.s32.totalorder %s30, 1
      %p60 = por %p58, %p59
      %p61 = scmp.ne.s32.totalorder %s50, %s51
      %p62 = scmp.eq.s32.totalorder %s30, 0
      %p63 = por %p61, %p62
      %p64 = scmp.ne.s32.totalorder %s50, %s51
      %p65 = scmp.eq.s32.totalorder %s31, 1
      %p66 = por %p64, %p65
      %p68 = scmp.ne.s32.totalorder %s51, %s67
      %p69 = scmp.eq.s32.totalorder %s31, 0
      %p70 = por %p68, %p69
      %s71 = ssub.s32 %s32, %s44
      %s72 = ssub.s32 %s33, %s40
      %s73 = sor.u32 %s71, %s72
      %p74 = scmp.eq.s32.totalorder %s73, 0
      %s76 = sadd.s32 %s75, 1
      %s77 = scalar_select %p74, %s75, %s76
      %p80 = pneg %p74
      %p81 = scmp.eq.s32.totalorder %s25, 1
      %p82 = por %p80, %p81
      %p83 = scmp.ne.s32.totalorder %s75, %s78
      %p84 = scmp.eq.s32.totalorder %s25, 0
      %p85 = por %p83, %p84
      %p86 = scmp.ne.s32.totalorder %s75, %s78
      %p87 = scmp.eq.s32.totalorder %s30, 1
      %p88 = por %p86, %p87
      %p89 = scmp.ne.s32.totalorder %s78, %s79
      %p90 = scmp.eq.s32.totalorder %s30, 0
      %p91 = por %p89, %p90
      %p92 = scmp.ne.s32.totalorder %s78, %s79
      %p93 = scmp.eq.s32.totalorder %s31, 1
      %p94 = por %p92, %p93
      %p96 = scmp.ne.s32.totalorder %s79, %s95
      %p97 = scmp.eq.s32.totalorder %s31, 0
      %p98 = por %p96, %p97
      %s100 = sadd.s32 %s99, 1
      %p103 = scmp.eq.s32.totalorder %s25, 1
      %p104 = scmp.ne.s32.totalorder %s99, %s101
      %p105 = scmp.eq.s32.totalorder %s25, 0
      %p106 = por %p104, %p105
      %p107 = scmp.ne.s32.totalorder %s99, %s101
      %p108 = scmp.eq.s32.totalorder %s30, 1
      %p109 = por %p107, %p108
      %p110 = scmp.ne.s32.totalorder %s101, %s102
      %p111 = scmp.eq.s32.totalorder %s30, 0
      %p112 = por %p110, %p111
      %p113 = scmp.ne.s32.totalorder %s101, %s102
      %p114 = scmp.eq.s32.totalorder %s31, 1
      %p115 = por %p113, %p114
      %p117 = scmp.ne.s32.totalorder %s102, %s116
      %p118 = scmp.eq.s32.totalorder %s31, 0
      %p119 = por %p117, %p118
      %s121 = sadd.s32 %s120, 1
      %p124 = scmp.eq.s32.totalorder %s25, 1
      %p125 = scmp.ne.s32.totalorder %s120, %s122
      %p126 = scmp.eq.s32.totalorder %s25, 0
      %p127 = por %p125, %p126
      %p128 = scmp.ne.s32.totalorder %s120, %s122
      %p129 = scmp.eq.s32.totalorder %s30, 1
      %p130 = por %p128, %p129
      %p131 = scmp.ne.s32.totalorder %s122, %s123
      %p132 = scmp.eq.s32.totalorder %s30, 0
      %p133 = por %p131, %p132
      %p134 = scmp.ne.s32.totalorder %s122, %s123
      %p135 = scmp.eq.s32.totalorder %s31, 1
      %p136 = por %p134, %p135
      %p138 = scmp.ne.s32.totalorder %s123, %s137
      %p139 = scmp.eq.s32.totalorder %s31, 0
      %p140 = por %p138, %p139
      %s142 = sadd.s32 %s141, 1
      %p145 = scmp.eq.s32.totalorder %s25, 1
      %p146 = scmp.ne.s32.totalorder %s141, %s143
      %p147 = scmp.eq.s32.totalorder %s25, 0
      %p148 = por %p146, %p147
      %p149 = scmp.ne.s32.totalorder %s141, %s143
      %p150 = scmp.eq.s32.totalorder %s30, 1
      %p151 = por %p149, %p150
      %p152 = scmp.ne.s32.totalorder %s143, %s144
      %p153 = scmp.eq.s32.totalorder %s30, 0
      %p154 = por %p152, %p153
      %p155 = scmp.ne.s32.totalorder %s143, %s144
      %p156 = scmp.eq.s32.totalorder %s31, 1
      %p157 = por %p155, %p156
      %p159 = scmp.ne.s32.totalorder %s144, %s158
      %p160 = scmp.eq.s32.totalorder %s31, 0
      %p161 = por %p159, %p160
      %s163 = sadd.s32 %s162, 1
      %p166 = scmp.eq.s32.totalorder %s25, 1
      %p167 = scmp.ne.s32.totalorder %s162, %s164
      %p168 = scmp.eq.s32.totalorder %s25, 0
      %p169 = por %p167, %p168
      %p170 = scmp.ne.s32.totalorder %s162, %s164
      %p171 = scmp.eq.s32.totalorder %s30, 1
      %p172 = por %p170, %p171
      %p173 = scmp.ne.s32.totalorder %s164, %s165
      %p174 = scmp.eq.s32.totalorder %s30, 0
      %p175 = por %p173, %p174
      %p176 = scmp.ne.s32.totalorder %s164, %s165
      %p177 = scmp.eq.s32.totalorder %s31, 1
      %p178 = por %p176, %p177
      %p180 = scmp.ne.s32.totalorder %s165, %s179
      %p181 = scmp.eq.s32.totalorder %s31, 0
      %p182 = por %p180, %p181
      %s184 = sadd.s32 %s183, 1
      %p187 = scmp.eq.s32.totalorder %s25, 1
      %p188 = scmp.ne.s32.totalorder %s183, %s185
      %p189 = scmp.eq.s32.totalorder %s25, 0
      %p190 = por %p188, %p189
      %p191 = scmp.ne.s32.totalorder %s183, %s185
      %p192 = scmp.eq.s32.totalorder %s30, 1
      %p193 = por %p191, %p192
      %p194 = scmp.ne.s32.totalorder %s185, %s186
      %p195 = scmp.eq.s32.totalorder %s30, 0
      %p196 = por %p194, %p195
      %p197 = scmp.ne.s32.totalorder %s185, %s186
      %p198 = scmp.eq.s32.totalorder %s31, 1
      %p199 = por %p197, %p198
      %p201 = scmp.ne.s32.totalorder %s186, %s200
      %p202 = scmp.eq.s32.totalorder %s31, 0
      %p203 = por %p201, %p202
      %s205 = sadd.s32 %s204, 1
      %p208 = scmp.eq.s32.totalorder %s25, 1
      %p209 = scmp.ne.s32.totalorder %s204, %s206
      %p210 = scmp.eq.s32.totalorder %s25, 0
      %p211 = por %p209, %p210
      %p212 = scmp.ne.s32.totalorder %s204, %s206
      %p213 = scmp.eq.s32.totalorder %s30, 1
      %p214 = por %p212, %p213
      %p215 = scmp.ne.s32.totalorder %s206, %s207
      %p216 = scmp.eq.s32.totalorder %s30, 0
      %p217 = por %p215, %p216
      %p218 = scmp.ne.s32.totalorder %s206, %s207
      %p219 = scmp.eq.s32.totalorder %s31, 1
      %p220 = por %p218, %p219
      %p222 = scmp.ne.s32.totalorder %s207, %s221
      %p223 = scmp.eq.s32.totalorder %s31, 0
      %p224 = por %p222, %p223
      %s226 = sadd.s32 %s225, 1
      %p229 = scmp.eq.s32.totalorder %s25, 1
      %p230 = scmp.ne.s32.totalorder %s225, %s227
      %p231 = scmp.eq.s32.totalorder %s25, 0
      %p232 = por %p230, %p231
      %p233 = scmp.ne.s32.totalorder %s225, %s227
      %p234 = scmp.eq.s32.totalorder %s30, 1
      %p235 = por %p233, %p234
      %p236 = scmp.ne.s32.totalorder %s227, %s228
      %p237 = scmp.eq.s32.totalorder %s30, 0
      %p238 = por %p236, %p237
      %p239 = scmp.ne.s32.totalorder %s227, %s228
      %p240 = scmp.eq.s32.totalorder %s31, 1
      %p241 = por %p239, %p240
      %p243 = scmp.ne.s32.totalorder %s228, %s242
      %p244 = scmp.eq.s32.totalorder %s31, 0
      %p245 = por %p243, %p244
      %s247 = sadd.s32 %s246, 1
      %p250 = scmp.eq.s32.totalorder %s25, 1
      %p251 = scmp.ne.s32.totalorder %s246, %s248
      %p252 = scmp.eq.s32.totalorder %s25, 0
      %p253 = por %p251, %p252
      %p254 = scmp.ne.s32.totalorder %s246, %s248
      %p255 = scmp.eq.s32.totalorder %s30, 1
      %p256 = por %p254, %p255
      %p257 = scmp.ne.s32.totalorder %s248, %s249
      %p258 = scmp.eq.s32.totalorder %s30, 0
      %p259 = por %p257, %p258
      %p260 = scmp.ne.s32.totalorder %s248, %s249
      %p261 = scmp.eq.s32.totalorder %s31, 1
      %p262 = por %p260, %p261
      %p264 = scmp.ne.s32.totalorder %s249, %s263
      %p265 = scmp.eq.s32.totalorder %s31, 0
      %p266 = por %p264, %p265
      %s268 = sadd.s32 %s267, 1
      %p271 = scmp.eq.s32.totalorder %s25, 1
      %p272 = scmp.ne.s32.totalorder %s267, %s269
      %p273 = scmp.eq.s32.totalorder %s25, 0
      %p274 = por %p272, %p273
      %p275 = scmp.ne.s32.totalorder %s267, %s269
      %p276 = scmp.eq.s32.totalorder %s30, 1
      %p277 = por %p275, %p276
      %p278 = scmp.ne.s32.totalorder %s269, %s270
      %p279 = scmp.eq.s32.totalorder %s30, 0
      %p280 = por %p278, %p279
      %p281 = scmp.ne.s32.totalorder %s269, %s270
      %p282 = scmp.eq.s32.totalorder %s31, 1
      %p283 = por %p281, %p282
      %p285 = scmp.ne.s32.totalorder %s270, %s284
      %p286 = scmp.eq.s32.totalorder %s31, 0
      %p287 = por %p285, %p286
      %s289 = sadd.s32 %s288, 1
      %p292 = scmp.eq.s32.totalorder %s25, 1
      %p293 = scmp.ne.s32.totalorder %s288, %s290
      %p294 = scmp.eq.s32.totalorder %s25, 0
      %p295 = por %p293, %p294
      %p296 = scmp.ne.s32.totalorder %s288, %s290
      %p297 = scmp.eq.s32.totalorder %s30, 1
      %p298 = por %p296, %p297
      %p299 = scmp.ne.s32.totalorder %s290, %s291
      %p300 = scmp.eq.s32.totalorder %s30, 0
      %p301 = por %p299, %p300
      %p302 = scmp.ne.s32.totalorder %s290, %s291
      %p303 = scmp.eq.s32.totalorder %s31, 1
      %p304 = por %p302, %p303
      %p306 = scmp.ne.s32.totalorder %s291, %s305
      %p307 = scmp.eq.s32.totalorder %s31, 0
      %p308 = por %p306, %p307
      %s310 = sadd.s32 %s309, 1
      %p313 = scmp.eq.s32.totalorder %s25, 1
      %p314 = scmp.ne.s32.totalorder %s309, %s311
      %p315 = scmp.eq.s32.totalorder %s25, 0
      %p316 = por %p314, %p315
      %p317 = scmp.ne.s32.totalorder %s309, %s311
      %p318 = scmp.eq.s32.totalorder %s30, 1
      %p319 = por %p317, %p318
      %p320 = scmp.ne.s32.totalorder %s311, %s312
      %p321 = scmp.eq.s32.totalorder %s30, 0
      %p322 = por %p320, %p321
      %p323 = scmp.ne.s32.totalorder %s311, %s312
      %p324 = scmp.eq.s32.totalorder %s31, 1
      %p325 = por %p323, %p324
      %p327 = scmp.ne.s32.totalorder %s312, %s326
      %p328 = scmp.eq.s32.totalorder %s31, 0
      %p329 = por %p327, %p328
      %s331 = sadd.s32 %s330, 1
      %p334 = scmp.eq.s32.totalorder %s25, 1
      %p335 = scmp.ne.s32.totalorder %s330, %s332
      %p336 = scmp.eq.s32.totalorder %s25, 0
      %p337 = por %p335, %p336
      %p338 = scmp.ne.s32.totalorder %s330, %s332
      %p339 = scmp.eq.s32.totalorder %s30, 1
      %p340 = por %p338, %p339
      %p341 = scmp.ne.s32.totalorder %s332, %s333
      %p342 = scmp.eq.s32.totalorder %s30, 0
      %p343 = por %p341, %p342
      %p344 = scmp.ne.s32.totalorder %s332, %s333
      %p345 = scmp.eq.s32.totalorder %s31, 1
      %p346 = por %p344, %p345
      %p348 = scmp.ne.s32.totalorder %s333, %s347
      %p349 = scmp.eq.s32.totalorder %s31, 0
      %p350 = por %p348, %p349
      %s352 = sadd.s32 %s351, 1
      %p355 = scmp.eq.s32.totalorder %s25, 1
      %p356 = scmp.ne.s32.totalorder %s351, %s353
      %p357 = scmp.eq.s32.totalorder %s25, 0
      %p358 = por %p356, %p357
      %p359 = scmp.ne.s32.totalorder %s351, %s353
      %p360 = scmp.eq.s32.totalorder %s30, 1
      %p361 = por %p359, %p360
      %p362 = scmp.ne.s32.totalorder %s353, %s354
      %p363 = scmp.eq.s32.totalorder %s30, 0
      %p364 = por %p362, %p363
      %p365 = scmp.ne.s32.totalorder %s353, %s354
      %p366 = scmp.eq.s32.totalorder %s31, 1
      %p367 = por %p365, %p366
      %p369 = scmp.ne.s32.totalorder %s354, %s368
      %p370 = scmp.eq.s32.totalorder %s31, 0
      %p371 = por %p369, %p370
      %s373 = sadd.s32 %s372, 1
      %p376 = scmp.eq.s32.totalorder %s25, 1
      %p377 = scmp.ne.s32.totalorder %s372, %s374
      %p378 = scmp.eq.s32.totalorder %s25, 0
      %p379 = por %p377, %p378
      %p380 = scmp.ne.s32.totalorder %s372, %s374
      %p381 = scmp.eq.s32.totalorder %s30, 1
      %p382 = por %p380, %p381
      %p383 = scmp.ne.s32.totalorder %s374, %s375
      %p384 = scmp.eq.s32.totalorder %s30, 0
      %p385 = por %p383, %p384
      %p386 = scmp.ne.s32.totalorder %s374, %s375
      %p387 = scmp.eq.s32.totalorder %s31, 1
      %p388 = por %p386, %p387
      %p390 = scmp.ne.s32.totalorder %s375, %s389
      %p391 = scmp.eq.s32.totalorder %s31, 0
      %p392 = por %p390, %p391
      %s393 = ssub.s32 %s32, %s44
      %s394 = ssub.s32 %s33, %s40
      %s395 = sor.u32 %s393, %s394
      %p396 = scmp.eq.s32.totalorder %s395, 0
      %s398 = sadd.s32 %s397, 1
      %s399 = scalar_select %p396, %s397, %s398
      %p402 = pneg %p396
      %p403 = scmp.eq.s32.totalorder %s25, 1
      %p404 = por %p402, %p403
      %p405 = scmp.ne.s32.totalorder %s397, %s400
      %p406 = scmp.eq.s32.totalorder %s25, 0
      %p407 = por %p405, %p406
      %p408 = scmp.ne.s32.totalorder %s397, %s400
      %p409 = scmp.eq.s32.totalorder %s30, 1
      %p410 = por %p408, %p409
      %p411 = scmp.ne.s32.totalorder %s400, %s401
      %p412 = scmp.eq.s32.totalorder %s30, 0
      %p413 = por %p411, %p412
      %p414 = scmp.ne.s32.totalorder %s400, %s401
      %p415 = scmp.eq.s32.totalorder %s31, 1
      %p416 = por %p414, %p415
      %p418 = scmp.ne.s32.totalorder %s401, %s417
      %p419 = scmp.eq.s32.totalorder %s31, 0
      %p420 = por %p418, %p419
      %p421 = scmp.le.s32.totalorder 1, %s25
      %p422 = scmp.lt.s32.totalorder %s25, 3
      %p423 = pnand %p421, %p422
      %p424 = pneg %p423
      // Predicated region
      $region9: #{tpu_custom_call.1} parent=5 // pred_check
        _
      $region10: #{tpu_custom_call.1} parent=5 // pred_check_branch
        %426 = sbr.rel (%p423) target = $region12
      $region11: #{tpu_custom_call.1} parent=5 // pred_region
        %s427 = ssub.s32 %s25, 1
        // Predicated region
        $region13: #{tpu_custom_call.1} parent=11 // pred_check
          %p428 = pneg %p112
        $region14: #{tpu_custom_call.1} parent=11 // pred_check_branch
          %430 = sbr.rel (%p428) target = $region16
        $region15: #{tpu_custom_call.1} parent=11 // pred_region
          _
        $region16: #{tpu_custom_call.1} parent=11 // pred_fallthru
          _
        // Predicated region
        $region17: #{tpu_custom_call.1} parent=11 // pred_check
          %p431 = pneg %p133
        $region18: #{tpu_custom_call.1} parent=11 // pred_check_branch
          %433 = sbr.rel (%p431) target = $region20
        $region19: #{tpu_custom_call.1} parent=11 // pred_region
          _
        $region20: #{tpu_custom_call.1} parent=11 // pred_fallthru
          _
        // Predicated region
        $region21: #{tpu_custom_call.1} parent=11 // pred_check
          %p434 = pneg %p154
        $region22: #{tpu_custom_call.1} parent=11 // pred_check_branch
          %436 = sbr.rel (%p434) target = $region24
        $region23: #{tpu_custom_call.1} parent=11 // pred_region
          _
        $region24: #{tpu_custom_call.1} parent=11 // pred_fallthru
          _
        // Predicated region
        $region25: #{tpu_custom_call.1} parent=11 // pred_check
          %p437 = pneg %p175
        $region26: #{tpu_custom_call.1} parent=11 // pred_check_branch
          %439 = sbr.rel (%p437) target = $region28
        $region27: #{tpu_custom_call.1} parent=11 // pred_region
          _
        $region28: #{tpu_custom_call.1} parent=11 // pred_fallthru
          _
        // Predicated region
        $region29: #{tpu_custom_call.1} parent=11 // pred_check
          %p440 = pneg %p196
        $region30: #{tpu_custom_call.1} parent=11 // pred_check_branch
          %442 = sbr.rel (%p440) target = $region32
        $region31: #{tpu_custom_call.1} parent=11 // pred_region
          _
        $region32: #{tpu_custom_call.1} parent=11 // pred_fallthru
          _
        // Predicated region
        $region33: #{tpu_custom_call.1} parent=11 // pred_check
          %p443 = pneg %p217
        $region34: #{tpu_custom_call.1} parent=11 // pred_check_branch
          %445 = sbr.rel (%p443) target = $region36
        $region35: #{tpu_custom_call.1} parent=11 // pred_region
          _
        $region36: #{tpu_custom_call.1} parent=11 // pred_fallthru
          _
        // Predicated region
        $region37: #{tpu_custom_call.1} parent=11 // pred_check
          %p446 = pneg %p238
        $region38: #{tpu_custom_call.1} parent=11 // pred_check_branch
          %448 = sbr.rel (%p446) target = $region40
        $region39: #{tpu_custom_call.1} parent=11 // pred_region
          _
        $region40: #{tpu_custom_call.1} parent=11 // pred_fallthru
          _
        // Predicated region
        $region41: #{tpu_custom_call.1} parent=11 // pred_check
          %p449 = pneg %p259
        $region42: #{tpu_custom_call.1} parent=11 // pred_check_branch
          %451 = sbr.rel (%p449) target = $region44
        $region43: #{tpu_custom_call.1} parent=11 // pred_region
          _
        $region44: #{tpu_custom_call.1} parent=11 // pred_fallthru
          _
        // Predicated region
        $region45: #{tpu_custom_call.1} parent=11 // pred_check
          %p452 = pneg %p280
        $region46: #{tpu_custom_call.1} parent=11 // pred_check_branch
          %454 = sbr.rel (%p452) target = $region48
        $region47: #{tpu_custom_call.1} parent=11 // pred_region
          _
        $region48: #{tpu_custom_call.1} parent=11 // pred_fallthru
          _
        // Predicated region
        $region49: #{tpu_custom_call.1} parent=11 // pred_check
          %p455 = pneg %p301
        $region50: #{tpu_custom_call.1} parent=11 // pred_check_branch
          %457 = sbr.rel (%p455) target = $region52
        $region51: #{tpu_custom_call.1} parent=11 // pred_region
          _
        $region52: #{tpu_custom_call.1} parent=11 // pred_fallthru
          _
        // Predicated region
        $region53: #{tpu_custom_call.1} parent=11 // pred_check
          %p458 = pneg %p322
        $region54: #{tpu_custom_call.1} parent=11 // pred_check_branch
          %460 = sbr.rel (%p458) target = $region56
        $region55: #{tpu_custom_call.1} parent=11 // pred_region
          _
        $region56: #{tpu_custom_call.1} parent=11 // pred_fallthru
          _
        // Predicated region
        $region57: #{tpu_custom_call.1} parent=11 // pred_check
          %p461 = pneg %p343
        $region58: #{tpu_custom_call.1} parent=11 // pred_check_branch
          %463 = sbr.rel (%p461) target = $region60
        $region59: #{tpu_custom_call.1} parent=11 // pred_region
          _
        $region60: #{tpu_custom_call.1} parent=11 // pred_fallthru
          _
        // Predicated region
        $region61: #{tpu_custom_call.1} parent=11 // pred_check
          %p464 = pneg %p364
        $region62: #{tpu_custom_call.1} parent=11 // pred_check_branch
          %466 = sbr.rel (%p464) target = $region64
        $region63: #{tpu_custom_call.1} parent=11 // pred_region
          _
        $region64: #{tpu_custom_call.1} parent=11 // pred_fallthru
          _
        // Predicated region
        $region65: #{tpu_custom_call.1} parent=11 // pred_check
          %p467 = pneg %p385
        $region66: #{tpu_custom_call.1} parent=11 // pred_check_branch
          %469 = sbr.rel (%p467) target = $region68
        $region67: #{tpu_custom_call.1} parent=11 // pred_region
          _
        $region68: #{tpu_custom_call.1} parent=11 // pred_fallthru
          _
      $region12: #{tpu_custom_call.1} parent=5 // pred_fallthru
        _
      %p470 = scmp.lt.s32.totalorder %s25, 2
      // Predicated region
      $region69: #{tpu_custom_call.1} parent=5 // pred_check
        %p471 = pneg %p470
      $region70: #{tpu_custom_call.1} parent=5 // pred_check_branch
        %473 = sbr.rel (%p471) target = $region72
      $region71: #{tpu_custom_call.1} parent=5 // pred_region
        // Predicated region
        $region73: #{tpu_custom_call.1} parent=71 // pred_check
          %p474 = pneg %p57
        $region74: #{tpu_custom_call.1} parent=71 // pred_check_branch
          %476 = sbr.rel (%p474) target = $region76
        $region75: #{tpu_custom_call.1} parent=71 // pred_region
          %p477 = scmp.lt.s32.totalorder %s32, 1
          %s478 = scalar_select %p477, %s32, 1
          %s479 = smul.addr %s478, 8
          %s480 = scalar_lea.vmem %s0, %s479
        $region76: #{tpu_custom_call.1} parent=71 // pred_fallthru
          _
        // Predicated region
        $region77: #{tpu_custom_call.1} parent=71 // pred_check
          %p481 = pneg %p85
        $region78: #{tpu_custom_call.1} parent=71 // pred_check_branch
          %483 = sbr.rel (%p481) target = $region80
        $region79: #{tpu_custom_call.1} parent=71 // pred_region
          %p484 = scmp.lt.s32.totalorder %s32, 1
          %s485 = scalar_select %p484, %s32, 1
          %p486 = scmp.lt.s32.totalorder %s33, 0
          %s487 = scalar_select %p486, %s33, 0
          %s488 = sadd.s32 %s487, %s485
          %s489 = smul.addr %s488, 8
          %s490 = scalar_lea.vmem %s1, %s489
        $region80: #{tpu_custom_call.1} parent=71 // pred_fallthru
          _
      $region72: #{tpu_custom_call.1} parent=5 // pred_fallthru
        _
      %p491 = scmp.le.s32.totalorder 1, %s25
      %p492 = scmp.lt.s32.totalorder %s25, 3
      %p493 = pnand %p491, %p492
      %p494 = pneg %p493
      // Predicated region
      $region81: #{tpu_custom_call.1} parent=5 // pred_check
        _
      $region82: #{tpu_custom_call.1} parent=5 // pred_check_branch
        %496 = sbr.rel (%p493) target = $region84
      $region83: #{tpu_custom_call.1} parent=5 // pred_region
        %s497 = ssub.s32 %s25, 1
        %p498 = scmp.lt.s32.totalorder %s34, 1
        %s499 = scalar_select %p498, %s34, 1
        %s500 = smul.addr %s499, 8
        %s501 = scalar_lea.vmem %s0, %s500
        %p502 = pneg %p63
        %p503 = pneg %p60
        %p504 = scmp.lt.s32.totalorder %s34, 1
        %s505 = scalar_select %p504, %s34, 1
        %p506 = scmp.lt.s32.totalorder %s35, 0
        %s507 = scalar_select %p506, %s35, 0
        %s508 = sadd.s32 %s507, %s505
        %s509 = smul.addr %s508, 8
        %s510 = scalar_lea.vmem %s1, %s509
        %p511 = pneg %p91
        %p512 = pneg %p88
        %p513 = pneg %p112
        %p514 = pneg %p109
        %p515 = pneg %p133
        %p516 = pneg %p130
        %p517 = pneg %p154
        %p518 = pneg %p151
        %p519 = pneg %p175
        %p520 = pneg %p172
        %p521 = pneg %p196
        %p522 = pneg %p193
        %p523 = pneg %p217
        %p524 = pneg %p214
        %p525 = pneg %p238
        %p526 = pneg %p235
        %p527 = pneg %p259
        %p528 = pneg %p256
        %p529 = pneg %p280
        %p530 = pneg %p277
        %p531 = pneg %p301
        %p532 = pneg %p298
        %p533 = pneg %p322
        %p534 = pneg %p319
        %p535 = pneg %p343
        %p536 = pneg %p340
        %p537 = pneg %p364
        %p538 = pneg %p361
        %p539 = pneg %p385
        %p540 = pneg %p382
        %p541 = pneg %p413
        %p542 = pneg %p410
        %s543 = sand.u32 %s400, 1
        %s544 = scalar_lea.sflag [#allocation7], %s543
        %s545 = sand.u32 %s400, 1
        %s546 = smul.addr %s545, 8
        %s547 = scalar_lea.vmem [#allocation6], %s546
        %p548 = scmp.lt.s32.totalorder %s34, 1
        %s549 = scalar_select %p548, %s34, 1
        %s550 = smul.addr %s549, 8
        %s551 = scalar_lea.vmem %s0, %s550
        %p552 = scmp.lt.s32.totalorder %s34, 1
        %s553 = scalar_select %p552, %s34, 1
        %p554 = scmp.lt.s32.totalorder %s35, 0
        %s555 = scalar_select %p554, %s35, 0
        %s556 = sadd.s32 %s555, %s553
        %s557 = smul.addr %s556, 8
        %s558 = scalar_lea.vmem %s1, %s557
        %p560 = scmp.eq.s32.totalorder %s35, 0
        // Predicated region
        $region85: #{tpu_custom_call.1} parent=83 // pred_check
          %p561 = pneg %p560
        $region86: #{tpu_custom_call.1} parent=83 // pred_check_branch
          %563 = sbr.rel (%p561) target = $region88
        $region87: #{tpu_custom_call.1} parent=83 // pred_region
          %v564 = vld [vmem:[%s551] sm:$0xff]
          %v565 = vpack.c.bf16 %v564, %v564
          %v566 = vld [vmem:[%s4] sm:$0xf]
          %v567 = vld [vmem:[%s4 + $0x4] sm:$0xf]
          %v568 = vld [vmem:[%s4 + $0x8] sm:$0xf]
          %v569 = vld [vmem:[%s4 + $0xc] sm:$0xf]
          %v570 = vld [vmem:[%s4 + $0x10] sm:$0xf]
          %v571 = vld [vmem:[%s4 + $0x14] sm:$0xf]
          %v572 = vld [vmem:[%s4 + $0x18] sm:$0xf]
          %v573 = vld [vmem:[%s4 + $0x1c] sm:$0xf]
          %v574 = vld [vmem:[%s5] sm:$0xff]
          %v575 = vld [vmem:[%s5 + $0x8] sm:$0xff]
          %v576 = vld [vmem:[%s5 + $0x10] sm:$0xff]
          %v577 = vld [vmem:[%s5 + $0x18] sm:$0xff]
          %v578 = vld [vmem:[%s5 + $0x20] sm:$0xff]
          %v579 = vld [vmem:[%s5 + $0x28] sm:$0xff]
          %v580 = vld [vmem:[%s5 + $0x30] sm:$0xff]
          %v581 = vld [vmem:[%s5 + $0x38] sm:$0xff]
          %583 = vset.pattern.permute.xlu0 0
          %584 = vperm.xlu0 %583, %v574
          %v585 = vpop.permute.xlu0 %584
          %588 = vset.pattern.permute.xlu0 0
          %589 = vperm.xlu0 %588, %v575
          %v590 = vpop.permute.xlu0 %589
          %593 = vset.pattern.permute.xlu0 0
          %594 = vperm.xlu0 %593, %v576
          %v595 = vpop.permute.xlu0 %594
          %598 = vset.pattern.permute.xlu0 0
          %599 = vperm.xlu0 %598, %v577
          %v600 = vpop.permute.xlu0 %599
          %603 = vset.pattern.permute.xlu0 0
          %604 = vperm.xlu0 %603, %v578
          %v605 = vpop.permute.xlu0 %604
          %608 = vset.pattern.permute.xlu0 0
          %609 = vperm.xlu0 %608, %v579
          %v610 = vpop.permute.xlu0 %609
          %613 = vset.pattern.permute.xlu0 0
          %614 = vperm.xlu0 %613, %v580
          %v615 = vpop.permute.xlu0 %614
          %618 = vset.pattern.permute.xlu0 0
          %619 = vperm.xlu0 %618, %v581
          %v620 = vpop.permute.xlu0 %619
          %v630 = vunpack.c.l.b16 %v566
          %v631 = vunpack.c.l.b16 %v567
          %v632 = vunpack.c.l.b16 %v568
          %v633 = vunpack.c.l.b16 %v569
          %v634 = vunpack.c.l.b16 %v570
          %v635 = vunpack.c.l.b16 %v571
          %v636 = vunpack.c.l.b16 %v572
          %v637 = vunpack.c.l.b16 %v573
          %v638 = vpack.c.b16 %v631, %v630
          %v639 = vpack.c.b16 %v633, %v632
          %v640 = vpack.c.b16 %v635, %v634
          %v641 = vpack.c.b16 %v637, %v636
          %vm642 = vcmask 261120
          %v644 = vsel %vm642, %v638, 0
          %v647 = vsel %vm642, %v639, 0
          %v650 = vsel %vm642, %v640, 0
          %v653 = vsel %vm642, %v641, 0
          %v656 = vsel %vm642, %v565, 0
          %658 = vmatpush.bf16.xpose.msra.mxu0 0
          %659 = vmatpush.bf16.xpose.msra.mxu0 0
          %660 = vmatpush.bf16.xpose.msra.mxu0 0
          %661 = vmatpush.bf16.xpose.msra.mxu0 0
          %662 = vmatpush.bf16.xpose.msra.mxu0 0
          %663 = vmatpush.bf16.xpose.msra.mxu0 0
          %664 = vmatpush.bf16.xpose.msra.mxu0 0
          %665 = vmatpush.bf16.xpose.msra.mxu0 %v656
          %666 = vmatmul.bf16.gmra.mxu0 %v644
          %v667 = vpop.f32.mrf.mxu0
          %v668 = vadd.f32 %v585, %v667
          %v669 = vpop.f32.mrf.mxu0
          %v670 = vadd.f32 %v590, %v669
          %671 = vmatmul.bf16.gmra.mxu0 %v647
          %v672 = vpop.f32.mrf.mxu0
          %v673 = vadd.f32 %v595, %v672
          %v674 = vpop.f32.mrf.mxu0
          %v675 = vadd.f32 %v600, %v674
          %676 = vmatmul.bf16.gmra.mxu0 %v650
          %v677 = vpop.f32.mrf.mxu0
          %v678 = vadd.f32 %v605, %v677
          %v679 = vpop.f32.mrf.mxu0
          %v680 = vadd.f32 %v610, %v679
          %681 = vmatmul.bf16.gmra.mxu0 %v653
          %v682 = vpop.f32.mrf.mxu0
          %v683 = vadd.f32 %v615, %v682
          %v684 = vpop.f32.mrf.mxu0
          %v685 = vadd.f32 %v620, %v684
          %686 = vdwg.mxu0
          %v687 = vpack.c.bf16 %v668, %v668
          %v688 = vpack.c.bf16 %v670, %v670
          %v689 = vpack.c.bf16 %v673, %v673
          %v690 = vpack.c.bf16 %v675, %v675
          %v691 = vpack.c.bf16 %v678, %v678
          %v692 = vpack.c.bf16 %v680, %v680
          %v693 = vpack.c.bf16 %v683, %v683
          %v694 = vpack.c.bf16 %v685, %v685
          %vm695 = vcmask 60416
          %696 = vst.msk [vmem:[#allocation2] sm:$0xf] %vm695, %v687
          %697 = vst.msk [vmem:[#allocation2 + $0x4] sm:$0xf] %vm695, %v688
          %698 = vst.msk [vmem:[#allocation2 + $0x8] sm:$0xf] %vm695, %v689
          %699 = vst.msk [vmem:[#allocation2 + $0xc] sm:$0xf] %vm695, %v690
          %700 = vst.msk [vmem:[#allocation3] sm:$0xf] %vm695, %v691
          %701 = vst.msk [vmem:[#allocation3 + $0x4] sm:$0xf] %vm695, %v692
          %702 = vst.msk [vmem:[#allocation3 + $0x8] sm:$0xf] %vm695, %v693
          %703 = vst.msk [vmem:[#allocation3 + $0xc] sm:$0xf] %vm695, %v694
        $region88: #{tpu_custom_call.1} parent=83 // pred_fallthru
          _
        %v704 = vld [vmem:[%s558] sm:$0xff]
        %v705 = vpack.c.bf16 %v704, %v704
        %v706 = vld [vmem:[%s2] sm:$0xf]
        %v707 = vld [vmem:[%s2 + $0x4] sm:$0xf]
        %v708 = vld [vmem:[%s2 + $0x8] sm:$0xf]
        %v709 = vld [vmem:[%s2 + $0xc] sm:$0xf]
        %v710 = vld [vmem:[%s3] sm:$0x1]
        %v712 = vperm.slane %v710, 0
        %v718 = vunpack.c.l.b16 %v706
        %v719 = vunpack.c.l.b16 %v707
        %v720 = vunpack.c.l.b16 %v708
        %v721 = vunpack.c.l.b16 %v709
        %v722 = vpack.c.b16 %v719, %v718
        %v723 = vpack.c.b16 %v721, %v720
        %vm726 = vcmask 261120
        %v728 = vsel %vm726, %v705, 0
        %730 = vmatpush.bf16.msra.mxu0 0
        %731 = vmatpush.bf16.msra.mxu0 0
        %732 = vmatpush.bf16.msra.mxu0 0
        %733 = vmatpush.bf16.msra.mxu0 0
        %734 = vmatpush.bf16.msra.mxu0 0
        %735 = vmatpush.bf16.msra.mxu0 0
        %736 = vmatpush.bf16.msra.mxu0 %v723
        %737 = vmatpush.bf16.msra.mxu0 %v722
        %738 = vmatmul.bf16.gmra.mxu0 %v728
        %v739 = vpop.f32.mrf.mxu0
        %v740 = vadd.f32 %v712, %v739
        %v741 = vpop.f32.mrf.mxu0
        %742 = vdwg.mxu0
        %v743 = vmul.f32 %v740, 0.5100697
        %745 = vrot.lane.b32.xlu0 %v743, 120
        %v746 = vpop.permute.xlu0 %745
        %748 = vrot.lane.b32.xlu0 %v743, 112
        %v749 = vpop.permute.xlu0 %748
        %751 = vrot.lane.b32.xlu0 %v743, 104
        %v752 = vpop.permute.xlu0 %751
        %v754 = vrot.slane %v749, 4
        %vm755 = vcmask 1047556
        %v756 = vsel %vm755, %v754, %v743
        %v757 = vrot.slane %v743, 4
        %v758 = vsel %vm755, %v749, %v757
        %v760 = vunpack.c.l.s4 1983009808
        %v761 = vunpack.c.0.s8 %v760
        %v762 = vperm.slane %v756, %v761
        %v764 = vunpack.c.l.s4 1983009808
        %v765 = vunpack.c.0.s8 %v764
        %v766 = vperm.slane %v758, %v765
        %v767 = vrot.slane %v752, 4
        %v768 = vsel %vm755, %v767, %v746
        %v769 = vrot.slane %v746, 4
        %v770 = vsel %vm755, %v752, %v769
        %v772 = vunpack.c.l.s4 1983009808
        %v773 = vunpack.c.0.s8 %v772
        %v774 = vperm.slane %v768, %v773
        %v776 = vunpack.c.l.s4 1983009808
        %v777 = vunpack.c.0.s8 %v776
        %v778 = vperm.slane %v770, %v777
        %v779 = vrot.slane %v774, 4
        %v780 = vsel %vm755, %v779, %v762
        %v781 = vrot.slane %v762, 4
        %v782 = vsel %vm755, %v774, %v781
        %v784 = vunpack.c.l.s4 1934713408
        %v785 = vunpack.c.0.s8 %v784
        %v786 = vperm.slane %v780, %v785
        %v788 = vunpack.c.l.s4 1934713408
        %v789 = vunpack.c.0.s8 %v788
        %v790 = vperm.slane %v782, %v789
        %v791 = vrot.slane %v778, 4
        %v792 = vsel %vm755, %v791, %v766
        %v793 = vrot.slane %v766, 4
        %v794 = vsel %vm755, %v778, %v793
        %v796 = vunpack.c.l.s4 1934713408
        %v797 = vunpack.c.0.s8 %v796
        %v798 = vperm.slane %v792, %v797
        %v800 = vunpack.c.l.s4 1934713408
        %v801 = vunpack.c.0.s8 %v800
        %v802 = vperm.slane %v794, %v801
        %v803 = vrot.slane %v786, 4
        %v804 = vsel %vm755, 0.0, %v803
        %v805 = vrot.slane %v790, 4
        %v806 = vsel %vm755, 0.0, %v805
        %v807 = vrot.slane %v798, 4
        %v808 = vsel %vm755, 0.0, %v807
        %v809 = vrot.slane %v802, 4
        %v810 = vsel %vm755, 0.0, %v809
        %v811 = vsel %vm755, %v805, %v786
        %v813 = vunpack.c.l.s4 1983009808
        %v814 = vunpack.c.0.s8 %v813
        %v815 = vperm.slane %v811, %v814
        %v816 = vrot.slane %v806, 4
        %v817 = vsel %vm755, %v816, %v804
        %v819 = vunpack.c.l.s4 1983009808
        %v820 = vunpack.c.0.s8 %v819
        %v821 = vperm.slane %v817, %v820
        %v822 = vsel %vm755, %v809, %v798
        %v824 = vunpack.c.l.s4 1983009808
        %v825 = vunpack.c.0.s8 %v824
        %v826 = vperm.slane %v822, %v825
        %v827 = vrot.slane %v810, 4
        %v828 = vsel %vm755, %v827, %v808
        %v830 = vunpack.c.l.s4 1983009808
        %v831 = vunpack.c.0.s8 %v830
        %v832 = vperm.slane %v828, %v831
        %v833 = vrot.slane %v821, 4
        %v834 = vsel %vm755, %v833, %v815
        %v835 = vrot.slane %v815, 4
        %v836 = vsel %vm755, %v821, %v835
        %v838 = vunpack.c.l.s4 1934713408
        %v839 = vunpack.c.0.s8 %v838
        %v840 = vperm.slane %v834, %v839
        %v842 = vunpack.c.l.s4 1934713408
        %v843 = vunpack.c.0.s8 %v842
        %v844 = vperm.slane %v836, %v843
        %v845 = vrot.slane %v832, 4
        %v846 = vsel %vm755, %v845, %v826
        %v847 = vrot.slane %v826, 4
        %v848 = vsel %vm755, %v832, %v847
        %v850 = vunpack.c.l.s4 1934713408
        %v851 = vunpack.c.0.s8 %v850
        %v852 = vperm.slane %v846, %v851
        %v854 = vunpack.c.l.s4 1934713408
        %v855 = vunpack.c.0.s8 %v854
        %v856 = vperm.slane %v848, %v855
        %v857 = vrot.slane %v852, 4
        %v858 = vsel %vm755, %v857, %v840
        %v859 = vrot.slane %v840, 4
        %v860 = vsel %vm755, %v852, %v859
        %v861 = vrot.slane %v856, 4
        %v862 = vsel %vm755, %v861, %v844
        %v863 = vrot.slane %v844, 4
        %v864 = vsel %vm755, %v856, %v863
        %v865 = vpack.c.bf16 %v858, %v858
        %v866 = vpack.c.bf16 %v860, %v860
        %v867 = vpack.c.bf16 %v862, %v862
        %v868 = vpack.c.bf16 %v864, %v864
        %vm869 = vcmask 60416
        %870 = vst.msk [vmem:[#allocation4] sm:$0xf] %vm869, %v865
        %871 = vst.msk [vmem:[#allocation4 + $0x4] sm:$0xf] %vm869, %v866
        %872 = vst.msk [vmem:[#allocation4 + $0x8] sm:$0xf] %vm869, %v867
        %873 = vst.msk [vmem:[#allocation4 + $0xc] sm:$0xf] %vm869, %v868
        %v874 = vld [vmem:[#allocation4] sm:$0xf]
        %v875 = vld [vmem:[#allocation4 + $0x4] sm:$0xf]
        %v876 = vld [vmem:[#allocation4 + $0x8] sm:$0xf]
        %v877 = vld [vmem:[#allocation4 + $0xc] sm:$0xf]
        %v878 = vld [vmem:[#allocation2] sm:$0xf]
        %v879 = vld [vmem:[#allocation2 + $0x4] sm:$0xf]
        %v880 = vld [vmem:[#allocation2 + $0x8] sm:$0xf]
        %v881 = vld [vmem:[#allocation2 + $0xc] sm:$0xf]
        %v882 = vld [vmem:[#allocation3] sm:$0xf]
        %v883 = vld [vmem:[#allocation3 + $0x4] sm:$0xf]
        %v884 = vld [vmem:[#allocation3 + $0x8] sm:$0xf]
        %v885 = vld [vmem:[#allocation3 + $0xc] sm:$0xf]
        %vm886 = vcmask 64512
        %v888 = vsel %vm886, %v874, 0
        %vm890 = vcmask 1043456
        %v892 = vsel %vm890, %v878, 0
        %894 = vmatpush.bf16.msra.mxu0 0
        %895 = vmatpush.bf16.msra.mxu0 0
        %896 = vmatpush.bf16.msra.mxu0 0
        %897 = vmatpush.bf16.msra.mxu0 0
        %898 = vmatpush.bf16.msra.mxu0 0
        %899 = vmatpush.bf16.msra.mxu0 0
        %900 = vmatpush.bf16.msra.mxu0 0
        %901 = vmatpush.bf16.msra.mxu0 %v892
        %902 = vmatmul.bf16.gmra.mxu0 %v888
        %v903 = vpop.f32.mrf.mxu0
        %v904 = vadd.f32 0.0, %v903
        %v905 = vpop.f32.mrf.mxu0
        %906 = vdwg.mxu0
        %v908 = vsel %vm886, %v875, 0
        %v911 = vsel %vm890, %v879, 0
        %913 = vmatpush.bf16.msra.mxu0 0
        %914 = vmatpush.bf16.msra.mxu0 0
        %915 = vmatpush.bf16.msra.mxu0 0
        %916 = vmatpush.bf16.msra.mxu0 0
        %917 = vmatpush.bf16.msra.mxu0 0
        %918 = vmatpush.bf16.msra.mxu0 0
        %919 = vmatpush.bf16.msra.mxu0 0
        %920 = vmatpush.bf16.msra.mxu0 %v911
        %921 = vmatmul.bf16.gmra.mxu0 %v908
        %v922 = vpop.f32.mrf.mxu0
        %v923 = vadd.f32 0.0, %v922
        %v924 = vpop.f32.mrf.mxu0
        %925 = vdwg.mxu0
        %v927 = vsel %vm886, %v876, 0
        %v930 = vsel %vm890, %v880, 0
        %932 = vmatpush.bf16.msra.mxu0 0
        %933 = vmatpush.bf16.msra.mxu0 0
        %934 = vmatpush.bf16.msra.mxu0 0
        %935 = vmatpush.bf16.msra.mxu0 0
        %936 = vmatpush.bf16.msra.mxu0 0
        %937 = vmatpush.bf16.msra.mxu0 0
        %938 = vmatpush.bf16.msra.mxu0 0
        %939 = vmatpush.bf16.msra.mxu0 %v930
        %940 = vmatmul.bf16.gmra.mxu0 %v927
        %v941 = vpop.f32.mrf.mxu0
        %v942 = vadd.f32 0.0, %v941
        %v943 = vpop.f32.mrf.mxu0
        %944 = vdwg.mxu0
        %v946 = vsel %vm886, %v877, 0
        %v949 = vsel %vm890, %v881, 0
        %951 = vmatpush.bf16.msra.mxu0 0
        %952 = vmatpush.bf16.msra.mxu0 0
        %953 = vmatpush.bf16.msra.mxu0 0
        %954 = vmatpush.bf16.msra.mxu0 0
        %955 = vmatpush.bf16.msra.mxu0 0
        %956 = vmatpush.bf16.msra.mxu0 0
        %957 = vmatpush.bf16.msra.mxu0 0
        %958 = vmatpush.bf16.msra.mxu0 %v949
        %959 = vmatmul.bf16.gmra.mxu0 %v946
        %v960 = vpop.f32.mrf.mxu0
        %v961 = vadd.f32 0.0, %v960
        %v962 = vpop.f32.mrf.mxu0
        %963 = vdwg.mxu0
        %v964 = vsel %vm886, %v904, -inf
        %965 = vmax.xlane.f32.xlu0 %v964
        %v966 = vpop.xlane.xlu0 %965
        %v967 = vsel %vm886, %v923, -inf
        %968 = vmax.xlane.f32.xlu0 %v967
        %v969 = vpop.xlane.xlu0 %968
        %v970 = vsel %vm886, %v942, -inf
        %971 = vmax.xlane.f32.xlu0 %v970
        %v972 = vpop.xlane.xlu0 %971
        %v973 = vsel %vm886, %v961, -inf
        %974 = vmax.xlane.f32.xlu0 %v973
        %v975 = vpop.xlane.xlu0 %974
        %v976 = vsub.f32 %v904, %v966
        %v977 = vsub.f32 %v923, %v969
        %v978 = vsub.f32 %v942, %v972
        %v979 = vsub.f32 %v961, %v975
        %v980 = vpow.pop %v976
        %v981 = vpow.pop %v977
        %v982 = vpow.pop %v978
        %v983 = vpow.pop %v979
        %v984 = vsel %vm886, %v980, 0.0
        %985 = vadd.xlane.f32.xlu0 %v984
        %v986 = vpop.xlane.xlu0 %985
        %v987 = vsel %vm886, %v981, 0.0
        %988 = vadd.xlane.f32.xlu0 %v987
        %v989 = vpop.xlane.xlu0 %988
        %v990 = vsel %vm886, %v982, 0.0
        %991 = vadd.xlane.f32.xlu0 %v990
        %v992 = vpop.xlane.xlu0 %991
        %v993 = vsel %vm886, %v983, 0.0
        %994 = vadd.xlane.f32.xlu0 %v993
        %v995 = vpop.xlane.xlu0 %994
        %v996 = vpack.c.bf16 %v980, %v980
        %v997 = vpack.c.bf16 %v981, %v981
        %v998 = vpack.c.bf16 %v982, %v982
        %v999 = vpack.c.bf16 %v983, %v983
        %v1001 = vsel %vm886, %v996, 0
        %v1004 = vsel %vm886, %v882, 0
        %1006 = vmatpush.bf16.xpose.msra.mxu0 0
        %1007 = vmatpush.bf16.xpose.msra.mxu0 0
        %1008 = vmatpush.bf16.xpose.msra.mxu0 0
        %1009 = vmatpush.bf16.xpose.msra.mxu0 0
        %1010 = vmatpush.bf16.xpose.msra.mxu0 0
        %1011 = vmatpush.bf16.xpose.msra.mxu0 0
        %1012 = vmatpush.bf16.xpose.msra.mxu0 0
        %1013 = vmatpush.bf16.xpose.msra.mxu0 %v1004
        %1014 = vmatmul.bf16.gmra.mxu0 %v1001
        %v1015 = vpop.f32.mrf.mxu0
        %v1016 = vadd.f32 0.0, %v1015
        %v1017 = vpop.f32.mrf.mxu0
        %1018 = vdwg.mxu0
        %v1020 = vsel %vm886, %v997, 0
        %v1023 = vsel %vm886, %v883, 0
        %1025 = vmatpush.bf16.xpose.msra.mxu0 0
        %1026 = vmatpush.bf16.xpose.msra.mxu0 0
        %1027 = vmatpush.bf16.xpose.msra.mxu0 0
        %1028 = vmatpush.bf16.xpose.msra.mxu0 0
        %1029 = vmatpush.bf16.xpose.msra.mxu0 0
        %1030 = vmatpush.bf16.xpose.msra.mxu0 0
        %1031 = vmatpush.bf16.xpose.msra.mxu0 0
        %1032 = vmatpush.bf16.xpose.msra.mxu0 %v1023
        %1033 = vmatmul.bf16.gmra.mxu0 %v1020
        %v1034 = vpop.f32.mrf.mxu0
        %v1035 = vadd.f32 0.0, %v1034
        %v1036 = vpop.f32.mrf.mxu0
        %1037 = vdwg.mxu0
        %v1039 = vsel %vm886, %v998, 0
        %v1042 = vsel %vm886, %v884, 0
        %1044 = vmatpush.bf16.xpose.msra.mxu0 0
        %1045 = vmatpush.bf16.xpose.msra.mxu0 0
        %1046 = vmatpush.bf16.xpose.msra.mxu0 0
        %1047 = vmatpush.bf16.xpose.msra.mxu0 0
        %1048 = vmatpush.bf16.xpose.msra.mxu0 0
        %1049 = vmatpush.bf16.xpose.msra.mxu0 0
        %1050 = vmatpush.bf16.xpose.msra.mxu0 0
        %1051 = vmatpush.bf16.xpose.msra.mxu0 %v1042
        %1052 = vmatmul.bf16.gmra.mxu0 %v1039
        %v1053 = vpop.f32.mrf.mxu0
        %v1054 = vadd.f32 0.0, %v1053
        %v1055 = vpop.f32.mrf.mxu0
        %1056 = vdwg.mxu0
        %v1058 = vsel %vm886, %v999, 0
        %v1061 = vsel %vm886, %v885, 0
        %1063 = vmatpush.bf16.xpose.msra.mxu0 0
        %1064 = vmatpush.bf16.xpose.msra.mxu0 0
        %1065 = vmatpush.bf16.xpose.msra.mxu0 0
        %1066 = vmatpush.bf16.xpose.msra.mxu0 0
        %1067 = vmatpush.bf16.xpose.msra.mxu0 0
        %1068 = vmatpush.bf16.xpose.msra.mxu0 0
        %1069 = vmatpush.bf16.xpose.msra.mxu0 0
        %1070 = vmatpush.bf16.xpose.msra.mxu0 %v1061
        %1071 = vmatmul.bf16.gmra.mxu0 %v1058
        %v1072 = vpop.f32.mrf.mxu0
        %v1073 = vadd.f32 0.0, %v1072
        %v1074 = vpop.f32.mrf.mxu0
        %1075 = vdwg.mxu0
        %v1076 = vrcp.pop %v986
        %v1077 = vrcp.pop %v989
        %v1078 = vrcp.pop %v992
        %v1079 = vrcp.pop %v995
        %v1080 = vmul.f32 %v1016, %v1076
        %v1081 = vmul.f32 %v1035, %v1077
        %v1082 = vmul.f32 %v1054, %v1078
        %v1083 = vmul.f32 %v1073, %v1079
        %s1084 = smul.u32 0, 8
        %s1085 = scalar_lea.vmem [#allocation5], %s1084
        %1086 = vst.msk [vmem:[%s1085] sm:$0xff] %vm886, %v1080
        %1087 = vst.msk [vmem:[%s1085 + $0x8] sm:$0xff] %vm886, %v1081
        %1088 = vst.msk [vmem:[%s1085 + $0x10] sm:$0xff] %vm886, %v1082
        %1089 = vst.msk [vmem:[%s1085 + $0x18] sm:$0xff] %vm886, %v1083
        %v1090 = vld [vmem:[#allocation5] sm:$0xff]
        %v1091 = vld [vmem:[#allocation5 + $0x8] sm:$0xff]
        %v1092 = vld [vmem:[#allocation5 + $0x10] sm:$0xff]
        %v1093 = vld [vmem:[#allocation5 + $0x18] sm:$0xff]
        %v1094 = vrot.slane %v1092, 4
        %v1095 = vsel %vm755, %v1094, %v1090
        %v1096 = vrot.slane %v1090, 4
        %v1097 = vsel %vm755, %v1092, %v1096
        %v1099 = vunpack.c.l.s4 1983009808
        %v1100 = vunpack.c.0.s8 %v1099
        %v1101 = vperm.slane %v1095, %v1100
        %v1103 = vunpack.c.l.s4 1983009808
        %v1104 = vunpack.c.0.s8 %v1103
        %v1105 = vperm.slane %v1097, %v1104
        %v1106 = vrot.slane %v1093, 4
        %v1107 = vsel %vm755, %v1106, %v1091
        %v1108 = vrot.slane %v1091, 4
        %v1109 = vsel %vm755, %v1093, %v1108
        %v1111 = vunpack.c.l.s4 1983009808
        %v1112 = vunpack.c.0.s8 %v1111
        %v1113 = vperm.slane %v1107, %v1112
        %v1115 = vunpack.c.l.s4 1983009808
        %v1116 = vunpack.c.0.s8 %v1115
        %v1117 = vperm.slane %v1109, %v1116
        %v1118 = vrot.slane %v1113, 4
        %v1119 = vsel %vm755, %v1118, %v1101
        %v1120 = vrot.slane %v1101, 4
        %v1121 = vsel %vm755, %v1113, %v1120
        %v1123 = vunpack.c.l.s4 1934713408
        %v1124 = vunpack.c.0.s8 %v1123
        %v1125 = vperm.slane %v1119, %v1124
        %v1127 = vunpack.c.l.s4 1934713408
        %v1128 = vunpack.c.0.s8 %v1127
        %v1129 = vperm.slane %v1121, %v1128
        %v1130 = vrot.slane %v1117, 4
        %v1131 = vsel %vm755, %v1130, %v1105
        %v1132 = vrot.slane %v1105, 4
        %v1133 = vsel %vm755, %v1117, %v1132
        %v1135 = vunpack.c.l.s4 1934713408
        %v1136 = vunpack.c.0.s8 %v1135
        %v1137 = vperm.slane %v1131, %v1136
        %v1139 = vunpack.c.l.s4 1934713408
        %v1140 = vunpack.c.0.s8 %v1139
        %v1141 = vperm.slane %v1133, %v1140
        %v1142 = vrot.slane %v1125, 4
        %v1143 = vsel %vm755, 0.0, %v1142
        %v1144 = vrot.slane %v1129, 4
        %v1145 = vsel %vm755, 0.0, %v1144
        %v1146 = vrot.slane %v1137, 4
        %v1147 = vsel %vm755, 0.0, %v1146
        %v1148 = vrot.slane %v1141, 4
        %v1149 = vsel %vm755, 0.0, %v1148
        %v1150 = vsel %vm755, %v1144, %v1125
        %v1152 = vunpack.c.l.s4 1983009808
        %v1153 = vunpack.c.0.s8 %v1152
        %v1154 = vperm.slane %v1150, %v1153
        %v1155 = vrot.slane %v1145, 4
        %v1156 = vsel %vm755, %v1155, %v1143
        %v1158 = vunpack.c.l.s4 1983009808
        %v1159 = vunpack.c.0.s8 %v1158
        %v1160 = vperm.slane %v1156, %v1159
        %v1161 = vsel %vm755, %v1148, %v1137
        %v1163 = vunpack.c.l.s4 1983009808
        %v1164 = vunpack.c.0.s8 %v1163
        %v1165 = vperm.slane %v1161, %v1164
        %v1166 = vrot.slane %v1149, 4
        %v1167 = vsel %vm755, %v1166, %v1147
        %v1169 = vunpack.c.l.s4 1983009808
        %v1170 = vunpack.c.0.s8 %v1169
        %v1171 = vperm.slane %v1167, %v1170
        %v1172 = vrot.slane %v1160, 4
        %v1173 = vsel %vm755, %v1172, %v1154
        %v1174 = vrot.slane %v1154, 4
        %v1175 = vsel %vm755, %v1160, %v1174
        %v1177 = vunpack.c.l.s4 1934713408
        %v1178 = vunpack.c.0.s8 %v1177
        %v1179 = vperm.slane %v1173, %v1178
        %v1181 = vunpack.c.l.s4 1934713408
        %v1182 = vunpack.c.0.s8 %v1181
        %v1183 = vperm.slane %v1175, %v1182
        %v1184 = vrot.slane %v1171, 4
        %v1185 = vsel %vm755, %v1184, %v1165
        %v1186 = vrot.slane %v1165, 4
        %v1187 = vsel %vm755, %v1171, %v1186
        %v1189 = vunpack.c.l.s4 1934713408
        %v1190 = vunpack.c.0.s8 %v1189
        %v1191 = vperm.slane %v1185, %v1190
        %v1193 = vunpack.c.l.s4 1934713408
        %v1194 = vunpack.c.0.s8 %v1193
        %v1195 = vperm.slane %v1187, %v1194
        %v1196 = vrot.slane %v1191, 4
        %v1197 = vsel %vm755, %v1196, %v1179
        %v1198 = vrot.slane %v1179, 4
        %v1199 = vsel %vm755, %v1191, %v1198
        %v1200 = vrot.slane %v1195, 4
        %v1201 = vsel %vm755, %v1200, %v1183
        %v1202 = vrot.slane %v1183, 4
        %v1203 = vsel %vm755, %v1195, %v1202
        %1205 = vrot.lane.b32.xlu0 %v1199, 8
        %v1206 = vpop.permute.xlu0 %1205
        %1209 = vrot.lane.b32.xlu0 %v1201, 16
        %v1210 = vpop.permute.xlu0 %1209
        %1213 = vrot.lane.b32.xlu0 %v1203, 24
        %v1214 = vpop.permute.xlu0 %1213
        %v1216 = vsel %vm886, %v1197, %v1206
        %vm1217 = vcmask 130048
        %v1218 = vsel %vm1217, %v1216, %v1210
        %vm1219 = vcmask 195584
        %v1220 = vsel %vm1219, %v1218, %v1214
        %v1221 = vpack.c.bf16 %v1220, %v1220
        %v1222 = vld [vmem:[%s6] sm:$0xf]
        %v1223 = vld [vmem:[%s6 + $0x4] sm:$0xf]
        %v1224 = vld [vmem:[%s6 + $0x8] sm:$0xf]
        %v1225 = vld [vmem:[%s6 + $0xc] sm:$0xf]
        %v1226 = vld [vmem:[%s7] sm:$0x1]
        %v1228 = vperm.slane %v1226, 0
        %v1234 = vunpack.c.l.b16 %v1222
        %v1235 = vunpack.c.l.b16 %v1223
        %v1236 = vunpack.c.l.b16 %v1224
        %v1237 = vunpack.c.l.b16 %v1225
        %v1238 = vpack.c.b16 %v1235, %v1234
        %v1239 = vpack.c.b16 %v1237, %v1236
        %v1243 = vsel %vm726, %v1221, 0
        %1245 = vmatpush.bf16.msra.mxu0 0
        %1246 = vmatpush.bf16.msra.mxu0 0
        %1247 = vmatpush.bf16.msra.mxu0 0
        %1248 = vmatpush.bf16.msra.mxu0 0
        %1249 = vmatpush.bf16.msra.mxu0 0
        %1250 = vmatpush.bf16.msra.mxu0 0
        %1251 = vmatpush.bf16.msra.mxu0 %v1239
        %1252 = vmatpush.bf16.msra.mxu0 %v1238
        %1253 = vmatmul.bf16.gmra.mxu0 %v1243
        %v1254 = vpop.f32.mrf.mxu0
        %v1255 = vadd.f32 %v1228, %v1254
        %v1256 = vpop.f32.mrf.mxu0
        %1257 = vdwg.mxu0
        %v1258 = vadd.f32 %v704, %v1255
        %v1259 = vld [vmem:[%s12] sm:$0x1]
        %v1260 = vld [vmem:[%s13] sm:$0x1]
        %v1261 = vsel %vm726, %v1258, 0.0
        %1262 = vadd.xlane.f32.xlu0 %v1261
        %v1263 = vpop.xlane.xlu0 %1262
        %v1264 = vrcp.pop 32.0
        %v1265 = vmul.f32 32.0, %v1264
        %v1266 = vsub.f32 1.0, %v1265
        %v1267 = vmul.f32 %v1264, %v1266
        %v1268 = vadd.f32 %v1264, %v1267
        %vm1269 = vweird.f32 %v1264
        %v1270 = vsel %vm1269, %v1264, %v1268
        %v1271 = vmul.f32 %v1263, %v1270
        %v1272 = vsub.f32 %v1258, %v1271
        %v1273 = vmul.f32 %v1272, %v1272
        %v1274 = vsel %vm726, %v1273, 0.0
        %1275 = vadd.xlane.f32.xlu0 %v1274
        %v1276 = vpop.xlane.xlu0 %1275
        %v1277 = vmul.f32 %v1276, %v1270
        %v1278 = vadd.f32 %v1277, 1e-05
        %v1279 = vrsqrt.pop %v1278
        %v1280 = vmul.f32 %v1279, %v1278
        %v1281 = vmul.f32 %v1280, %v1279
        %v1282 = vmul.f32 0.5, %v1281
        %v1283 = vsub.f32 1.5, %v1282
        %v1284 = vmul.f32 %v1279, %v1283
        %vm1285 = vweird.f32 %v1278
        %vm1286 = vweird.f32 %v1279
        %vm1287 = vmor %vm1285, %vm1286
        %v1288 = vsel %vm1287, %v1279, %v1284
        %v1289 = vmul.f32 %v1272, %v1288
        %v1291 = vperm.slane %v1259, 0
        %v1293 = vmul.f32 %v1289, %v1291
        %v1295 = vperm.slane %v1260, 0
        %v1297 = vadd.f32 %v1293, %v1295
        %v1298 = vpack.c.bf16 %v1297, %v1297
        %v1299 = vld [vmem:[%s8] sm:$0xf]
        %v1300 = vld [vmem:[%s8 + $0x4] sm:$0xf]
        %v1301 = vld [vmem:[%s8 + $0x8] sm:$0xf]
        %v1302 = vld [vmem:[%s8 + $0xc] sm:$0xf]
        %v1303 = vld [vmem:[%s9] sm:$0x1]
        %v1305 = vperm.slane %v1303, 0
        %v1311 = vunpack.c.l.b16 %v1299
        %v1312 = vunpack.c.l.b16 %v1300
        %v1313 = vunpack.c.l.b16 %v1301
        %v1314 = vunpack.c.l.b16 %v1302
        %v1315 = vpack.c.b16 %v1312, %v1311
        %v1316 = vpack.c.b16 %v1314, %v1313
        %v1320 = vsel %vm726, %v1298, 0
        %1322 = vmatpush.bf16.msra.mxu0 0
        %1323 = vmatpush.bf16.msra.mxu0 0
        %1324 = vmatpush.bf16.msra.mxu0 0
        %1325 = vmatpush.bf16.msra.mxu0 0
        %1326 = vmatpush.bf16.msra.mxu0 0
        %1327 = vmatpush.bf16.msra.mxu0 0
        %1328 = vmatpush.bf16.msra.mxu0 %v1316
        %1329 = vmatpush.bf16.msra.mxu0 %v1315
        %1330 = vmatmul.bf16.gmra.mxu0 %v1320
        %v1331 = vpop.f32.mrf.mxu0
        %v1332 = vadd.f32 %v1305, %v1331
        %v1333 = vpop.f32.mrf.mxu0
        %1334 = vdwg.mxu0
        %v1335 = vmax.f32 %v1332, 0.0
        %v1336 = vpack.c.bf16 %v1335, %v1335
        %v1337 = vld [vmem:[%s10] sm:$0xf]
        %v1338 = vld [vmem:[%s10 + $0x4] sm:$0xf]
        %v1339 = vld [vmem:[%s10 + $0x8] sm:$0xf]
        %v1340 = vld [vmem:[%s10 + $0xc] sm:$0xf]
        %v1341 = vld [vmem:[%s10 + $0x10] sm:$0xf]
        %v1342 = vld [vmem:[%s10 + $0x14] sm:$0xf]
        %v1343 = vld [vmem:[%s10 + $0x18] sm:$0xf]
        %v1344 = vld [vmem:[%s10 + $0x1c] sm:$0xf]
        %v1345 = vld [vmem:[%s11] sm:$0x1]
        %v1347 = vperm.slane %v1345, 0
        %v1357 = vunpack.c.l.b16 %v1337
        %v1358 = vunpack.c.l.b16 %v1338
        %v1359 = vunpack.c.l.b16 %v1339
        %v1360 = vunpack.c.l.b16 %v1340
        %v1361 = vunpack.c.l.b16 %v1341
        %v1362 = vunpack.c.l.b16 %v1342
        %v1363 = vunpack.c.l.b16 %v1343
        %v1364 = vunpack.c.l.b16 %v1344
        %v1365 = vpack.c.b16 %v1358, %v1357
        %v1366 = vpack.c.b16 %v1360, %v1359
        %v1367 = vpack.c.b16 %v1362, %v1361
        %v1368 = vpack.c.b16 %v1364, %v1363
        %vm1373 = vcmask 523264
        %v1375 = vsel %vm1373, %v1336, 0
        %1377 = vmatpush.bf16.msra.mxu0 0
        %1378 = vmatpush.bf16.msra.mxu0 0
        %1379 = vmatpush.bf16.msra.mxu0 0
        %1380 = vmatpush.bf16.msra.mxu0 0
        %1381 = vmatpush.bf16.msra.mxu0 %v1368
        %1382 = vmatpush.bf16.msra.mxu0 %v1367
        %1383 = vmatpush.bf16.msra.mxu0 %v1366
        %1384 = vmatpush.bf16.msra.mxu0 %v1365
        %1385 = vmatmul.bf16.gmra.mxu0 %v1375
        %v1386 = vpop.f32.mrf.mxu0
        %v1387 = vadd.f32 %v1347, %v1386
        %v1388 = vpop.f32.mrf.mxu0
        %1389 = vdwg.mxu0
        %v1390 = vadd.f32 %v1297, %v1387
        %v1391 = vld [vmem:[%s14] sm:$0x1]
        %v1392 = vld [vmem:[%s15] sm:$0x1]
        %v1393 = vsel %vm726, %v1390, 0.0
        %1394 = vadd.xlane.f32.xlu0 %v1393
        %v1395 = vpop.xlane.xlu0 %1394
        %v1396 = vmul.f32 %v1395, %v1270
        %v1397 = vsub.f32 %v1390, %v1396
        %v1398 = vmul.f32 %v1397, %v1397
        %v1399 = vsel %vm726, %v1398, 0.0
        %1400 = vadd.xlane.f32.xlu0 %v1399
        %v1401 = vpop.xlane.xlu0 %1400
        %v1402 = vmul.f32 %v1401, %v1270
        %v1403 = vadd.f32 %v1402, 1e-05
        %v1404 = vrsqrt.pop %v1403
        %v1405 = vmul.f32 %v1404, %v1403
        %v1406 = vmul.f32 %v1405, %v1404
        %v1407 = vmul.f32 0.5, %v1406
        %v1408 = vsub.f32 1.5, %v1407
        %v1409 = vmul.f32 %v1404, %v1408
        %vm1410 = vweird.f32 %v1403
        %vm1411 = vweird.f32 %v1404
        %vm1412 = vmor %vm1410, %vm1411
        %v1413 = vsel %vm1412, %v1404, %v1409
        %v1414 = vmul.f32 %v1397, %v1413
        %v1416 = vperm.slane %v1391, 0
        %v1418 = vmul.f32 %v1414, %v1416
        %v1420 = vperm.slane %v1392, 0
        %v1422 = vadd.f32 %v1418, %v1420
        %1423 = vst.msk [vmem:[%s547] sm:$0xff] %vm726, %v1422
        %s1424 = sand.u32 %s400, 1
        %s1425 = scalar_lea.sflag [#allocation7], %s1424
        %s1426 = sand.u32 %s400, 1
        %s1427 = smul.addr %s1426, 8
        %s1428 = scalar_lea.vmem [#allocation6], %s1427
        // Predicated region
        $region89: #{tpu_custom_call.1} parent=83 // pred_check
          %p1429 = pneg %p410
        $region90: #{tpu_custom_call.1} parent=83 // pred_check_branch
          %1431 = sbr.rel (%p1429) target = $region92
        $region91: #{tpu_custom_call.1} parent=83 // pred_region
          %1433 = vsyncadd %s1425, 0
          %s1434 = sadd.s32 %s35, %s34
          %s1435 = smul.addr %s1434, 8
          %s1436 = scalar_lea.hbm %s16, %s1435
          %s1438 = sshll.u32 %s1428, 4
          %s1439 = int_to_ptr.vmem [resolvable:$true] %s1438
          %s1440 = sshll.u32 %s1436, 4
          %s1441 = int_to_ptr.hbm [resolvable:$true] %s1440
          %1443 = dma.vmem_to_hbm [thread:$0]  %s1439, 128, %s1441, %s1425
        $region92: #{tpu_custom_call.1} parent=83 // pred_fallthru
          _
      $region84: #{tpu_custom_call.1} parent=5 // pred_fallthru
        _
      %p1444 = scmp.le.s32.totalorder 2, %s25
      // Predicated region
      $region93: #{tpu_custom_call.1} parent=5 // pred_check
        %p1445 = pneg %p1444
      $region94: #{tpu_custom_call.1} parent=5 // pred_check_branch
        %1447 = sbr.rel (%p1445) target = $region96
      $region95: #{tpu_custom_call.1} parent=5 // pred_region
        %s1448 = ssub.s32 %s25, 2
        // Predicated region
        $region97: #{tpu_custom_call.1} parent=95 // pred_check
          %p1449 = pneg %p416
        $region98: #{tpu_custom_call.1} parent=95 // pred_check_branch
          %1451 = sbr.rel (%p1449) target = $region100
        $region99: #{tpu_custom_call.1} parent=95 // pred_region
          %s1452 = sand.u32 %s401, 1
          %s1453 = scalar_lea.sflag [#allocation7], %s1452
          %s1454 = sand.u32 %s401, 1
          %s1455 = smul.addr %s1454, 8
          %s1456 = scalar_lea.vmem [#allocation6], %s1455
          %1458 = dma.done %s1453, 128
        $region100: #{tpu_custom_call.1} parent=95 // pred_fallthru
          _
      $region96: #{tpu_custom_call.1} parent=5 // pred_fallthru
        _
    $region6: #{tpu_custom_call.1} parent=1 // loop_footer
      %s29 = sadd.s32 1, %s25
    $region7: #{tpu_custom_call.1} parent=1 // loop_footer_branch
      %24 = sbr.rel target = $region3
    $region8: #{tpu_custom_call.1} parent=1 // loop_exit
      _
    %1459 = vsyncpa [#allocation7], 1
    %s1460 = scalar_lea.sflag [#allocation7], 1
    %1461 = vsyncpa %s1460, 1

// kernel: tpu_custom_call.1
$region0: #{tpu_custom_call.1}
  #allocation0 [shape = 'u32[]', space=smem, size = 0x4, offset = 0x4, fixed_abs, tag = 'smem constant byte address 0x4 - core index']
  #allocation1 [shape = 'u32[72,128]{1,0:T(1,128)}', space=vmem, size = 0x9000, scoped, tag = 'internal scratch']
  #allocation2 [shape = 'bf16[4,8,8]{2,1,0:T(8,128)(2,1)}', space=vmem, size = 0x2000, scoped, tag = 'scratch operand']
  #allocation3 [shape = 'bf16[4,8,8]{2,1,0:T(8,128)(2,1)}', space=vmem, size = 0x2000, scoped, tag = 'scratch operand']
  #allocation4 [shape = 'bf16[4,8,8]{2,1,0:T(8,128)(2,1)}', space=vmem, size = 0x2000, scoped, tag = 'scratch operand']
  #allocation5 [shape = 'f32[4,8,8]{2,1,0:T(8,128)}', space=vmem, size = 0x4000, scoped, tag = 'scratch operand']
  %s0 = inlined_call_operand.vmem [shape: f32[2,8,32], index: 0, kind: input, shape index: {}]
  %s1 = inlined_call_operand.vmem [shape: f32[2,8,32], index: 1, kind: input, shape index: {}]
  %s2 = inlined_call_operand.vmem [shape: bf16[32,32], index: 2, kind: input, shape index: {}]
  %s3 = inlined_call_operand.vmem [shape: f32[1,32], index: 3, kind: input, shape index: {}]
  %s4 = inlined_call_operand.vmem [shape: bf16[64,32], index: 4, kind: input, shape index: {}]
  %s5 = inlined_call_operand.vmem [shape: f32[64,1], index: 5, kind: input, shape index: {}]
  %s6 = inlined_call_operand.vmem [shape: bf16[32,32], index: 6, kind: input, shape index: {}]
  %s7 = inlined_call_operand.vmem [shape: f32[1,32], index: 7, kind: input, shape index: {}]
  %s8 = inlined_call_operand.vmem [shape: bf16[32,64], index: 8, kind: input, shape index: {}]
  %s9 = inlined_call_operand.vmem [shape: f32[1,64], index: 9, kind: input, shape index: {}]
  %s10 = inlined_call_operand.vmem [shape: bf16[64,32], index: 10, kind: input, shape index: {}]
  %s11 = inlined_call_operand.vmem [shape: f32[1,32], index: 11, kind: input, shape index: {}]
  %s12 = inlined_call_operand.vmem [shape: f32[1,32], index: 12, kind: input, shape index: {}]
  %s13 = inlined_call_operand.vmem [shape: f32[1,32], index: 13, kind: input, shape index: {}]
  %s14 = inlined_call_operand.vmem [shape: f32[1,32], index: 14, kind: input, shape index: {}]
  %s15 = inlined_call_operand.vmem [shape: f32[1,32], index: 15, kind: input, shape index: {}]
  %s16 = inlined_call_operand.hbm [shape: f32[2,8,32], index: 16, kind: output, shape index: {}]
  %s17 = sld [smem:[#allocation0]]
  $region101: #{tpu_custom_call.1} parent=0
    _
  %s19 = ssub.s32 1, %s17
  %s20 = scalar_select 0, %s19, %s17
  $region1: #{tpu_custom_call.1} parent=0
    #allocation6 [shape = 'u8[8192]{0}', space=vmem, size = 0x2000, scoped, tag = 'output window, operand 0']
    #allocation7 [shape = 's32[2]{0}', space=sflag, size = 0x8, scoped, tag = 'scoped memory for tpu_custom_call.1']
    %21 = vsyncpa [#allocation7], 0
    %s22 = scalar_lea.sflag [#allocation7], 1
    %23 = vsyncpa %s22, 0
    loop: start=0, step=1, limit=4
    $region2: #{tpu_custom_call.1} parent=1 // loop_pre_header
      _
    $region3: #{tpu_custom_call.1} parent=1 // loop_header
      %s25 = sphi 0, %s29
      %p26 = scmp.ge.s32.totalorder %s25, 4
      %s32 = sphi 0, %s44
      %s33 = sphi 0, %s40
      %s34 = sphi 0, %s32
      %s35 = sphi 0, %s33
      %s36 = sphi 0, %s34
      %s37 = sphi 0, %s35
      %s47 = sphi 0, %s49
      %s50 = sphi 0, %s47
      %s51 = sphi 0, %s50
      %s67 = sphi 0, %s51
      %s75 = sphi 0, %s77
      %s78 = sphi 0, %s75
      %s79 = sphi 0, %s78
      %s95 = sphi 0, %s79
      %s99 = sphi 0, %s99
      %s101 = sphi 0, %s99
      %s102 = sphi 0, %s101
      %s116 = sphi 0, %s102
      %s120 = sphi 0, %s120
      %s122 = sphi 0, %s120
      %s123 = sphi 0, %s122
      %s137 = sphi 0, %s123
      %s141 = sphi 0, %s141
      %s143 = sphi 0, %s141
      %s144 = sphi 0, %s143
      %s158 = sphi 0, %s144
      %s162 = sphi 0, %s162
      %s164 = sphi 0, %s162
      %s165 = sphi 0, %s164
      %s179 = sphi 0, %s165
      %s183 = sphi 0, %s183
      %s185 = sphi 0, %s183
      %s186 = sphi 0, %s185
      %s200 = sphi 0, %s186
      %s204 = sphi 0, %s204
      %s206 = sphi 0, %s204
      %s207 = sphi 0, %s206
      %s221 = sphi 0, %s207
      %s225 = sphi 0, %s225
      %s227 = sphi 0, %s225
      %s228 = sphi 0, %s227
      %s242 = sphi 0, %s228
      %s246 = sphi 0, %s246
      %s248 = sphi 0, %s246
      %s249 = sphi 0, %s248
      %s263 = sphi 0, %s249
      %s267 = sphi 0, %s267
      %s269 = sphi 0, %s267
      %s270 = sphi 0, %s269
      %s284 = sphi 0, %s270
      %s288 = sphi 0, %s288
      %s290 = sphi 0, %s288
      %s291 = sphi 0, %s290
      %s305 = sphi 0, %s291
      %s309 = sphi 0, %s309
      %s311 = sphi 0, %s309
      %s312 = sphi 0, %s311
      %s326 = sphi 0, %s312
      %s330 = sphi 0, %s330
      %s332 = sphi 0, %s330
      %s333 = sphi 0, %s332
      %s347 = sphi 0, %s333
      %s351 = sphi 0, %s351
      %s353 = sphi 0, %s351
      %s354 = sphi 0, %s353
      %s368 = sphi 0, %s354
      %s372 = sphi 0, %s372
      %s374 = sphi 0, %s372
      %s375 = sphi 0, %s374
      %s389 = sphi 0, %s375
      %s397 = sphi 0, %s399
      %s400 = sphi 0, %s397
      %s401 = sphi 0, %s400
      %s417 = sphi 0, %s401
    $region4: #{tpu_custom_call.1} parent=1 // loop_header_branch
      %28 = sbr.rel (%p26) target = $region8
    $region5: #{tpu_custom_call.1} parent=1 // loop_body
      %s30 = ssub.s32 %s25, 1
      %s31 = ssub.s32 %s25, 2
      %s38 = sadd.s32 1, %s33
      %p39 = scmp.ge.s32.totalorder %s38, 1
      %s40 = scalar_select %p39, 0, %s38
      %s41 = sadd.s32 1, %s32
      %s42 = scalar_select %p39, %s41, %s32
      %p43 = scmp.ge.s32.totalorder %s42, 2
      %s44 = scalar_select %p43, 0, %s42
      %s45 = ssub.s32 %s32, %s44
      %p46 = scmp.eq.s32.totalorder %s45, 0
      %s48 = sadd.s32 %s47, 1
      %s49 = scalar_select %p46, %s47, %s48
      %p52 = pneg %p46
      %p53 = scmp.eq.s32.totalorder %s25, 1
      %p54 = por %p52, %p53
      %p55 = scmp.ne.s32.totalorder %s47, %s50
      %p56 = scmp.eq.s32.totalorder %s25, 0
      %p57 = por %p55, %p56
      %p58 = scmp.ne.s32.totalorder %s47, %s50
      %p59 = scmp.eq.s32.totalorder %s30, 1
      %p60 = por %p58, %p59
      %p61 = scmp.ne.s32.totalorder %s50, %s51
      %p62 = scmp.eq.s32.totalorder %s30, 0
      %p63 = por %p61, %p62
      %p64 = scmp.ne.s32.totalorder %s50, %s51
      %p65 = scmp.eq.s32.totalorder %s31, 1
      %p66 = por %p64, %p65
      %p68 = scmp.ne.s32.totalorder %s51, %s67
      %p69 = scmp.eq.s32.totalorder %s31, 0
      %p70 = por %p68, %p69
      %s71 = ssub.s32 %s32, %s44
      %s72 = ssub.s32 %s33, %s40
      %s73 = sor.u32 %s71, %s72
      %p74 = scmp.eq.s32.totalorder %s73, 0
      %s76 = sadd.s32 %s75, 1
      %s77 = scalar_select %p74, %s75, %s76
      %p80 = pneg %p74
      %p81 = scmp.eq.s32.totalorder %s25, 1
      %p82 = por %p80, %p81
      %p83 = scmp.ne.s32.totalorder %s75, %s78
      %p84 = scmp.eq.s32.totalorder %s25, 0
      %p85 = por %p83, %p84
      %p86 = scmp.ne.s32.totalorder %s75, %s78
      %p87 = scmp.eq.s32.totalorder %s30, 1
      %p88 = por %p86, %p87
      %p89 = scmp.ne.s32.totalorder %s78, %s79
      %p90 = scmp.eq.s32.totalorder %s30, 0
      %p91 = por %p89, %p90
      %p92 = scmp.ne.s32.totalorder %s78, %s79
      %p93 = scmp.eq.s32.totalorder %s31, 1
      %p94 = por %p92, %p93
      %p96 = scmp.ne.s32.totalorder %s79, %s95
      %p97 = scmp.eq.s32.totalorder %s31, 0
      %p98 = por %p96, %p97
      %s100 = sadd.s32 %s99, 1
      %p103 = scmp.eq.s32.totalorder %s25, 1
      %p104 = scmp.ne.s32.totalorder %s99, %s101
      %p105 = scmp.eq.s32.totalorder %s25, 0
      %p106 = por %p104, %p105
      %p107 = scmp.ne.s32.totalorder %s99, %s101
      %p108 = scmp.eq.s32.totalorder %s30, 1
      %p109 = por %p107, %p108
      %p110 = scmp.ne.s32.totalorder %s101, %s102
      %p111 = scmp.eq.s32.totalorder %s30, 0
      %p112 = por %p110, %p111
      %p113 = scmp.ne.s32.totalorder %s101, %s102
      %p114 = scmp.eq.s32.totalorder %s31, 1
      %p115 = por %p113, %p114
      %p117 = scmp.ne.s32.totalorder %s102, %s116
      %p118 = scmp.eq.s32.totalorder %s31, 0
      %p119 = por %p117, %p118
      %s121 = sadd.s32 %s120, 1
      %p124 = scmp.eq.s32.totalorder %s25, 1
      %p125 = scmp.ne.s32.totalorder %s120, %s122
      %p126 = scmp.eq.s32.totalorder %s25, 0
      %p127 = por %p125, %p126
      %p128 = scmp.ne.s32.totalorder %s120, %s122
      %p129 = scmp.eq.s32.totalorder %s30, 1
      %p130 = por %p128, %p129
      %p131 = scmp.ne.s32.totalorder %s122, %s123
      %p132 = scmp.eq.s32.totalorder %s30, 0
      %p133 = por %p131, %p132
      %p134 = scmp.ne.s32.totalorder %s122, %s123
      %p135 = scmp.eq.s32.totalorder %s31, 1
      %p136 = por %p134, %p135
      %p138 = scmp.ne.s32.totalorder %s123, %s137
      %p139 = scmp.eq.s32.totalorder %s31, 0
      %p140 = por %p138, %p139
      %s142 = sadd.s32 %s141, 1
      %p145 = scmp.eq.s32.totalorder %s25, 1
      %p146 = scmp.ne.s32.totalorder %s141, %s143
      %p147 = scmp.eq.s32.totalorder %s25, 0
      %p148 = por %p146, %p147
      %p149 = scmp.ne.s32.totalorder %s141, %s143
      %p150 = scmp.eq.s32.totalorder %s30, 1
      %p151 = por %p149, %p150
      %p152 = scmp.ne.s32.totalorder %s143, %s144
      %p153 = scmp.eq.s32.totalorder %s30, 0
      %p154 = por %p152, %p153
      %p155 = scmp.ne.s32.totalorder %s143, %s144
      %p156 = scmp.eq.s32.totalorder %s31, 1
      %p157 = por %p155, %p156
      %p159 = scmp.ne.s32.totalorder %s144, %s158
      %p160 = scmp.eq.s32.totalorder %s31, 0
      %p161 = por %p159, %p160
      %s163 = sadd.s32 %s162, 1
      %p166 = scmp.eq.s32.totalorder %s25, 1
      %p167 = scmp.ne.s32.totalorder %s162, %s164
      %p168 = scmp.eq.s32.totalorder %s25, 0
      %p169 = por %p167, %p168
      %p170 = scmp.ne.s32.totalorder %s162, %s164
      %p171 = scmp.eq.s32.totalorder %s30, 1
      %p172 = por %p170, %p171
      %p173 = scmp.ne.s32.totalorder %s164, %s165
      %p174 = scmp.eq.s32.totalorder %s30, 0
      %p175 = por %p173, %p174
      %p176 = scmp.ne.s32.totalorder %s164, %s165
      %p177 = scmp.eq.s32.totalorder %s31, 1
      %p178 = por %p176, %p177
      %p180 = scmp.ne.s32.totalorder %s165, %s179
      %p181 = scmp.eq.s32.totalorder %s31, 0
      %p182 = por %p180, %p181
      %s184 = sadd.s32 %s183, 1
      %p187 = scmp.eq.s32.totalorder %s25, 1
      %p188 = scmp.ne.s32.totalorder %s183, %s185
      %p189 = scmp.eq.s32.totalorder %s25, 0
      %p190 = por %p188, %p189
      %p191 = scmp.ne.s32.totalorder %s183, %s185
      %p192 = scmp.eq.s32.totalorder %s30, 1
      %p193 = por %p191, %p192
      %p194 = scmp.ne.s32.totalorder %s185, %s186
      %p195 = scmp.eq.s32.totalorder %s30, 0
      %p196 = por %p194, %p195
      %p197 = scmp.ne.s32.totalorder %s185, %s186
      %p198 = scmp.eq.s32.totalorder %s31, 1
      %p199 = por %p197, %p198
      %p201 = scmp.ne.s32.totalorder %s186, %s200
      %p202 = scmp.eq.s32.totalorder %s31, 0
      %p203 = por %p201, %p202
      %s205 = sadd.s32 %s204, 1
      %p208 = scmp.eq.s32.totalorder %s25, 1
      %p209 = scmp.ne.s32.totalorder %s204, %s206
      %p210 = scmp.eq.s32.totalorder %s25, 0
      %p211 = por %p209, %p210
      %p212 = scmp.ne.s32.totalorder %s204, %s206
      %p213 = scmp.eq.s32.totalorder %s30, 1
      %p214 = por %p212, %p213
      %p215 = scmp.ne.s32.totalorder %s206, %s207
      %p216 = scmp.eq.s32.totalorder %s30, 0
      %p217 = por %p215, %p216
      %p218 = scmp.ne.s32.totalorder %s206, %s207
      %p219 = scmp.eq.s32.totalorder %s31, 1
      %p220 = por %p218, %p219
      %p222 = scmp.ne.s32.totalorder %s207, %s221
      %p223 = scmp.eq.s32.totalorder %s31, 0
      %p224 = por %p222, %p223
      %s226 = sadd.s32 %s225, 1
      %p229 = scmp.eq.s32.totalorder %s25, 1
      %p230 = scmp.ne.s32.totalorder %s225, %s227
      %p231 = scmp.eq.s32.totalorder %s25, 0
      %p232 = por %p230, %p231
      %p233 = scmp.ne.s32.totalorder %s225, %s227
      %p234 = scmp.eq.s32.totalorder %s30, 1
      %p235 = por %p233, %p234
      %p236 = scmp.ne.s32.totalorder %s227, %s228
      %p237 = scmp.eq.s32.totalorder %s30, 0
      %p238 = por %p236, %p237
      %p239 = scmp.ne.s32.totalorder %s227, %s228
      %p240 = scmp.eq.s32.totalorder %s31, 1
      %p241 = por %p239, %p240
      %p243 = scmp.ne.s32.totalorder %s228, %s242
      %p244 = scmp.eq.s32.totalorder %s31, 0
      %p245 = por %p243, %p244
      %s247 = sadd.s32 %s246, 1
      %p250 = scmp.eq.s32.totalorder %s25, 1
      %p251 = scmp.ne.s32.totalorder %s246, %s248
      %p252 = scmp.eq.s32.totalorder %s25, 0
      %p253 = por %p251, %p252
      %p254 = scmp.ne.s32.totalorder %s246, %s248
      %p255 = scmp.eq.s32.totalorder %s30, 1
      %p256 = por %p254, %p255
      %p257 = scmp.ne.s32.totalorder %s248, %s249
      %p258 = scmp.eq.s32.totalorder %s30, 0
      %p259 = por %p257, %p258
      %p260 = scmp.ne.s32.totalorder %s248, %s249
      %p261 = scmp.eq.s32.totalorder %s31, 1
      %p262 = por %p260, %p261
      %p264 = scmp.ne.s32.totalorder %s249, %s263
      %p265 = scmp.eq.s32.totalorder %s31, 0
      %p266 = por %p264, %p265
      %s268 = sadd.s32 %s267, 1
      %p271 = scmp.eq.s32.totalorder %s25, 1
      %p272 = scmp.ne.s32.totalorder %s267, %s269
      %p273 = scmp.eq.s32.totalorder %s25, 0
      %p274 = por %p272, %p273
      %p275 = scmp.ne.s32.totalorder %s267, %s269
      %p276 = scmp.eq.s32.totalorder %s30, 1
      %p277 = por %p275, %p276
      %p278 = scmp.ne.s32.totalorder %s269, %s270
      %p279 = scmp.eq.s32.totalorder %s30, 0
      %p280 = por %p278, %p279
      %p281 = scmp.ne.s32.totalorder %s269, %s270
      %p282 = scmp.eq.s32.totalorder %s31, 1
      %p283 = por %p281, %p282
      %p285 = scmp.ne.s32.totalorder %s270, %s284
      %p286 = scmp.eq.s32.totalorder %s31, 0
      %p287 = por %p285, %p286
      %s289 = sadd.s32 %s288, 1
      %p292 = scmp.eq.s32.totalorder %s25, 1
      %p293 = scmp.ne.s32.totalorder %s288, %s290
      %p294 = scmp.eq.s32.totalorder %s25, 0
      %p295 = por %p293, %p294
      %p296 = scmp.ne.s32.totalorder %s288, %s290
      %p297 = scmp.eq.s32.totalorder %s30, 1
      %p298 = por %p296, %p297
      %p299 = scmp.ne.s32.totalorder %s290, %s291
      %p300 = scmp.eq.s32.totalorder %s30, 0
      %p301 = por %p299, %p300
      %p302 = scmp.ne.s32.totalorder %s290, %s291
      %p303 = scmp.eq.s32.totalorder %s31, 1
      %p304 = por %p302, %p303
      %p306 = scmp.ne.s32.totalorder %s291, %s305
      %p307 = scmp.eq.s32.totalorder %s31, 0
      %p308 = por %p306, %p307
      %s310 = sadd.s32 %s309, 1
      %p313 = scmp.eq.s32.totalorder %s25, 1
      %p314 = scmp.ne.s32.totalorder %s309, %s311
      %p315 = scmp.eq.s32.totalorder %s25, 0
      %p316 = por %p314, %p315
      %p317 = scmp.ne.s32.totalorder %s309, %s311
      %p318 = scmp.eq.s32.totalorder %s30, 1
      %p319 = por %p317, %p318
      %p320 = scmp.ne.s32.totalorder %s311, %s312
      %p321 = scmp.eq.s32.totalorder %s30, 0
      %p322 = por %p320, %p321
      %p323 = scmp.ne.s32.totalorder %s311, %s312
      %p324 = scmp.eq.s32.totalorder %s31, 1
      %p325 = por %p323, %p324
      %p327 = scmp.ne.s32.totalorder %s312, %s326
      %p328 = scmp.eq.s32.totalorder %s31, 0
      %p329 = por %p327, %p328
      %s331 = sadd.s32 %s330, 1
      %p334 = scmp.eq.s32.totalorder %s25, 1
      %p335 = scmp.ne.s32.totalorder %s330, %s332
      %p336 = scmp.eq.s32.totalorder %s25, 0
      %p337 = por %p335, %p336
      %p338 = scmp.ne.s32.totalorder %s330, %s332
      %p339 = scmp.eq.s32.totalorder %s30, 1
      %p340 = por %p338, %p339
      %p341 = scmp.ne.s32.totalorder %s332, %s333
      %p342 = scmp.eq.s32.totalorder %s30, 0
      %p343 = por %p341, %p342
      %p344 = scmp.ne.s32.totalorder %s332, %s333
      %p345 = scmp.eq.s32.totalorder %s31, 1
      %p346 = por %p344, %p345
      %p348 = scmp.ne.s32.totalorder %s333, %s347
      %p349 = scmp.eq.s32.totalorder %s31, 0
      %p350 = por %p348, %p349
      %s352 = sadd.s32 %s351, 1
      %p355 = scmp.eq.s32.totalorder %s25, 1
      %p356 = scmp.ne.s32.totalorder %s351, %s353
      %p357 = scmp.eq.s32.totalorder %s25, 0
      %p358 = por %p356, %p357
      %p359 = scmp.ne.s32.totalorder %s351, %s353
      %p360 = scmp.eq.s32.totalorder %s30, 1
      %p361 = por %p359, %p360
      %p362 = scmp.ne.s32.totalorder %s353, %s354
      %p363 = scmp.eq.s32.totalorder %s30, 0
      %p364 = por %p362, %p363
      %p365 = scmp.ne.s32.totalorder %s353, %s354
      %p366 = scmp.eq.s32.totalorder %s31, 1
      %p367 = por %p365, %p366
      %p369 = scmp.ne.s32.totalorder %s354, %s368
      %p370 = scmp.eq.s32.totalorder %s31, 0
      %p371 = por %p369, %p370
      %s373 = sadd.s32 %s372, 1
      %p376 = scmp.eq.s32.totalorder %s25, 1
      %p377 = scmp.ne.s32.totalorder %s372, %s374
      %p378 = scmp.eq.s32.totalorder %s25, 0
      %p379 = por %p377, %p378
      %p380 = scmp.ne.s32.totalorder %s372, %s374
      %p381 = scmp.eq.s32.totalorder %s30, 1
      %p382 = por %p380, %p381
      %p383 = scmp.ne.s32.totalorder %s374, %s375
      %p384 = scmp.eq.s32.totalorder %s30, 0
      %p385 = por %p383, %p384
      %p386 = scmp.ne.s32.totalorder %s374, %s375
      %p387 = scmp.eq.s32.totalorder %s31, 1
      %p388 = por %p386, %p387
      %p390 = scmp.ne.s32.totalorder %s375, %s389
      %p391 = scmp.eq.s32.totalorder %s31, 0
      %p392 = por %p390, %p391
      %s393 = ssub.s32 %s32, %s44
      %s394 = ssub.s32 %s33, %s40
      %s395 = sor.u32 %s393, %s394
      %p396 = scmp.eq.s32.totalorder %s395, 0
      %s398 = sadd.s32 %s397, 1
      %s399 = scalar_select %p396, %s397, %s398
      %p402 = pneg %p396
      %p403 = scmp.eq.s32.totalorder %s25, 1
      %p404 = por %p402, %p403
      %p405 = scmp.ne.s32.totalorder %s397, %s400
      %p406 = scmp.eq.s32.totalorder %s25, 0
      %p407 = por %p405, %p406
      %p408 = scmp.ne.s32.totalorder %s397, %s400
      %p409 = scmp.eq.s32.totalorder %s30, 1
      %p410 = por %p408, %p409
      %p411 = scmp.ne.s32.totalorder %s400, %s401
      %p412 = scmp.eq.s32.totalorder %s30, 0
      %p413 = por %p411, %p412
      %p414 = scmp.ne.s32.totalorder %s400, %s401
      %p415 = scmp.eq.s32.totalorder %s31, 1
      %p416 = por %p414, %p415
      %p418 = scmp.ne.s32.totalorder %s401, %s417
      %p419 = scmp.eq.s32.totalorder %s31, 0
      %p420 = por %p418, %p419
      %p421 = scmp.le.s32.totalorder 1, %s25
      %p422 = scmp.lt.s32.totalorder %s25, 3
      %p423 = pnand %p421, %p422
      %p424 = pneg %p423
      // Predicated region
      $region9: #{tpu_custom_call.1} parent=5 // pred_check
        _
      $region10: #{tpu_custom_call.1} parent=5 // pred_check_branch
        %426 = sbr.rel (%p423) target = $region12
      $region11: #{tpu_custom_call.1} parent=5 // pred_region
        %s427 = ssub.s32 %s25, 1
        // Predicated region
        $region13: #{tpu_custom_call.1} parent=11 // pred_check
          %p428 = pneg %p112
        $region14: #{tpu_custom_call.1} parent=11 // pred_check_branch
          %430 = sbr.rel (%p428) target = $region16
        $region15: #{tpu_custom_call.1} parent=11 // pred_region
          _
        $region16: #{tpu_custom_call.1} parent=11 // pred_fallthru
          _
        // Predicated region
        $region17: #{tpu_custom_call.1} parent=11 // pred_check
          %p431 = pneg %p133
        $region18: #{tpu_custom_call.1} parent=11 // pred_check_branch
          %433 = sbr.rel (%p431) target = $region20
        $region19: #{tpu_custom_call.1} parent=11 // pred_region
          _
        $region20: #{tpu_custom_call.1} parent=11 // pred_fallthru
          _
        // Predicated region
        $region21: #{tpu_custom_call.1} parent=11 // pred_check
          %p434 = pneg %p154
        $region22: #{tpu_custom_call.1} parent=11 // pred_check_branch
          %436 = sbr.rel (%p434) target = $region24
        $region23: #{tpu_custom_call.1} parent=11 // pred_region
          _
        $region24: #{tpu_custom_call.1} parent=11 // pred_fallthru
          _
        // Predicated region
        $region25: #{tpu_custom_call.1} parent=11 // pred_check
          %p437 = pneg %p175
        $region26: #{tpu_custom_call.1} parent=11 // pred_check_branch
          %439 = sbr.rel (%p437) target = $region28
        $region27: #{tpu_custom_call.1} parent=11 // pred_region
          _
        $region28: #{tpu_custom_call.1} parent=11 // pred_fallthru
          _
        // Predicated region
        $region29: #{tpu_custom_call.1} parent=11 // pred_check
          %p440 = pneg %p196
        $region30: #{tpu_custom_call.1} parent=11 // pred_check_branch
          %442 = sbr.rel (%p440) target = $region32
        $region31: #{tpu_custom_call.1} parent=11 // pred_region
          _
        $region32: #{tpu_custom_call.1} parent=11 // pred_fallthru
          _
        // Predicated region
        $region33: #{tpu_custom_call.1} parent=11 // pred_check
          %p443 = pneg %p217
        $region34: #{tpu_custom_call.1} parent=11 // pred_check_branch
          %445 = sbr.rel (%p443) target = $region36
        $region35: #{tpu_custom_call.1} parent=11 // pred_region
          _
        $region36: #{tpu_custom_call.1} parent=11 // pred_fallthru
          _
        // Predicated region
        $region37: #{tpu_custom_call.1} parent=11 // pred_check
          %p446 = pneg %p238
        $region38: #{tpu_custom_call.1} parent=11 // pred_check_branch
          %448 = sbr.rel (%p446) target = $region40
        $region39: #{tpu_custom_call.1} parent=11 // pred_region
          _
        $region40: #{tpu_custom_call.1} parent=11 // pred_fallthru
          _
        // Predicated region
        $region41: #{tpu_custom_call.1} parent=11 // pred_check
          %p449 = pneg %p259
        $region42: #{tpu_custom_call.1} parent=11 // pred_check_branch
          %451 = sbr.rel (%p449) target = $region44
        $region43: #{tpu_custom_call.1} parent=11 // pred_region
          _
        $region44: #{tpu_custom_call.1} parent=11 // pred_fallthru
          _
        // Predicated region
        $region45: #{tpu_custom_call.1} parent=11 // pred_check
          %p452 = pneg %p280
        $region46: #{tpu_custom_call.1} parent=11 // pred_check_branch
          %454 = sbr.rel (%p452) target = $region48
        $region47: #{tpu_custom_call.1} parent=11 // pred_region
          _
        $region48: #{tpu_custom_call.1} parent=11 // pred_fallthru
          _
        // Predicated region
        $region49: #{tpu_custom_call.1} parent=11 // pred_check
          %p455 = pneg %p301
        $region50: #{tpu_custom_call.1} parent=11 // pred_check_branch
          %457 = sbr.rel (%p455) target = $region52
        $region51: #{tpu_custom_call.1} parent=11 // pred_region
          _
        $region52: #{tpu_custom_call.1} parent=11 // pred_fallthru
          _
        // Predicated region
        $region53: #{tpu_custom_call.1} parent=11 // pred_check
          %p458 = pneg %p322
        $region54: #{tpu_custom_call.1} parent=11 // pred_check_branch
          %460 = sbr.rel (%p458) target = $region56
        $region55: #{tpu_custom_call.1} parent=11 // pred_region
          _
        $region56: #{tpu_custom_call.1} parent=11 // pred_fallthru
          _
        // Predicated region
        $region57: #{tpu_custom_call.1} parent=11 // pred_check
          %p461 = pneg %p343
        $region58: #{tpu_custom_call.1} parent=11 // pred_check_branch
          %463 = sbr.rel (%p461) target = $region60
        $region59: #{tpu_custom_call.1} parent=11 // pred_region
          _
        $region60: #{tpu_custom_call.1} parent=11 // pred_fallthru
          _
        // Predicated region
        $region61: #{tpu_custom_call.1} parent=11 // pred_check
          %p464 = pneg %p364
        $region62: #{tpu_custom_call.1} parent=11 // pred_check_branch
          %466 = sbr.rel (%p464) target = $region64
        $region63: #{tpu_custom_call.1} parent=11 // pred_region
          _
        $region64: #{tpu_custom_call.1} parent=11 // pred_fallthru
          _
        // Predicated region
        $region65: #{tpu_custom_call.1} parent=11 // pred_check
          %p467 = pneg %p385
        $region66: #{tpu_custom_call.1} parent=11 // pred_check_branch
          %469 = sbr.rel (%p467) target = $region68
        $region67: #{tpu_custom_call.1} parent=11 // pred_region
          _
        $region68: #{tpu_custom_call.1} parent=11 // pred_fallthru
          _
      $region12: #{tpu_custom_call.1} parent=5 // pred_fallthru
        _
      %p470 = scmp.lt.s32.totalorder %s25, 2
      // Predicated region
      $region69: #{tpu_custom_call.1} parent=5 // pred_check
        %p471 = pneg %p470
      $region70: #{tpu_custom_call.1} parent=5 // pred_check_branch
        %473 = sbr.rel (%p471) target = $region72
      $region71: #{tpu_custom_call.1} parent=5 // pred_region
        // Predicated region
        $region73: #{tpu_custom_call.1} parent=71 // pred_check
          %p474 = pneg %p57
        $region74: #{tpu_custom_call.1} parent=71 // pred_check_branch
          %476 = sbr.rel (%p474) target = $region76
        $region75: #{tpu_custom_call.1} parent=71 // pred_region
          %p477 = scmp.lt.s32.totalorder %s32, 1
          %s478 = scalar_select %p477, %s32, 1
          %s479 = smul.addr %s478, 8
          %s480 = scalar_lea.vmem %s0, %s479
        $region76: #{tpu_custom_call.1} parent=71 // pred_fallthru
          _
        // Predicated region
        $region77: #{tpu_custom_call.1} parent=71 // pred_check
          %p481 = pneg %p85
        $region78: #{tpu_custom_call.1} parent=71 // pred_check_branch
          %483 = sbr.rel (%p481) target = $region80
        $region79: #{tpu_custom_call.1} parent=71 // pred_region
          %p484 = scmp.lt.s32.totalorder %s32, 1
          %s485 = scalar_select %p484, %s32, 1
          %p486 = scmp.lt.s32.totalorder %s33, 0
          %s487 = scalar_select %p486, %s33, 0
          %s488 = sadd.s32 %s487, %s485
          %s489 = smul.addr %s488, 8
          %s490 = scalar_lea.vmem %s1, %s489
        $region80: #{tpu_custom_call.1} parent=71 // pred_fallthru
          _
      $region72: #{tpu_custom_call.1} parent=5 // pred_fallthru
        _
      %p491 = scmp.le.s32.totalorder 1, %s25
      %p492 = scmp.lt.s32.totalorder %s25, 3
      %p493 = pnand %p491, %p492
      %p494 = pneg %p493
      // Predicated region
      $region81: #{tpu_custom_call.1} parent=5 // pred_check
        _
      $region82: #{tpu_custom_call.1} parent=5 // pred_check_branch
        %496 = sbr.rel (%p493) target = $region84
      $region83: #{tpu_custom_call.1} parent=5 // pred_region
        %s497 = ssub.s32 %s25, 1
        %p498 = scmp.lt.s32.totalorder %s34, 1
        %s499 = scalar_select %p498, %s34, 1
        %s500 = smul.addr %s499, 8
        %s501 = scalar_lea.vmem %s0, %s500
        %p502 = pneg %p63
        %p503 = pneg %p60
        %p504 = scmp.lt.s32.totalorder %s34, 1
        %s505 = scalar_select %p504, %s34, 1
        %p506 = scmp.lt.s32.totalorder %s35, 0
        %s507 = scalar_select %p506, %s35, 0
        %s508 = sadd.s32 %s507, %s505
        %s509 = smul.addr %s508, 8
        %s510 = scalar_lea.vmem %s1, %s509
        %p511 = pneg %p91
        %p512 = pneg %p88
        %p513 = pneg %p112
        %p514 = pneg %p109
        %p515 = pneg %p133
        %p516 = pneg %p130
        %p517 = pneg %p154
        %p518 = pneg %p151
        %p519 = pneg %p175
        %p520 = pneg %p172
        %p521 = pneg %p196
        %p522 = pneg %p193
        %p523 = pneg %p217
        %p524 = pneg %p214
        %p525 = pneg %p238
        %p526 = pneg %p235
        %p527 = pneg %p259
        %p528 = pneg %p256
        %p529 = pneg %p280
        %p530 = pneg %p277
        %p531 = pneg %p301
        %p532 = pneg %p298
        %p533 = pneg %p322
        %p534 = pneg %p319
        %p535 = pneg %p343
        %p536 = pneg %p340
        %p537 = pneg %p364
        %p538 = pneg %p361
        %p539 = pneg %p385
        %p540 = pneg %p382
        %p541 = pneg %p413
        %p542 = pneg %p410
        %s543 = sand.u32 %s400, 1
        %s544 = scalar_lea.sflag [#allocation7], %s543
        %s545 = sand.u32 %s400, 1
        %s546 = smul.addr %s545, 8
        %s547 = scalar_lea.vmem [#allocation6], %s546
        %p548 = scmp.lt.s32.totalorder %s34, 1
        %s549 = scalar_select %p548, %s34, 1
        %s550 = smul.addr %s549, 8
        %s551 = scalar_lea.vmem %s0, %s550
        %p552 = scmp.lt.s32.totalorder %s34, 1
        %s553 = scalar_select %p552, %s34, 1
        %p554 = scmp.lt.s32.totalorder %s35, 0
        %s555 = scalar_select %p554, %s35, 0
        %s556 = sadd.s32 %s555, %s553
        %s557 = smul.addr %s556, 8
        %s558 = scalar_lea.vmem %s1, %s557
        %p560 = scmp.eq.s32.totalorder %s35, 0
        // Predicated region
        $region85: #{tpu_custom_call.1} parent=83 // pred_check
          %p561 = pneg %p560
        $region86: #{tpu_custom_call.1} parent=83 // pred_check_branch
          %563 = sbr.rel (%p561) target = $region88
        $region87: #{tpu_custom_call.1} parent=83 // pred_region
          %v564 = vld [vmem:[%s551] sm:$0xff]
          %v565 = vpack.c.bf16 %v564, %v564
          %v566 = vld [vmem:[%s4] sm:$0xf]
          %v567 = vld [vmem:[%s4 + $0x4] sm:$0xf]
          %v568 = vld [vmem:[%s4 + $0x8] sm:$0xf]
          %v569 = vld [vmem:[%s4 + $0xc] sm:$0xf]
          %v570 = vld [vmem:[%s4 + $0x10] sm:$0xf]
          %v571 = vld [vmem:[%s4 + $0x14] sm:$0xf]
          %v572 = vld [vmem:[%s4 + $0x18] sm:$0xf]
          %v573 = vld [vmem:[%s4 + $0x1c] sm:$0xf]
          %v574 = vld [vmem:[%s5] sm:$0xff]
          %v575 = vld [vmem:[%s5 + $0x8] sm:$0xff]
          %v576 = vld [vmem:[%s5 + $0x10] sm:$0xff]
          %v577 = vld [vmem:[%s5 + $0x18] sm:$0xff]
          %v578 = vld [vmem:[%s5 + $0x20] sm:$0xff]
          %v579 = vld [vmem:[%s5 + $0x28] sm:$0xff]
          %v580 = vld [vmem:[%s5 + $0x30] sm:$0xff]
          %v581 = vld [vmem:[%s5 + $0x38] sm:$0xff]
          %583 = vset.pattern.permute.xlu0 0
          %584 = vperm.xlu0 %583, %v574
          %v585 = vpop.permute.xlu0 %584
          %588 = vset.pattern.permute.xlu0 0
          %589 = vperm.xlu0 %588, %v575
          %v590 = vpop.permute.xlu0 %589
          %593 = vset.pattern.permute.xlu0 0
          %594 = vperm.xlu0 %593, %v576
          %v595 = vpop.permute.xlu0 %594
          %598 = vset.pattern.permute.xlu0 0
          %599 = vperm.xlu0 %598, %v577
          %v600 = vpop.permute.xlu0 %599
          %603 = vset.pattern.permute.xlu0 0
          %604 = vperm.xlu0 %603, %v578
          %v605 = vpop.permute.xlu0 %604
          %608 = vset.pattern.permute.xlu0 0
          %609 = vperm.xlu0 %608, %v579
          %v610 = vpop.permute.xlu0 %609
          %613 = vset.pattern.permute.xlu0 0
          %614 = vperm.xlu0 %613, %v580
          %v615 = vpop.permute.xlu0 %614
          %618 = vset.pattern.permute.xlu0 0
          %619 = vperm.xlu0 %618, %v581
          %v620 = vpop.permute.xlu0 %619
          %v630 = vunpack.c.l.b16 %v566
          %v631 = vunpack.c.l.b16 %v567
          %v632 = vunpack.c.l.b16 %v568
          %v633 = vunpack.c.l.b16 %v569
          %v634 = vunpack.c.l.b16 %v570
          %v635 = vunpack.c.l.b16 %v571
          %v636 = vunpack.c.l.b16 %v572
          %v637 = vunpack.c.l.b16 %v573
          %v638 = vpack.c.b16 %v631, %v630
          %v639 = vpack.c.b16 %v633, %v632
          %v640 = vpack.c.b16 %v635, %v634
          %v641 = vpack.c.b16 %v637, %v636
          %vm642 = vcmask 261120
          %v644 = vsel %vm642, %v638, 0
          %v647 = vsel %vm642, %v639, 0
          %v650 = vsel %vm642, %v640, 0
          %v653 = vsel %vm642, %v641, 0
          %v656 = vsel %vm642, %v565, 0
          %658 = vmatpush.bf16.xpose.msra.mxu0 0
          %659 = vmatpush.bf16.xpose.msra.mxu0 0
          %660 = vmatpush.bf16.xpose.msra.mxu0 0
          %661 = vmatpush.bf16.xpose.msra.mxu0 0
          %662 = vmatpush.bf16.xpose.msra.mxu0 0
          %663 = vmatpush.bf16.xpose.msra.mxu0 0
          %664 = vmatpush.bf16.xpose.msra.mxu0 0
          %665 = vmatpush.bf16.xpose.msra.mxu0 %v656
          %666 = vmatmul.bf16.gmra.mxu0 %v644
          %v667 = vpop.f32.mrf.mxu0
          %v668 = vadd.f32 %v585, %v667
          %v669 = vpop.f32.mrf.mxu0
          %v670 = vadd.f32 %v590, %v669
          %671 = vmatmul.bf16.gmra.mxu0 %v647
          %v672 = vpop.f32.mrf.mxu0
          %v673 = vadd.f32 %v595, %v672
          %v674 = vpop.f32.mrf.mxu0
          %v675 = vadd.f32 %v600, %v674
          %676 = vmatmul.bf16.gmra.mxu0 %v650
          %v677 = vpop.f32.mrf.mxu0
          %v678 = vadd.f32 %v605, %v677
          %v679 = vpop.f32.mrf.mxu0
          %v680 = vadd.f32 %v610, %v679
          %681 = vmatmul.bf16.gmra.mxu0 %v653
          %v682 = vpop.f32.mrf.mxu0
          %v683 = vadd.f32 %v615, %v682
          %v684 = vpop.f32.mrf.mxu0
          %v685 = vadd.f32 %v620, %v684
          %686 = vdwg.mxu0
          %v687 = vpack.c.bf16 %v668, %v668
          %v688 = vpack.c.bf16 %v670, %v670
          %v689 = vpack.c.bf16 %v673, %v673
          %v690 = vpack.c.bf16 %v675, %v675
          %v691 = vpack.c.bf16 %v678, %v678
          %v692 = vpack.c.bf16 %v680, %v680
          %v693 = vpack.c.bf16 %v683, %v683
          %v694 = vpack.c.bf16 %v685, %v685
          %vm695 = vcmask 60416
          %696 = vst.msk [vmem:[#allocation2] sm:$0xf] %vm695, %v687
          %697 = vst.msk [vmem:[#allocation2 + $0x4] sm:$0xf] %vm695, %v688
          %698 = vst.msk [vmem:[#allocation2 + $0x8] sm:$0xf] %vm695, %v689
          %699 = vst.msk [vmem:[#allocation2 + $0xc] sm:$0xf] %vm695, %v690
          %700 = vst.msk [vmem:[#allocation3] sm:$0xf] %vm695, %v691
          %701 = vst.msk [vmem:[#allocation3 + $0x4] sm:$0xf] %vm695, %v692
          %702 = vst.msk [vmem:[#allocation3 + $0x8] sm:$0xf] %vm695, %v693
          %703 = vst.msk [vmem:[#allocation3 + $0xc] sm:$0xf] %vm695, %v694
        $region88: #{tpu_custom_call.1} parent=83 // pred_fallthru
          _
        %v704 = vld [vmem:[%s558] sm:$0xff]
        %v705 = vpack.c.bf16 %v704, %v704
        %v706 = vld [vmem:[%s2] sm:$0xf]
        %v707 = vld [vmem:[%s2 + $0x4] sm:$0xf]
        %v708 = vld [vmem:[%s2 + $0x8] sm:$0xf]
        %v709 = vld [vmem:[%s2 + $0xc] sm:$0xf]
        %v710 = vld [vmem:[%s3] sm:$0x1]
        %v712 = vperm.slane %v710, 0
        %v718 = vunpack.c.l.b16 %v706
        %v719 = vunpack.c.l.b16 %v707
        %v720 = vunpack.c.l.b16 %v708
        %v721 = vunpack.c.l.b16 %v709
        %v722 = vpack.c.b16 %v719, %v718
        %v723 = vpack.c.b16 %v721, %v720
        %vm726 = vcmask 261120
        %v728 = vsel %vm726, %v705, 0
        %730 = vmatpush.bf16.msra.mxu0 0
        %731 = vmatpush.bf16.msra.mxu0 0
        %732 = vmatpush.bf16.msra.mxu0 0
        %733 = vmatpush.bf16.msra.mxu0 0
        %734 = vmatpush.bf16.msra.mxu0 0
        %735 = vmatpush.bf16.msra.mxu0 0
        %736 = vmatpush.bf16.msra.mxu0 %v723
        %737 = vmatpush.bf16.msra.mxu0 %v722
        %738 = vmatmul.bf16.gmra.mxu0 %v728
        %v739 = vpop.f32.mrf.mxu0
        %v740 = vadd.f32 %v712, %v739
        %v741 = vpop.f32.mrf.mxu0
        %742 = vdwg.mxu0
        %v743 = vmul.f32 %v740, 0.35355338
        %745 = vrot.lane.b32.xlu0 %v743, 120
        %v746 = vpop.permute.xlu0 %745
        %748 = vrot.lane.b32.xlu0 %v743, 112
        %v749 = vpop.permute.xlu0 %748
        %751 = vrot.lane.b32.xlu0 %v743, 104
        %v752 = vpop.permute.xlu0 %751
        %v754 = vrot.slane %v749, 4
        %vm755 = vcmask 1047556
        %v756 = vsel %vm755, %v754, %v743
        %v757 = vrot.slane %v743, 4
        %v758 = vsel %vm755, %v749, %v757
        %v760 = vunpack.c.l.s4 1983009808
        %v761 = vunpack.c.0.s8 %v760
        %v762 = vperm.slane %v756, %v761
        %v764 = vunpack.c.l.s4 1983009808
        %v765 = vunpack.c.0.s8 %v764
        %v766 = vperm.slane %v758, %v765
        %v767 = vrot.slane %v752, 4
        %v768 = vsel %vm755, %v767, %v746
        %v769 = vrot.slane %v746, 4
        %v770 = vsel %vm755, %v752, %v769
        %v772 = vunpack.c.l.s4 1983009808
        %v773 = vunpack.c.0.s8 %v772
        %v774 = vperm.slane %v768, %v773
        %v776 = vunpack.c.l.s4 1983009808
        %v777 = vunpack.c.0.s8 %v776
        %v778 = vperm.slane %v770, %v777
        %v779 = vrot.slane %v774, 4
        %v780 = vsel %vm755, %v779, %v762
        %v781 = vrot.slane %v762, 4
        %v782 = vsel %vm755, %v774, %v781
        %v784 = vunpack.c.l.s4 1934713408
        %v785 = vunpack.c.0.s8 %v784
        %v786 = vperm.slane %v780, %v785
        %v788 = vunpack.c.l.s4 1934713408
        %v789 = vunpack.c.0.s8 %v788
        %v790 = vperm.slane %v782, %v789
        %v791 = vrot.slane %v778, 4
        %v792 = vsel %vm755, %v791, %v766
        %v793 = vrot.slane %v766, 4
        %v794 = vsel %vm755, %v778, %v793
        %v796 = vunpack.c.l.s4 1934713408
        %v797 = vunpack.c.0.s8 %v796
        %v798 = vperm.slane %v792, %v797
        %v800 = vunpack.c.l.s4 1934713408
        %v801 = vunpack.c.0.s8 %v800
        %v802 = vperm.slane %v794, %v801
        %v803 = vrot.slane %v786, 4
        %v804 = vsel %vm755, 0.0, %v803
        %v805 = vrot.slane %v790, 4
        %v806 = vsel %vm755, 0.0, %v805
        %v807 = vrot.slane %v798, 4
        %v808 = vsel %vm755, 0.0, %v807
        %v809 = vrot.slane %v802, 4
        %v810 = vsel %vm755, 0.0, %v809
        %v811 = vsel %vm755, %v805, %v786
        %v813 = vunpack.c.l.s4 1983009808
        %v814 = vunpack.c.0.s8 %v813
        %v815 = vperm.slane %v811, %v814
        %v816 = vrot.slane %v806, 4
        %v817 = vsel %vm755, %v816, %v804
        %v819 = vunpack.c.l.s4 1983009808
        %v820 = vunpack.c.0.s8 %v819
        %v821 = vperm.slane %v817, %v820
        %v822 = vsel %vm755, %v809, %v798
        %v824 = vunpack.c.l.s4 1983009808
        %v825 = vunpack.c.0.s8 %v824
        %v826 = vperm.slane %v822, %v825
        %v827 = vrot.slane %v810, 4
        %v828 = vsel %vm755, %v827, %v808
        %v830 = vunpack.c.l.s4 1983009808
        %v831 = vunpack.c.0.s8 %v830
        %v832 = vperm.slane %v828, %v831
        %v833 = vrot.slane %v821, 4
        %v834 = vsel %vm755, %v833, %v815
        %v835 = vrot.slane %v815, 4
        %v836 = vsel %vm755, %v821, %v835
        %v838 = vunpack.c.l.s4 1934713408
        %v839 = vunpack.c.0.s8 %v838
        %v840 = vperm.slane %v834, %v839
        %v842 = vunpack.c.l.s4 1934713408
        %v843 = vunpack.c.0.s8 %v842
        %v844 = vperm.slane %v836, %v843
        %v845 = vrot.slane %v832, 4
        %v846 = vsel %vm755, %v845, %v826
        %v847 = vrot.slane %v826, 4
        %v848 = vsel %vm755, %v832, %v847
        %v850 = vunpack.c.l.s4 1934713408
        %v851 = vunpack.c.0.s8 %v850
        %v852 = vperm.slane %v846, %v851
        %v854 = vunpack.c.l.s4 1934713408
        %v855 = vunpack.c.0.s8 %v854
        %v856 = vperm.slane %v848, %v855
        %v857 = vrot.slane %v852, 4
        %v858 = vsel %vm755, %v857, %v840
        %v859 = vrot.slane %v840, 4
        %v860 = vsel %vm755, %v852, %v859
        %v861 = vrot.slane %v856, 4
        %v862 = vsel %vm755, %v861, %v844
        %v863 = vrot.slane %v844, 4
        %v864 = vsel %vm755, %v856, %v863
        %v865 = vpack.c.bf16 %v858, %v858
        %v866 = vpack.c.bf16 %v860, %v860
        %v867 = vpack.c.bf16 %v862, %v862
        %v868 = vpack.c.bf16 %v864, %v864
        %vm869 = vcmask 60416
        %870 = vst.msk [vmem:[#allocation4] sm:$0xf] %vm869, %v865
        %871 = vst.msk [vmem:[#allocation4 + $0x4] sm:$0xf] %vm869, %v866
        %872 = vst.msk [vmem:[#allocation4 + $0x8] sm:$0xf] %vm869, %v867
        %873 = vst.msk [vmem:[#allocation4 + $0xc] sm:$0xf] %vm869, %v868
        %v874 = vld [vmem:[#allocation4] sm:$0xf]
        %v875 = vld [vmem:[#allocation4 + $0x4] sm:$0xf]
        %v876 = vld [vmem:[#allocation4 + $0x8] sm:$0xf]
        %v877 = vld [vmem:[#allocation4 + $0xc] sm:$0xf]
        %v878 = vld [vmem:[#allocation2] sm:$0xf]
        %v879 = vld [vmem:[#allocation2 + $0x4] sm:$0xf]
        %v880 = vld [vmem:[#allocation2 + $0x8] sm:$0xf]
        %v881 = vld [vmem:[#allocation2 + $0xc] sm:$0xf]
        %v882 = vld [vmem:[#allocation3] sm:$0xf]
        %v883 = vld [vmem:[#allocation3 + $0x4] sm:$0xf]
        %v884 = vld [vmem:[#allocation3 + $0x8] sm:$0xf]
        %v885 = vld [vmem:[#allocation3 + $0xc] sm:$0xf]
        %vm886 = vcmask 64512
        %v888 = vsel %vm886, %v874, 0
        %vm890 = vcmask 1043456
        %v892 = vsel %vm890, %v878, 0
        %894 = vmatpush.bf16.msra.mxu0 0
        %895 = vmatpush.bf16.msra.mxu0 0
        %896 = vmatpush.bf16.msra.mxu0 0
        %897 = vmatpush.bf16.msra.mxu0 0
        %898 = vmatpush.bf16.msra.mxu0 0
        %899 = vmatpush.bf16.msra.mxu0 0
        %900 = vmatpush.bf16.msra.mxu0 0
        %901 = vmatpush.bf16.msra.mxu0 %v892
        %902 = vmatmul.bf16.gmra.mxu0 %v888
        %v903 = vpop.f32.mrf.mxu0
        %v904 = vadd.f32 0.0, %v903
        %v905 = vpop.f32.mrf.mxu0
        %906 = vdwg.mxu0
        %v908 = vsel %vm886, %v875, 0
        %v911 = vsel %vm890, %v879, 0
        %913 = vmatpush.bf16.msra.mxu0 0
        %914 = vmatpush.bf16.msra.mxu0 0
        %915 = vmatpush.bf16.msra.mxu0 0
        %916 = vmatpush.bf16.msra.mxu0 0
        %917 = vmatpush.bf16.msra.mxu0 0
        %918 = vmatpush.bf16.msra.mxu0 0
        %919 = vmatpush.bf16.msra.mxu0 0
        %920 = vmatpush.bf16.msra.mxu0 %v911
        %921 = vmatmul.bf16.gmra.mxu0 %v908
        %v922 = vpop.f32.mrf.mxu0
        %v923 = vadd.f32 0.0, %v922
        %v924 = vpop.f32.mrf.mxu0
        %925 = vdwg.mxu0
        %v927 = vsel %vm886, %v876, 0
        %v930 = vsel %vm890, %v880, 0
        %932 = vmatpush.bf16.msra.mxu0 0
        %933 = vmatpush.bf16.msra.mxu0 0
        %934 = vmatpush.bf16.msra.mxu0 0
        %935 = vmatpush.bf16.msra.mxu0 0
        %936 = vmatpush.bf16.msra.mxu0 0
        %937 = vmatpush.bf16.msra.mxu0 0
        %938 = vmatpush.bf16.msra.mxu0 0
        %939 = vmatpush.bf16.msra.mxu0 %v930
        %940 = vmatmul.bf16.gmra.mxu0 %v927
        %v941 = vpop.f32.mrf.mxu0
        %v942 = vadd.f32 0.0, %v941
        %v943 = vpop.f32.mrf.mxu0
        %944 = vdwg.mxu0
        %v946 = vsel %vm886, %v877, 0
        %v949 = vsel %vm890, %v881, 0
        %951 = vmatpush.bf16.msra.mxu0 0
        %952 = vmatpush.bf16.msra.mxu0 0
        %953 = vmatpush.bf16.msra.mxu0 0
        %954 = vmatpush.bf16.msra.mxu0 0
        %955 = vmatpush.bf16.msra.mxu0 0
        %956 = vmatpush.bf16.msra.mxu0 0
        %957 = vmatpush.bf16.msra.mxu0 0
        %958 = vmatpush.bf16.msra.mxu0 %v949
        %959 = vmatmul.bf16.gmra.mxu0 %v946
        %v960 = vpop.f32.mrf.mxu0
        %v961 = vadd.f32 0.0, %v960
        %v962 = vpop.f32.mrf.mxu0
        %963 = vdwg.mxu0
        %v964 = vsel %vm886, %v904, -inf
        %965 = vmax.xlane.f32.xlu0 %v964
        %v966 = vpop.xlane.xlu0 %965
        %v967 = vsel %vm886, %v923, -inf
        %968 = vmax.xlane.f32.xlu0 %v967
        %v969 = vpop.xlane.xlu0 %968
        %v970 = vsel %vm886, %v942, -inf
        %971 = vmax.xlane.f32.xlu0 %v970
        %v972 = vpop.xlane.xlu0 %971
        %v973 = vsel %vm886, %v961, -inf
        %974 = vmax.xlane.f32.xlu0 %v973
        %v975 = vpop.xlane.xlu0 %974
        %v976 = vsub.f32 %v904, %v966
        %v977 = vsub.f32 %v923, %v969
        %v978 = vsub.f32 %v942, %v972
        %v979 = vsub.f32 %v961, %v975
        %v980 = vmul.f32 %v976, 1.442695
        %v981 = vpow.pop %v980
        %v982 = vmul.f32 %v977, 1.442695
        %v983 = vpow.pop %v982
        %v984 = vmul.f32 %v978, 1.442695
        %v985 = vpow.pop %v984
        %v986 = vmul.f32 %v979, 1.442695
        %v987 = vpow.pop %v986
        %v988 = vsel %vm886, %v981, 0.0
        %989 = vadd.xlane.f32.xlu0 %v988
        %v990 = vpop.xlane.xlu0 %989
        %v991 = vsel %vm886, %v983, 0.0
        %992 = vadd.xlane.f32.xlu0 %v991
        %v993 = vpop.xlane.xlu0 %992
        %v994 = vsel %vm886, %v985, 0.0
        %995 = vadd.xlane.f32.xlu0 %v994
        %v996 = vpop.xlane.xlu0 %995
        %v997 = vsel %vm886, %v987, 0.0
        %998 = vadd.xlane.f32.xlu0 %v997
        %v999 = vpop.xlane.xlu0 %998
        %v1000 = vpack.c.bf16 %v981, %v981
        %v1001 = vpack.c.bf16 %v983, %v983
        %v1002 = vpack.c.bf16 %v985, %v985
        %v1003 = vpack.c.bf16 %v987, %v987
        %v1005 = vsel %vm886, %v1000, 0
        %v1008 = vsel %vm886, %v882, 0
        %1010 = vmatpush.bf16.xpose.msra.mxu0 0
        %1011 = vmatpush.bf16.xpose.msra.mxu0 0
        %1012 = vmatpush.bf16.xpose.msra.mxu0 0
        %1013 = vmatpush.bf16.xpose.msra.mxu0 0
        %1014 = vmatpush.bf16.xpose.msra.mxu0 0
        %1015 = vmatpush.bf16.xpose.msra.mxu0 0
        %1016 = vmatpush.bf16.xpose.msra.mxu0 0
        %1017 = vmatpush.bf16.xpose.msra.mxu0 %v1008
        %1018 = vmatmul.bf16.gmra.mxu0 %v1005
        %v1019 = vpop.f32.mrf.mxu0
        %v1020 = vadd.f32 0.0, %v1019
        %v1021 = vpop.f32.mrf.mxu0
        %1022 = vdwg.mxu0
        %v1024 = vsel %vm886, %v1001, 0
        %v1027 = vsel %vm886, %v883, 0
        %1029 = vmatpush.bf16.xpose.msra.mxu0 0
        %1030 = vmatpush.bf16.xpose.msra.mxu0 0
        %1031 = vmatpush.bf16.xpose.msra.mxu0 0
        %1032 = vmatpush.bf16.xpose.msra.mxu0 0
        %1033 = vmatpush.bf16.xpose.msra.mxu0 0
        %1034 = vmatpush.bf16.xpose.msra.mxu0 0
        %1035 = vmatpush.bf16.xpose.msra.mxu0 0
        %1036 = vmatpush.bf16.xpose.msra.mxu0 %v1027
        %1037 = vmatmul.bf16.gmra.mxu0 %v1024
        %v1038 = vpop.f32.mrf.mxu0
        %v1039 = vadd.f32 0.0, %v1038
        %v1040 = vpop.f32.mrf.mxu0
        %1041 = vdwg.mxu0
        %v1043 = vsel %vm886, %v1002, 0
        %v1046 = vsel %vm886, %v884, 0
        %1048 = vmatpush.bf16.xpose.msra.mxu0 0
        %1049 = vmatpush.bf16.xpose.msra.mxu0 0
        %1050 = vmatpush.bf16.xpose.msra.mxu0 0
        %1051 = vmatpush.bf16.xpose.msra.mxu0 0
        %1052 = vmatpush.bf16.xpose.msra.mxu0 0
        %1053 = vmatpush.bf16.xpose.msra.mxu0 0
        %1054 = vmatpush.bf16.xpose.msra.mxu0 0
        %1055 = vmatpush.bf16.xpose.msra.mxu0 %v1046
        %1056 = vmatmul.bf16.gmra.mxu0 %v1043
        %v1057 = vpop.f32.mrf.mxu0
        %v1058 = vadd.f32 0.0, %v1057
        %v1059 = vpop.f32.mrf.mxu0
        %1060 = vdwg.mxu0
        %v1062 = vsel %vm886, %v1003, 0
        %v1065 = vsel %vm886, %v885, 0
        %1067 = vmatpush.bf16.xpose.msra.mxu0 0
        %1068 = vmatpush.bf16.xpose.msra.mxu0 0
        %1069 = vmatpush.bf16.xpose.msra.mxu0 0
        %1070 = vmatpush.bf16.xpose.msra.mxu0 0
        %1071 = vmatpush.bf16.xpose.msra.mxu0 0
        %1072 = vmatpush.bf16.xpose.msra.mxu0 0
        %1073 = vmatpush.bf16.xpose.msra.mxu0 0
        %1074 = vmatpush.bf16.xpose.msra.mxu0 %v1065
        %1075 = vmatmul.bf16.gmra.mxu0 %v1062
        %v1076 = vpop.f32.mrf.mxu0
        %v1077 = vadd.f32 0.0, %v1076
        %v1078 = vpop.f32.mrf.mxu0
        %1079 = vdwg.mxu0
        %v1080 = vrcp.pop %v990
        %v1081 = vrcp.pop %v993
        %v1082 = vrcp.pop %v996
        %v1083 = vrcp.pop %v999
        %v1084 = vmul.f32 %v1020, %v1080
        %v1085 = vmul.f32 %v1039, %v1081
        %v1086 = vmul.f32 %v1058, %v1082
        %v1087 = vmul.f32 %v1077, %v1083
        %s1088 = smul.u32 0, 8
        %s1089 = scalar_lea.vmem [#allocation5], %s1088
        %1090 = vst.msk [vmem:[%s1089] sm:$0xff] %vm886, %v1084
        %1091 = vst.msk [vmem:[%s1089 + $0x8] sm:$0xff] %vm886, %v1085
        %1092 = vst.msk [vmem:[%s1089 + $0x10] sm:$0xff] %vm886, %v1086
        %1093 = vst.msk [vmem:[%s1089 + $0x18] sm:$0xff] %vm886, %v1087
        %v1094 = vld [vmem:[#allocation5] sm:$0xff]
        %v1095 = vld [vmem:[#allocation5 + $0x8] sm:$0xff]
        %v1096 = vld [vmem:[#allocation5 + $0x10] sm:$0xff]
        %v1097 = vld [vmem:[#allocation5 + $0x18] sm:$0xff]
        %v1098 = vrot.slane %v1096, 4
        %v1099 = vsel %vm755, %v1098, %v1094
        %v1100 = vrot.slane %v1094, 4
        %v1101 = vsel %vm755, %v1096, %v1100
        %v1103 = vunpack.c.l.s4 1983009808
        %v1104 = vunpack.c.0.s8 %v1103
        %v1105 = vperm.slane %v1099, %v1104
        %v1107 = vunpack.c.l.s4 1983009808
        %v1108 = vunpack.c.0.s8 %v1107
        %v1109 = vperm.slane %v1101, %v1108
        %v1110 = vrot.slane %v1097, 4
        %v1111 = vsel %vm755, %v1110, %v1095
        %v1112 = vrot.slane %v1095, 4
        %v1113 = vsel %vm755, %v1097, %v1112
        %v1115 = vunpack.c.l.s4 1983009808
        %v1116 = vunpack.c.0.s8 %v1115
        %v1117 = vperm.slane %v1111, %v1116
        %v1119 = vunpack.c.l.s4 1983009808
        %v1120 = vunpack.c.0.s8 %v1119
        %v1121 = vperm.slane %v1113, %v1120
        %v1122 = vrot.slane %v1117, 4
        %v1123 = vsel %vm755, %v1122, %v1105
        %v1124 = vrot.slane %v1105, 4
        %v1125 = vsel %vm755, %v1117, %v1124
        %v1127 = vunpack.c.l.s4 1934713408
        %v1128 = vunpack.c.0.s8 %v1127
        %v1129 = vperm.slane %v1123, %v1128
        %v1131 = vunpack.c.l.s4 1934713408
        %v1132 = vunpack.c.0.s8 %v1131
        %v1133 = vperm.slane %v1125, %v1132
        %v1134 = vrot.slane %v1121, 4
        %v1135 = vsel %vm755, %v1134, %v1109
        %v1136 = vrot.slane %v1109, 4
        %v1137 = vsel %vm755, %v1121, %v1136
        %v1139 = vunpack.c.l.s4 1934713408
        %v1140 = vunpack.c.0.s8 %v1139
        %v1141 = vperm.slane %v1135, %v1140
        %v1143 = vunpack.c.l.s4 1934713408
        %v1144 = vunpack.c.0.s8 %v1143
        %v1145 = vperm.slane %v1137, %v1144
        %v1146 = vrot.slane %v1129, 4
        %v1147 = vsel %vm755, 0.0, %v1146
        %v1148 = vrot.slane %v1133, 4
        %v1149 = vsel %vm755, 0.0, %v1148
        %v1150 = vrot.slane %v1141, 4
        %v1151 = vsel %vm755, 0.0, %v1150
        %v1152 = vrot.slane %v1145, 4
        %v1153 = vsel %vm755, 0.0, %v1152
        %v1154 = vsel %vm755, %v1148, %v1129
        %v1156 = vunpack.c.l.s4 1983009808
        %v1157 = vunpack.c.0.s8 %v1156
        %v1158 = vperm.slane %v1154, %v1157
        %v1159 = vrot.slane %v1149, 4
        %v1160 = vsel %vm755, %v1159, %v1147
        %v1162 = vunpack.c.l.s4 1983009808
        %v1163 = vunpack.c.0.s8 %v1162
        %v1164 = vperm.slane %v1160, %v1163
        %v1165 = vsel %vm755, %v1152, %v1141
        %v1167 = vunpack.c.l.s4 1983009808
        %v1168 = vunpack.c.0.s8 %v1167
        %v1169 = vperm.slane %v1165, %v1168
        %v1170 = vrot.slane %v1153, 4
        %v1171 = vsel %vm755, %v1170, %v1151
        %v1173 = vunpack.c.l.s4 1983009808
        %v1174 = vunpack.c.0.s8 %v1173
        %v1175 = vperm.slane %v1171, %v1174
        %v1176 = vrot.slane %v1164, 4
        %v1177 = vsel %vm755, %v1176, %v1158
        %v1178 = vrot.slane %v1158, 4
        %v1179 = vsel %vm755, %v1164, %v1178
        %v1181 = vunpack.c.l.s4 1934713408
        %v1182 = vunpack.c.0.s8 %v1181
        %v1183 = vperm.slane %v1177, %v1182
        %v1185 = vunpack.c.l.s4 1934713408
        %v1186 = vunpack.c.0.s8 %v1185
        %v1187 = vperm.slane %v1179, %v1186
        %v1188 = vrot.slane %v1175, 4
        %v1189 = vsel %vm755, %v1188, %v1169
        %v1190 = vrot.slane %v1169, 4
        %v1191 = vsel %vm755, %v1175, %v1190
        %v1193 = vunpack.c.l.s4 1934713408
        %v1194 = vunpack.c.0.s8 %v1193
        %v1195 = vperm.slane %v1189, %v1194
        %v1197 = vunpack.c.l.s4 1934713408
        %v1198 = vunpack.c.0.s8 %v1197
        %v1199 = vperm.slane %v1191, %v1198
        %v1200 = vrot.slane %v1195, 4
        %v1201 = vsel %vm755, %v1200, %v1183
        %v1202 = vrot.slane %v1183, 4
        %v1203 = vsel %vm755, %v1195, %v1202
        %v1204 = vrot.slane %v1199, 4
        %v1205 = vsel %vm755, %v1204, %v1187
        %v1206 = vrot.slane %v1187, 4
        %v1207 = vsel %vm755, %v1199, %v1206
        %1209 = vrot.lane.b32.xlu0 %v1203, 8
        %v1210 = vpop.permute.xlu0 %1209
        %1213 = vrot.lane.b32.xlu0 %v1205, 16
        %v1214 = vpop.permute.xlu0 %1213
        %1217 = vrot.lane.b32.xlu0 %v1207, 24
        %v1218 = vpop.permute.xlu0 %1217
        %v1220 = vsel %vm886, %v1201, %v1210
        %vm1221 = vcmask 130048
        %v1222 = vsel %vm1221, %v1220, %v1214
        %vm1223 = vcmask 195584
        %v1224 = vsel %vm1223, %v1222, %v1218
        %v1225 = vpack.c.bf16 %v1224, %v1224
        %v1226 = vld [vmem:[%s6] sm:$0xf]
        %v1227 = vld [vmem:[%s6 + $0x4] sm:$0xf]
        %v1228 = vld [vmem:[%s6 + $0x8] sm:$0xf]
        %v1229 = vld [vmem:[%s6 + $0xc] sm:$0xf]
        %v1230 = vld [vmem:[%s7] sm:$0x1]
        %v1232 = vperm.slane %v1230, 0
        %v1238 = vunpack.c.l.b16 %v1226
        %v1239 = vunpack.c.l.b16 %v1227
        %v1240 = vunpack.c.l.b16 %v1228
        %v1241 = vunpack.c.l.b16 %v1229
        %v1242 = vpack.c.b16 %v1239, %v1238
        %v1243 = vpack.c.b16 %v1241, %v1240
        %v1247 = vsel %vm726, %v1225, 0
        %1249 = vmatpush.bf16.msra.mxu0 0
        %1250 = vmatpush.bf16.msra.mxu0 0
        %1251 = vmatpush.bf16.msra.mxu0 0
        %1252 = vmatpush.bf16.msra.mxu0 0
        %1253 = vmatpush.bf16.msra.mxu0 0
        %1254 = vmatpush.bf16.msra.mxu0 0
        %1255 = vmatpush.bf16.msra.mxu0 %v1243
        %1256 = vmatpush.bf16.msra.mxu0 %v1242
        %1257 = vmatmul.bf16.gmra.mxu0 %v1247
        %v1258 = vpop.f32.mrf.mxu0
        %v1259 = vadd.f32 %v1232, %v1258
        %v1260 = vpop.f32.mrf.mxu0
        %1261 = vdwg.mxu0
        %v1262 = vadd.f32 %v704, %v1259
        %v1263 = vld [vmem:[%s12] sm:$0x1]
        %v1264 = vld [vmem:[%s13] sm:$0x1]
        %v1265 = vsel %vm726, %v1262, 0.0
        %1266 = vadd.xlane.f32.xlu0 %v1265
        %v1267 = vpop.xlane.xlu0 %1266
        %v1268 = vrcp.pop 32.0
        %v1269 = vmul.f32 32.0, %v1268
        %v1270 = vsub.f32 1.0, %v1269
        %v1271 = vmul.f32 %v1268, %v1270
        %v1272 = vadd.f32 %v1268, %v1271
        %vm1273 = vweird.f32 %v1268
        %v1274 = vsel %vm1273, %v1268, %v1272
        %v1275 = vmul.f32 %v1267, %v1274
        %v1276 = vsub.f32 %v1262, %v1275
        %v1277 = vmul.f32 %v1276, %v1276
        %v1278 = vsel %vm726, %v1277, 0.0
        %1279 = vadd.xlane.f32.xlu0 %v1278
        %v1280 = vpop.xlane.xlu0 %1279
        %v1281 = vmul.f32 %v1280, %v1274
        %v1282 = vadd.f32 %v1281, 1e-05
        %v1283 = vrsqrt.pop %v1282
        %v1284 = vmul.f32 %v1283, %v1282
        %v1285 = vmul.f32 %v1284, %v1283
        %v1286 = vmul.f32 0.5, %v1285
        %v1287 = vsub.f32 1.5, %v1286
        %v1288 = vmul.f32 %v1283, %v1287
        %vm1289 = vweird.f32 %v1282
        %vm1290 = vweird.f32 %v1283
        %vm1291 = vmor %vm1289, %vm1290
        %v1292 = vsel %vm1291, %v1283, %v1288
        %v1293 = vmul.f32 %v1276, %v1292
        %v1295 = vperm.slane %v1263, 0
        %v1297 = vmul.f32 %v1293, %v1295
        %v1299 = vperm.slane %v1264, 0
        %v1301 = vadd.f32 %v1297, %v1299
        %v1302 = vpack.c.bf16 %v1301, %v1301
        %v1303 = vld [vmem:[%s8] sm:$0xf]
        %v1304 = vld [vmem:[%s8 + $0x4] sm:$0xf]
        %v1305 = vld [vmem:[%s8 + $0x8] sm:$0xf]
        %v1306 = vld [vmem:[%s8 + $0xc] sm:$0xf]
        %v1307 = vld [vmem:[%s9] sm:$0x1]
        %v1309 = vperm.slane %v1307, 0
        %v1315 = vunpack.c.l.b16 %v1303
        %v1316 = vunpack.c.l.b16 %v1304
        %v1317 = vunpack.c.l.b16 %v1305
        %v1318 = vunpack.c.l.b16 %v1306
        %v1319 = vpack.c.b16 %v1316, %v1315
        %v1320 = vpack.c.b16 %v1318, %v1317
        %v1324 = vsel %vm726, %v1302, 0
        %1326 = vmatpush.bf16.msra.mxu0 0
        %1327 = vmatpush.bf16.msra.mxu0 0
        %1328 = vmatpush.bf16.msra.mxu0 0
        %1329 = vmatpush.bf16.msra.mxu0 0
        %1330 = vmatpush.bf16.msra.mxu0 0
        %1331 = vmatpush.bf16.msra.mxu0 0
        %1332 = vmatpush.bf16.msra.mxu0 %v1320
        %1333 = vmatpush.bf16.msra.mxu0 %v1319
        %1334 = vmatmul.bf16.gmra.mxu0 %v1324
        %v1335 = vpop.f32.mrf.mxu0
        %v1336 = vadd.f32 %v1309, %v1335
        %v1337 = vpop.f32.mrf.mxu0
        %1338 = vdwg.mxu0
        %v1339 = vmax.f32 %v1336, 0.0
        %v1340 = vpack.c.bf16 %v1339, %v1339
        %v1341 = vld [vmem:[%s10] sm:$0xf]
        %v1342 = vld [vmem:[%s10 + $0x4] sm:$0xf]
        %v1343 = vld [vmem:[%s10 + $0x8] sm:$0xf]
        %v1344 = vld [vmem:[%s10 + $0xc] sm:$0xf]
        %v1345 = vld [vmem:[%s10 + $0x10] sm:$0xf]
        %v1346 = vld [vmem:[%s10 + $0x14] sm:$0xf]
        %v1347 = vld [vmem:[%s10 + $0x18] sm:$0xf]
        %v1348 = vld [vmem:[%s10 + $0x1c] sm:$0xf]
        %v1349 = vld [vmem:[%s11] sm:$0x1]
        %v1351 = vperm.slane %v1349, 0
        %v1361 = vunpack.c.l.b16 %v1341
        %v1362 = vunpack.c.l.b16 %v1342
        %v1363 = vunpack.c.l.b16 %v1343
        %v1364 = vunpack.c.l.b16 %v1344
        %v1365 = vunpack.c.l.b16 %v1345
        %v1366 = vunpack.c.l.b16 %v1346
        %v1367 = vunpack.c.l.b16 %v1347
        %v1368 = vunpack.c.l.b16 %v1348
        %v1369 = vpack.c.b16 %v1362, %v1361
        %v1370 = vpack.c.b16 %v1364, %v1363
        %v1371 = vpack.c.b16 %v1366, %v1365
        %v1372 = vpack.c.b16 %v1368, %v1367
        %vm1377 = vcmask 523264
        %v1379 = vsel %vm1377, %v1340, 0
        %1381 = vmatpush.bf16.msra.mxu0 0
        %1382 = vmatpush.bf16.msra.mxu0 0
        %1383 = vmatpush.bf16.msra.mxu0 0
        %1384 = vmatpush.bf16.msra.mxu0 0
        %1385 = vmatpush.bf16.msra.mxu0 %v1372
        %1386 = vmatpush.bf16.msra.mxu0 %v1371
        %1387 = vmatpush.bf16.msra.mxu0 %v1370
        %1388 = vmatpush.bf16.msra.mxu0 %v1369
        %1389 = vmatmul.bf16.gmra.mxu0 %v1379
        %v1390 = vpop.f32.mrf.mxu0
        %v1391 = vadd.f32 %v1351, %v1390
        %v1392 = vpop.f32.mrf.mxu0
        %1393 = vdwg.mxu0
        %v1394 = vadd.f32 %v1301, %v1391
        %v1395 = vld [vmem:[%s14] sm:$0x1]
        %v1396 = vld [vmem:[%s15] sm:$0x1]
        %v1397 = vsel %vm726, %v1394, 0.0
        %1398 = vadd.xlane.f32.xlu0 %v1397
        %v1399 = vpop.xlane.xlu0 %1398
        %v1400 = vmul.f32 %v1399, %v1274
        %v1401 = vsub.f32 %v1394, %v1400
        %v1402 = vmul.f32 %v1401, %v1401
        %v1403 = vsel %vm726, %v1402, 0.0
        %1404 = vadd.xlane.f32.xlu0 %v1403
        %v1405 = vpop.xlane.xlu0 %1404
        %v1406 = vmul.f32 %v1405, %v1274
        %v1407 = vadd.f32 %v1406, 1e-05
        %v1408 = vrsqrt.pop %v1407
        %v1409 = vmul.f32 %v1408, %v1407
        %v1410 = vmul.f32 %v1409, %v1408
        %v1411 = vmul.f32 0.5, %v1410
        %v1412 = vsub.f32 1.5, %v1411
        %v1413 = vmul.f32 %v1408, %v1412
        %vm1414 = vweird.f32 %v1407
        %vm1415 = vweird.f32 %v1408
        %vm1416 = vmor %vm1414, %vm1415
        %v1417 = vsel %vm1416, %v1408, %v1413
        %v1418 = vmul.f32 %v1401, %v1417
        %v1420 = vperm.slane %v1395, 0
        %v1422 = vmul.f32 %v1418, %v1420
        %v1424 = vperm.slane %v1396, 0
        %v1426 = vadd.f32 %v1422, %v1424
        %1427 = vst.msk [vmem:[%s547] sm:$0xff] %vm726, %v1426
        %s1428 = sand.u32 %s400, 1
        %s1429 = scalar_lea.sflag [#allocation7], %s1428
        %s1430 = sand.u32 %s400, 1
        %s1431 = smul.addr %s1430, 8
        %s1432 = scalar_lea.vmem [#allocation6], %s1431
        // Predicated region
        $region89: #{tpu_custom_call.1} parent=83 // pred_check
          %p1433 = pneg %p410
        $region90: #{tpu_custom_call.1} parent=83 // pred_check_branch
          %1435 = sbr.rel (%p1433) target = $region92
        $region91: #{tpu_custom_call.1} parent=83 // pred_region
          %1437 = vsyncadd %s1429, 0
          %s1438 = sadd.s32 %s35, %s34
          %s1439 = smul.addr %s1438, 8
          %s1440 = scalar_lea.hbm %s16, %s1439
          %s1442 = sshll.u32 %s1432, 4
          %s1443 = int_to_ptr.vmem [resolvable:$true] %s1442
          %s1444 = sshll.u32 %s1440, 4
          %s1445 = int_to_ptr.hbm [resolvable:$true] %s1444
          %1447 = dma.vmem_to_hbm [thread:$0]  %s1443, 128, %s1445, %s1429
        $region92: #{tpu_custom_call.1} parent=83 // pred_fallthru
          _
      $region84: #{tpu_custom_call.1} parent=5 // pred_fallthru
        _
      %p1448 = scmp.le.s32.totalorder 2, %s25
      // Predicated region
      $region93: #{tpu_custom_call.1} parent=5 // pred_check
        %p1449 = pneg %p1448
      $region94: #{tpu_custom_call.1} parent=5 // pred_check_branch
        %1451 = sbr.rel (%p1449) target = $region96
      $region95: #{tpu_custom_call.1} parent=5 // pred_region
        %s1452 = ssub.s32 %s25, 2
        // Predicated region
        $region97: #{tpu_custom_call.1} parent=95 // pred_check
          %p1453 = pneg %p416
        $region98: #{tpu_custom_call.1} parent=95 // pred_check_branch
          %1455 = sbr.rel (%p1453) target = $region100
        $region99: #{tpu_custom_call.1} parent=95 // pred_region
          %s1456 = sand.u32 %s401, 1
          %s1457 = scalar_lea.sflag [#allocation7], %s1456
          %s1458 = sand.u32 %s401, 1
          %s1459 = smul.addr %s1458, 8
          %s1460 = scalar_lea.vmem [#allocation6], %s1459
          %1462 = dma.done %s1457, 128
        $region100: #{tpu_custom_call.1} parent=95 // pred_fallthru
          _
      $region96: #{tpu_custom_call.1} parent=5 // pred_fallthru
        _
    $region6: #{tpu_custom_call.1} parent=1 // loop_footer
      %s29 = sadd.s32 1, %s25
    $region7: #{tpu_custom_call.1} parent=1 // loop_footer_branch
      %24 = sbr.rel target = $region3
    $region8: #{tpu_custom_call.1} parent=1 // loop_exit
      _
    %1463 = vsyncpa [#allocation7], 1
    %s1464 = scalar_lea.sflag [#allocation7], 1
    %1465 = vsyncpa %s1464, 1

</llo_original>
